<compile_context>
chip_gen: v5e
topology: v5e:2x2
jax: 0.10.0
libtpu: 0.0.40
codegen_flags: <defaults>
</compile_context>

<pallas_src>
import functools
import math

import jax
import jax.numpy as jnp
from jax.experimental import pallas as pl
from jax.experimental.pallas import tpu as pltpu


CFG = dict(image=16, channels=3, patch=4, hidden=32, heads=4,
           layers=2, mlp=64, num_classes=100)

LANE = 128
SUBLANE = 8


def _round_up(x, m):
    return (x + m - 1) // m * m


# ----------------------------------------------------------------------------
# The single fused kernel (one folded batch block per grid step)
# ----------------------------------------------------------------------------

def _vit_kernel(patches_ref, mask_ref, pose_ref, pw_ref,
                wqkv_ref, wo_ref, w1_ref, w2_ref, lrows_ref,
                hw_ref, frows_ref,
                out_ref,
                qkv_scr, s_scr, ctx_scr, *,
                num_layers, num_heads, eps):
    f32, bf16 = jnp.float32, jnp.bfloat16
    R, D = pose_ref.shape                    # folded rows, hidden
    dh = D // num_heads
    M = w1_ref.shape[-1]
    scale = 1.0 / math.sqrt(dh)

    def mm(a, w):                            # weights are pre-cast bf16
        return jnp.dot(a.astype(bf16), w, preferred_element_type=f32)

    def ln(x, g, b):
        mu = jnp.mean(x, axis=-1, keepdims=True)
        var = jnp.maximum(jnp.mean(x * x, axis=-1, keepdims=True) - mu * mu, 0.0)
        return (x - mu) * jax.lax.rsqrt(var + eps) * g + b

    mask_add = mask_ref[...]                 # (R, nh*R) additive mask (0 / -1e9)

    # Patch embedding.  `pose` already folds pos_emb + CLS token (row 0 of each
    # image block) + conv bias, with zeros on pad rows -> one matmul + add.
    h = mm(patches_ref[0], pw_ref[...]) + pose_ref[...]        # (R, D) f32

    for l in range(num_layers):              # static unroll, L is tiny
        lr = lrows_ref[l]                    # (8, 128) packed per-layer rows
        ln1_g, ln1_b = lr[0:1, :D], lr[1:2, :D]
        bqkv = lr[2:3, :3 * D]
        bo = lr[3:4, :D]
        ln2_g, ln2_b = lr[4:5, :D], lr[5:6, :D]
        b1, b2 = lr[6:7, :M], lr[7:8, :D]

        # ---- multi-head self-attention (pre-LN), residual stays in VMEM ----
        x = ln(h, ln1_g, ln1_b)
        qkv_scr[...] = (mm(x, wqkv_ref[l]) + bqkv).astype(bf16)     # (R, 3D)

        # Per-head scores lane-stacked into one (R, nh*R) scratch.
        for hh in range(num_heads):
            lo = hh * dh
            qh = qkv_scr[:, lo:lo + dh]
            kh = qkv_scr[:, D + lo:D + lo + dh]
            # dot_general with rhs-contraction on dim 1 lets Mosaic feed K to
            # the MXU without an explicit per-head XLU transpose.
            s_scr[:, hh * R:(hh + 1) * R] = jax.lax.dot_general(
                qh, kh, (((1,), (1,)), ((), ())), preferred_element_type=f32)

        # One mask / max / exp pass for all heads.
        s_all = s_scr[...] * scale + mask_add
        s_all = s_all - jnp.max(s_all, axis=-1, keepdims=True)
        s_scr[...] = jnp.exp(s_all)

        # Per-head normalization + context, assembled into a (R, D) scratch.
        for hh in range(num_heads):
            lo = hh * dh
            p_h = s_scr[:, hh * R:(hh + 1) * R]
            inv = pl.reciprocal(jnp.sum(p_h, axis=-1, keepdims=True), approx=True)
            vh = qkv_scr[:, 2 * D + lo:2 * D + lo + dh]
            ctx_scr[:, lo:lo + dh] = jnp.dot(
                p_h.astype(bf16), vh, preferred_element_type=f32) * inv

        # Single output projection for all heads.
        h = h + mm(ctx_scr[...], wo_ref[l]) + bo

        # ---- MLP block (pre-LN) ----
        x = ln(h, ln2_g, ln2_b)
        inter = mm(x, w1_ref[l]) + b1
        # TODO(synk): HF ViT uses exact (erf) GELU; tanh approximation kept
        # for Mosaic-safe lowering.
        inter = jax.nn.gelu(inter, approximate=True)
        h = h + mm(inter, w2_ref[l]) + b2

    # Final LayerNorm + classifier on all folded rows (lane-dense store);
    # the CLS rows are picked out by the wrapper.
    fr = frows_ref[...]
    h = ln(h, fr[0:1, :D], fr[1:2, :D])
    logits = mm(h, hw_ref[...]) + fr[2:3, :]
    out_ref[0] = logits.astype(out_ref.dtype)


# ----------------------------------------------------------------------------
# Parameters (deterministic synthetic init — shapes implied by the module)
# ----------------------------------------------------------------------------

def init_params(key, cfg):
    D, M, C, P = cfg["hidden"], cfg["mlp"], cfg["channels"], cfg["patch"]
    NC, L = cfg["num_classes"], cfg["layers"]
    n_patch = (cfg["image"] // P) ** 2
    seq = n_patch + 1
    Pk = C * P * P

    def nrm(k, shape, scale=0.02):
        return (scale * jax.random.normal(k, shape)).astype(jnp.float32)

    keys = iter(jax.random.split(key, 16))
    return dict(
        patch_w=nrm(next(keys), (Pk, D)),            # conv-as-matmul weight
        patch_b=jnp.zeros((D,), jnp.float32),
        cls_token=nrm(next(keys), (D,)),
        pos_emb=nrm(next(keys), (seq, D)),
        ln1_g=jnp.ones((L, D), jnp.float32),
        ln1_b=jnp.zeros((L, D), jnp.float32),
        wqkv=nrm(next(keys), (L, D, 3 * D)),         # fused Q|K|V projection
        bqkv=jnp.zeros((L, 3 * D), jnp.float32),
        wo=nrm(next(keys), (L, D, D)),
        bo=jnp.zeros((L, D), jnp.float32),
        ln2_g=jnp.ones((L, D), jnp.float32),
        ln2_b=jnp.zeros((L, D), jnp.float32),
        w1=nrm(next(keys), (L, D, M)),
        b1=jnp.zeros((L, M), jnp.float32),
        w2=nrm(next(keys), (L, M, D)),
        b2=jnp.zeros((L, D), jnp.float32),
        lnf_g=jnp.ones((D,), jnp.float32),
        lnf_b=jnp.zeros((D,), jnp.float32),
        head_w=nrm(next(keys), (D, NC)),
        head_b=jnp.zeros((NC,), jnp.float32),
    )


# ----------------------------------------------------------------------------
# Forward pass: thin JAX wrapper (layout/packing only) + one pallas_call
# ----------------------------------------------------------------------------

def patchify(x, patch):
    # x: (B, C, H, W) NCHW -> (B, num_patches, C*P*P); matches PyTorch
    # Conv2d(kernel=patch, stride=patch) unfolding order (C, Ph, Pw).
    B, C, H, W = x.shape
    x = x.reshape(B, C, H // patch, patch, W // patch, patch)
    x = x.transpose(0, 2, 4, 1, 3, 5)
    return x.reshape(B, (H // patch) * (W // patch), C * patch * patch)


def _full_spec(arr):
    n = arr.ndim
    return pl.BlockSpec(arr.shape, lambda g, _n=n: (0,) * _n)


def vit_forward(params, x, cfg):
    B = x.shape[0]
    D, nh, L, M = cfg["hidden"], cfg["heads"], cfg["layers"], cfg["mlp"]
    NC, P = cfg["num_classes"], cfg["patch"]
    bf16 = jnp.bfloat16

    patches = patchify(x, P)                      # (B, Np, Pk)
    Np, Pk = patches.shape[1], patches.shape[2]
    S = Np + 1
    S_pad = _round_up(S, SUBLANE)                 # 17 -> 24
    NC_pad = _round_up(NC, LANE)                  # 100 -> 128

    # Batch folding: B_BLK images per grid step (fatter MXU M, fewer serial
    # steps on v5e/v6e) while keeping >=2 parallel grid steps when B >= 2 so
    # both v7x TensorCores get work.
    B_BLK = max(1, B // 2)
    G = -(-B // B_BLK)
    B_pad = G * B_BLK
    R = B_BLK * S_pad

    # Patches (bf16) padded into rows [1, 1+Np) of each image block; CLS row
    # and tail rows are zero so they contribute nothing to the embed matmul.
    patches_pad = jnp.zeros((B_pad, S_pad, Pk), bf16)
    patches_pad = patches_pad.at[:B, 1:1 + Np, :].set(patches.astype(bf16))
    patches_pad = patches_pad.reshape(G, R, Pk)

    # Fold pos-emb + CLS token + conv bias into one additive (R, D) tensor.
    pose = jnp.zeros((S_pad, D), jnp.float32)
    pose = pose.at[0, :].set(params["pos_emb"][0] + params["cls_token"])
    pose = pose.at[1:1 + Np, :].set(params["pos_emb"][1:] + params["patch_b"][None, :])
    pose = jnp.tile(pose, (B_BLK, 1))             # (R, D)

    # Additive attention mask for the lane-stacked (R, nh*R) scores:
    # block-diagonal over folded images, padded key positions masked.
    # Built host-side so the kernel needs no integer div/mod.
    col = jnp.arange(nh * R)
    kc = col % R                                  # head-local key index
    valid = ((kc % S_pad)[None, :] < S) & \
            ((kc // S_pad)[None, :] == (jnp.arange(R) // S_pad)[:, None])
    mask_add = jnp.where(valid, 0.0, -1e9).astype(jnp.float32)

    # Pack all per-layer 1-row params into one (L, 8, 128) tensor (one DMA).
    lrows = jnp.zeros((L, SUBLANE, LANE), jnp.float32)
    lrows = lrows.at[:, 0, :D].set(params["ln1_g"])
    lrows = lrows.at[:, 1, :D].set(params["ln1_b"])
    lrows = lrows.at[:, 2, :3 * D].set(params["bqkv"])
    lrows = lrows.at[:, 3, :D].set(params["bo"])
    lrows = lrows.at[:, 4, :D].set(params["ln2_g"])
    lrows = lrows.at[:, 5, :D].set(params["ln2_b"])
    lrows = lrows.at[:, 6, :M].set(params["b1"])
    lrows = lrows.at[:, 7, :D].set(params["b2"])

    # Final-LN gamma/beta + classifier bias packed into one (8, 128) tensor.
    frows = jnp.zeros((SUBLANE, NC_pad), jnp.float32)
    frows = frows.at[0, :D].set(params["lnf_g"])
    frows = frows.at[1, :D].set(params["lnf_b"])
    frows = frows.at[2, :NC].set(params["head_b"])

    # Weights pre-cast to bf16 (MXU fast path, half the DMA bytes); classifier
    # weight zero-padded to a lane-dense 128-column output.
    patch_w = params["patch_w"].astype(bf16)
    wqkv = params["wqkv"].astype(bf16)
    wo = params["wo"].astype(bf16)
    w1 = params["w1"].astype(bf16)
    w2 = params["w2"].astype(bf16)
    head_w = jnp.zeros((D, NC_pad), bf16).at[:, :NC].set(params["head_w"].astype(bf16))

    weights = (mask_add, pose, patch_w, wqkv, wo, w1, w2, lrows, head_w, frows)

    kernel = functools.partial(_vit_kernel, num_layers=L, num_heads=nh, eps=1e-12)

    out = pl.pallas_call(
        kernel,
        out_shape=jax.ShapeDtypeStruct((G, R, NC_pad), jnp.float32),
        grid=(G,),
        in_specs=[pl.BlockSpec((1, R, Pk), lambda g: (g, 0, 0))]
                 + [_full_spec(w) for w in weights],
        out_specs=pl.BlockSpec((1, R, NC_pad), lambda g: (g, 0, 0)),
        scratch_shapes=[pltpu.VMEM((R, 3 * D), bf16),          # fused QKV
                        pltpu.VMEM((R, nh * R), jnp.float32),  # stacked scores
                        pltpu.VMEM((R, D), jnp.float32)],      # merged context
        compiler_params=pltpu.CompilerParams(
            dimension_semantics=("parallel",)),   # shard batch blocks over TCs
    )(patches_pad, *weights)

    # CLS-token row of every image; drop padded classes / padded batch.
    return out.reshape(B_pad, S_pad, NC_pad)[:B, 0, :NC]


# ----------------------------------------------------------------------------

if __name__ == "__main__":
    key = jax.random.PRNGKey(0)
    k_param, k_x = jax.random.split(key)

    params = init_params(k_param, CFG)
    x = jax.random.normal(
        k_x, (2, CFG["channels"], CFG["image"], CFG["image"]), dtype=jnp.float32
    )  # NCHW pixel_values, like the PyTorch module expects.

    fwd = jax.jit(lambda p, xx: vit_forward(p, xx, CFG))
    logits = jax.block_until_ready(fwd(params, x))

    assert logits.shape == (2, CFG["num_classes"]) and logits.dtype == jnp.float32
    assert bool(jnp.all(jnp.isfinite(logits)))
    print("KERNEL_OK")
</pallas_src>

<mosaic_0001>
module attributes {stable_mosaic.version = 11 : i64} {
  func.func @_vit_kernel(%arg0: i32, %arg1: memref<1x24x48xbf16, #tpu.memory_space<vmem>>, %arg2: memref<24x96xf32, #tpu.memory_space<vmem>>, %arg3: memref<24x32xf32, #tpu.memory_space<vmem>>, %arg4: memref<48x32xbf16, #tpu.memory_space<vmem>>, %arg5: memref<2x32x96xbf16, #tpu.memory_space<vmem>>, %arg6: memref<2x32x32xbf16, #tpu.memory_space<vmem>>, %arg7: memref<2x32x64xbf16, #tpu.memory_space<vmem>>, %arg8: memref<2x64x32xbf16, #tpu.memory_space<vmem>>, %arg9: memref<2x8x128xf32, #tpu.memory_space<vmem>>, %arg10: memref<32x128xbf16, #tpu.memory_space<vmem>>, %arg11: memref<8x128xf32, #tpu.memory_space<vmem>>, %arg12: memref<1x24x128xf32, #tpu.memory_space<vmem>>, %arg13: memref<24x96xbf16, #tpu.memory_space<vmem>>, %arg14: memref<24x96xf32, #tpu.memory_space<vmem>>, %arg15: memref<24x32xf32, #tpu.memory_space<vmem>>) attributes {dimension_semantics = [#tpu.dimension_semantics<parallel>], iteration_bounds = array<i64: 2>, scalar_prefetch = 0 : i64, scratch_operands = 3 : i64, tpu.core_type = #tpu.core_type<tc>, window_params = [{transform_indices = @transform_0, window_bounds = array<i64: 1, 24, 48>}, {pipeline_mode = #tpu.pipeline_mode<synchronous>, transform_indices = @transform_1, window_bounds = array<i64: 24, 96>}, {pipeline_mode = #tpu.pipeline_mode<synchronous>, transform_indices = @transform_2, window_bounds = array<i64: 24, 32>}, {pipeline_mode = #tpu.pipeline_mode<synchronous>, transform_indices = @transform_3, window_bounds = array<i64: 48, 32>}, {pipeline_mode = #tpu.pipeline_mode<synchronous>, transform_indices = @transform_4, window_bounds = array<i64: 2, 32, 96>}, {pipeline_mode = #tpu.pipeline_mode<synchronous>, transform_indices = @transform_5, window_bounds = array<i64: 2, 32, 32>}, {pipeline_mode = #tpu.pipeline_mode<synchronous>, transform_indices = @transform_6, window_bounds = array<i64: 2, 32, 64>}, {pipeline_mode = #tpu.pipeline_mode<synchronous>, transform_indices = @transform_7, window_bounds = array<i64: 2, 64, 32>}, {pipeline_mode = #tpu.pipeline_mode<synchronous>, transform_indices = @transform_8, window_bounds = array<i64: 2, 8, 128>}, {pipeline_mode = #tpu.pipeline_mode<synchronous>, transform_indices = @transform_9, window_bounds = array<i64: 32, 128>}, {pipeline_mode = #tpu.pipeline_mode<synchronous>, transform_indices = @transform_10, window_bounds = array<i64: 8, 128>}, {transform_indices = @transform_11, window_bounds = array<i64: 1, 24, 128>}]} {
    %c0 = arith.constant 0 : index
    %c0_0 = arith.constant 0 : index
    %0 = vector.load %arg2[%c0, %c0_0] : memref<24x96xf32, #tpu.memory_space<vmem>>, vector<24x96xf32>
    %c0_1 = arith.constant 0 : index
    %c0_2 = arith.constant 0 : index
    %c0_3 = arith.constant 0 : index
    %1 = vector.load %arg1[%c0_1, %c0_2, %c0_3] : memref<1x24x48xbf16, #tpu.memory_space<vmem>>, vector<1x24x48xbf16>
    %2 = vector.shape_cast %1 : vector<1x24x48xbf16> to vector<24x48xbf16>
    %c0_4 = arith.constant 0 : index
    %c0_5 = arith.constant 0 : index
    %3 = vector.load %arg4[%c0_4, %c0_5] : memref<48x32xbf16, #tpu.memory_space<vmem>>, vector<48x32xbf16>
    %cst = arith.constant dense<0.000000e+00> : vector<24x32xf32>
    %4 = tpu.matmul %2, %3, %cst {dimension_numbers = #tpu.dot_dimension_numbers<[1], [0], [0], [1], [0, 0, 1, 1], [], []>} : vector<24x48xbf16>, vector<48x32xbf16>, vector<24x32xf32> -> vector<24x32xf32>
    %c0_6 = arith.constant 0 : index
    %c0_7 = arith.constant 0 : index
    %5 = vector.load %arg3[%c0_6, %c0_7] : memref<24x32xf32, #tpu.memory_space<vmem>>, vector<24x32xf32>
    %6 = arith.addf %4, %5 : vector<24x32xf32>
    %c0_8 = arith.constant 0 : index
    %c0_9 = arith.constant 0 : index
    %c0_10 = arith.constant 0 : index
    %7 = vector.load %arg9[%c0_8, %c0_9, %c0_10] : memref<2x8x128xf32, #tpu.memory_space<vmem>>, vector<1x8x128xf32>
    %8 = vector.shape_cast %7 : vector<1x8x128xf32> to vector<8x128xf32>
    %9 = vector.extract_strided_slice %8 {offsets = [0, 0], sizes = [1, 32], strides = [1, 1]} : vector<8x128xf32> to vector<1x32xf32>
    %10 = vector.extract_strided_slice %8 {offsets = [1, 0], sizes = [1, 32], strides = [1, 1]} : vector<8x128xf32> to vector<1x32xf32>
    %11 = vector.extract_strided_slice %8 {offsets = [2, 0], sizes = [1, 96], strides = [1, 1]} : vector<8x128xf32> to vector<1x96xf32>
    %12 = vector.extract_strided_slice %8 {offsets = [3, 0], sizes = [1, 32], strides = [1, 1]} : vector<8x128xf32> to vector<1x32xf32>
    %13 = vector.extract_strided_slice %8 {offsets = [4, 0], sizes = [1, 32], strides = [1, 1]} : vector<8x128xf32> to vector<1x32xf32>
    %14 = vector.extract_strided_slice %8 {offsets = [5, 0], sizes = [1, 32], strides = [1, 1]} : vector<8x128xf32> to vector<1x32xf32>
    %15 = vector.extract_strided_slice %8 {offsets = [6, 0], sizes = [1, 64], strides = [1, 1]} : vector<8x128xf32> to vector<1x64xf32>
    %16 = vector.extract_strided_slice %8 {offsets = [7, 0], sizes = [1, 32], strides = [1, 1]} : vector<8x128xf32> to vector<1x32xf32>
    %cst_11 = arith.constant dense<0.000000e+00> : vector<24xf32>
    %17 = vector.multi_reduction <add>, %6, %cst_11 [1] : vector<24x32xf32> to vector<24xf32>
    %18 = vector.shape_cast %17 : vector<24xf32> to vector<24x1xf32>
    %cst_12 = arith.constant 3.200000e+01 : f32
    %19 = vector.broadcast %cst_12 : f32 to vector<24x1xf32>
    %20 = arith.divf %18, %19 : vector<24x1xf32>
    %21 = arith.mulf %6, %6 : vector<24x32xf32>
    %cst_13 = arith.constant dense<0.000000e+00> : vector<24xf32>
    %22 = vector.multi_reduction <add>, %21, %cst_13 [1] : vector<24x32xf32> to vector<24xf32>
    %23 = vector.shape_cast %22 : vector<24xf32> to vector<24x1xf32>
    %cst_14 = arith.constant 3.200000e+01 : f32
    %24 = vector.broadcast %cst_14 : f32 to vector<24x1xf32>
    %25 = arith.divf %23, %24 : vector<24x1xf32>
    %26 = arith.mulf %20, %20 : vector<24x1xf32>
    %27 = arith.subf %25, %26 : vector<24x1xf32>
    %cst_15 = arith.constant 0.000000e+00 : f32
    %28 = vector.broadcast %cst_15 : f32 to vector<24x1xf32>
    %29 = arith.maximumf %27, %28 : vector<24x1xf32>
    %30 = vector.broadcast %20 : vector<24x1xf32> to vector<24x32xf32>
    %31 = arith.subf %6, %30 : vector<24x32xf32>
    %cst_16 = arith.constant 9.99999996E-13 : f32
    %32 = vector.broadcast %cst_16 : f32 to vector<24x1xf32>
    %33 = arith.addf %29, %32 : vector<24x1xf32>
    %34 = math.rsqrt %33 : vector<24x1xf32>
    %35 = vector.broadcast %34 : vector<24x1xf32> to vector<24x32xf32>
    %36 = arith.mulf %31, %35 : vector<24x32xf32>
    %37 = vector.broadcast %9 : vector<1x32xf32> to vector<24x32xf32>
    %38 = arith.mulf %36, %37 : vector<24x32xf32>
    %39 = vector.broadcast %10 : vector<1x32xf32> to vector<24x32xf32>
    %40 = arith.addf %38, %39 : vector<24x32xf32>
    %c0_17 = arith.constant 0 : index
    %c0_18 = arith.constant 0 : index
    %c0_19 = arith.constant 0 : index
    %41 = vector.load %arg5[%c0_17, %c0_18, %c0_19] : memref<2x32x96xbf16, #tpu.memory_space<vmem>>, vector<1x32x96xbf16>
    %42 = vector.shape_cast %41 : vector<1x32x96xbf16> to vector<32x96xbf16>
    %43 = arith.truncf %40 : vector<24x32xf32> to vector<24x32xbf16>
    %cst_20 = arith.constant dense<0.000000e+00> : vector<24x96xf32>
    %44 = tpu.matmul %43, %42, %cst_20 {dimension_numbers = #tpu.dot_dimension_numbers<[1], [0], [0], [1], [0, 0, 1, 1], [], []>} : vector<24x32xbf16>, vector<32x96xbf16>, vector<24x96xf32> -> vector<24x96xf32>
    %45 = vector.broadcast %11 : vector<1x96xf32> to vector<24x96xf32>
    %46 = arith.addf %44, %45 : vector<24x96xf32>
    %47 = arith.truncf %46 : vector<24x96xf32> to vector<24x96xbf16>
    %c0_21 = arith.constant 0 : index
    %c0_22 = arith.constant 0 : index
    %48 = vector.load %arg13[%c0_21, %c0_22] : memref<24x96xbf16, #tpu.memory_space<vmem>>, vector<24x96xbf16>
    tpu.vector_store %arg13[%c0_21, %c0_22], %47 {strides = array<i32>} : memref<24x96xbf16, #tpu.memory_space<vmem>>, vector<24x96xbf16>,
    %c0_23 = arith.constant 0 : index
    %c0_24 = arith.constant 0 : index
    %49 = vector.load %arg13[%c0_23, %c0_24] : memref<24x96xbf16, #tpu.memory_space<vmem>>, vector<24x8xbf16>
    %c0_25 = arith.constant 0 : index
    %c32 = arith.constant 32 : index
    %50 = vector.load %arg13[%c0_25, %c32] : memref<24x96xbf16, #tpu.memory_space<vmem>>, vector<24x8xbf16>
    %cst_26 = arith.constant dense<0.000000e+00> : vector<24x24xf32>
    %51 = tpu.matmul %49, %50, %cst_26 {dimension_numbers = #tpu.dot_dimension_numbers<[1], [1], [0], [0], [0, 0, 1, 0], [], []>} : vector<24x8xbf16>, vector<24x8xbf16>, vector<24x24xf32> -> vector<24x24xf32>
    %c0_27 = arith.constant 0 : index
    %c0_28 = arith.constant 0 : index
    %52 = vector.load %arg14[%c0_27, %c0_28] : memref<24x96xf32, #tpu.memory_space<vmem>>, vector<24x24xf32>
    tpu.vector_store %arg14[%c0_27, %c0_28], %51 {strides = array<i32>} : memref<24x96xf32, #tpu.memory_space<vmem>>, vector<24x24xf32>,
    %c0_29 = arith.constant 0 : index
    %c8 = arith.constant 8 : index
    %53 = vector.load %arg13[%c0_29, %c8] : memref<24x96xbf16, #tpu.memory_space<vmem>>, vector<24x8xbf16>
    %c0_30 = arith.constant 0 : index
    %c40 = arith.constant 40 : index
    %54 = vector.load %arg13[%c0_30, %c40] : memref<24x96xbf16, #tpu.memory_space<vmem>>, vector<24x8xbf16>
    %cst_31 = arith.constant dense<0.000000e+00> : vector<24x24xf32>
    %55 = tpu.matmul %53, %54, %cst_31 {dimension_numbers = #tpu.dot_dimension_numbers<[1], [1], [0], [0], [0, 0, 1, 0], [], []>} : vector<24x8xbf16>, vector<24x8xbf16>, vector<24x24xf32> -> vector<24x24xf32>
    %c0_32 = arith.constant 0 : index
    %c24 = arith.constant 24 : index
    %56 = vector.load %arg14[%c0_32, %c24] : memref<24x96xf32, #tpu.memory_space<vmem>>, vector<24x24xf32>
    tpu.vector_store %arg14[%c0_32, %c24], %55 {strides = array<i32>} : memref<24x96xf32, #tpu.memory_space<vmem>>, vector<24x24xf32>,
    %c0_33 = arith.constant 0 : index
    %c16 = arith.constant 16 : index
    %57 = vector.load %arg13[%c0_33, %c16] : memref<24x96xbf16, #tpu.memory_space<vmem>>, vector<24x8xbf16>
    %c0_34 = arith.constant 0 : index
    %c48 = arith.constant 48 : index
    %58 = vector.load %arg13[%c0_34, %c48] : memref<24x96xbf16, #tpu.memory_space<vmem>>, vector<24x8xbf16>
    %cst_35 = arith.constant dense<0.000000e+00> : vector<24x24xf32>
    %59 = tpu.matmul %57, %58, %cst_35 {dimension_numbers = #tpu.dot_dimension_numbers<[1], [1], [0], [0], [0, 0, 1, 0], [], []>} : vector<24x8xbf16>, vector<24x8xbf16>, vector<24x24xf32> -> vector<24x24xf32>
    %c0_36 = arith.constant 0 : index
    %c48_37 = arith.constant 48 : index
    %60 = vector.load %arg14[%c0_36, %c48_37] : memref<24x96xf32, #tpu.memory_space<vmem>>, vector<24x24xf32>
    tpu.vector_store %arg14[%c0_36, %c48_37], %59 {strides = array<i32>} : memref<24x96xf32, #tpu.memory_space<vmem>>, vector<24x24xf32>,
    %c0_38 = arith.constant 0 : index
    %c24_39 = arith.constant 24 : index
    %61 = vector.load %arg13[%c0_38, %c24_39] : memref<24x96xbf16, #tpu.memory_space<vmem>>, vector<24x8xbf16>
    %c0_40 = arith.constant 0 : index
    %c56 = arith.constant 56 : index
    %62 = vector.load %arg13[%c0_40, %c56] : memref<24x96xbf16, #tpu.memory_space<vmem>>, vector<24x8xbf16>
    %cst_41 = arith.constant dense<0.000000e+00> : vector<24x24xf32>
    %63 = tpu.matmul %61, %62, %cst_41 {dimension_numbers = #tpu.dot_dimension_numbers<[1], [1], [0], [0], [0, 0, 1, 0], [], []>} : vector<24x8xbf16>, vector<24x8xbf16>, vector<24x24xf32> -> vector<24x24xf32>
    %c0_42 = arith.constant 0 : index
    %c72 = arith.constant 72 : index
    %64 = vector.load %arg14[%c0_42, %c72] : memref<24x96xf32, #tpu.memory_space<vmem>>, vector<24x24xf32>
    tpu.vector_store %arg14[%c0_42, %c72], %63 {strides = array<i32>} : memref<24x96xf32, #tpu.memory_space<vmem>>, vector<24x24xf32>,
    %c0_43 = arith.constant 0 : index
    %c0_44 = arith.constant 0 : index
    %65 = vector.load %arg14[%c0_43, %c0_44] : memref<24x96xf32, #tpu.memory_space<vmem>>, vector<24x96xf32>
    %cst_45 = arith.constant 0.353553385 : f32
    %66 = vector.broadcast %cst_45 : f32 to vector<24x96xf32>
    %67 = arith.mulf %65, %66 : vector<24x96xf32>
    %68 = arith.addf %67, %0 : vector<24x96xf32>
    %cst_46 = arith.constant dense<0xFF800000> : vector<24xf32>
    %69 = vector.multi_reduction <maximumf>, %68, %cst_46 [1] : vector<24x96xf32> to vector<24xf32>
    %70 = vector.shape_cast %69 : vector<24xf32> to vector<24x1xf32>
    %71 = vector.broadcast %70 : vector<24x1xf32> to vector<24x96xf32>
    %72 = arith.subf %68, %71 : vector<24x96xf32>
    %73 = math.exp %72 : vector<24x96xf32>
    %c0_47 = arith.constant 0 : index
    %c0_48 = arith.constant 0 : index
    %74 = vector.load %arg14[%c0_47, %c0_48] : memref<24x96xf32, #tpu.memory_space<vmem>>, vector<24x96xf32>
    tpu.vector_store %arg14[%c0_47, %c0_48], %73 {strides = array<i32>} : memref<24x96xf32, #tpu.memory_space<vmem>>, vector<24x96xf32>,
    %c0_49 = arith.constant 0 : index
    %c0_50 = arith.constant 0 : index
    %75 = vector.load %arg14[%c0_49, %c0_50] : memref<24x96xf32, #tpu.memory_space<vmem>>, vector<24x24xf32>
    %cst_51 = arith.constant dense<0.000000e+00> : vector<24xf32>
    %76 = vector.multi_reduction <add>, %75, %cst_51 [1] : vector<24x24xf32> to vector<24xf32>
    %77 = vector.shape_cast %76 : vector<24xf32> to vector<24x1xf32>
    %78 = tpu.reciprocal %77 {approx = true} : vector<24x1xf32> -> vector<24x1xf32>
    %c0_52 = arith.constant 0 : index
    %c64 = arith.constant 64 : index
    %79 = vector.load %arg13[%c0_52, %c64] : memref<24x96xbf16, #tpu.memory_space<vmem>>, vector<24x8xbf16>
    %80 = arith.truncf %75 : vector<24x24xf32> to vector<24x24xbf16>
    %cst_53 = arith.constant dense<0.000000e+00> : vector<24x8xf32>
    %81 = tpu.matmul %80, %79, %cst_53 {dimension_numbers = #tpu.dot_dimension_numbers<[1], [0], [0], [1], [0, 0, 1, 1], [], []>} : vector<24x24xbf16>, vector<24x8xbf16>, vector<24x8xf32> -> vector<24x8xf32>
    %82 = vector.broadcast %78 : vector<24x1xf32> to vector<24x8xf32>
    %83 = arith.mulf %81, %82 : vector<24x8xf32>
    %c0_54 = arith.constant 0 : index
    %c0_55 = arith.constant 0 : index
    %84 = vector.load %arg15[%c0_54, %c0_55] : memref<24x32xf32, #tpu.memory_space<vmem>>, vector<24x8xf32>
    tpu.vector_store %arg15[%c0_54, %c0_55], %83 {strides = array<i32>} : memref<24x32xf32, #tpu.memory_space<vmem>>, vector<24x8xf32>,
    %c0_56 = arith.constant 0 : index
    %c24_57 = arith.constant 24 : index
    %85 = vector.load %arg14[%c0_56, %c24_57] : memref<24x96xf32, #tpu.memory_space<vmem>>, vector<24x24xf32>
    %cst_58 = arith.constant dense<0.000000e+00> : vector<24xf32>
    %86 = vector.multi_reduction <add>, %85, %cst_58 [1] : vector<24x24xf32> to vector<24xf32>
    %87 = vector.shape_cast %86 : vector<24xf32> to vector<24x1xf32>
    %88 = tpu.reciprocal %87 {approx = true} : vector<24x1xf32> -> vector<24x1xf32>
    %c0_59 = arith.constant 0 : index
    %c72_60 = arith.constant 72 : index
    %89 = vector.load %arg13[%c0_59, %c72_60] : memref<24x96xbf16, #tpu.memory_space<vmem>>, vector<24x8xbf16>
    %90 = arith.truncf %85 : vector<24x24xf32> to vector<24x24xbf16>
    %cst_61 = arith.constant dense<0.000000e+00> : vector<24x8xf32>
    %91 = tpu.matmul %90, %89, %cst_61 {dimension_numbers = #tpu.dot_dimension_numbers<[1], [0], [0], [1], [0, 0, 1, 1], [], []>} : vector<24x24xbf16>, vector<24x8xbf16>, vector<24x8xf32> -> vector<24x8xf32>
    %92 = vector.broadcast %88 : vector<24x1xf32> to vector<24x8xf32>
    %93 = arith.mulf %91, %92 : vector<24x8xf32>
    %c0_62 = arith.constant 0 : index
    %c8_63 = arith.constant 8 : index
    %94 = vector.load %arg15[%c0_62, %c8_63] : memref<24x32xf32, #tpu.memory_space<vmem>>, vector<24x8xf32>
    tpu.vector_store %arg15[%c0_62, %c8_63], %93 {strides = array<i32>} : memref<24x32xf32, #tpu.memory_space<vmem>>, vector<24x8xf32>,
    %c0_64 = arith.constant 0 : index
    %c48_65 = arith.constant 48 : index
    %95 = vector.load %arg14[%c0_64, %c48_65] : memref<24x96xf32, #tpu.memory_space<vmem>>, vector<24x24xf32>
    %cst_66 = arith.constant dense<0.000000e+00> : vector<24xf32>
    %96 = vector.multi_reduction <add>, %95, %cst_66 [1] : vector<24x24xf32> to vector<24xf32>
    %97 = vector.shape_cast %96 : vector<24xf32> to vector<24x1xf32>
    %98 = tpu.reciprocal %97 {approx = true} : vector<24x1xf32> -> vector<24x1xf32>
    %c0_67 = arith.constant 0 : index
    %c80 = arith.constant 80 : index
    %99 = vector.load %arg13[%c0_67, %c80] : memref<24x96xbf16, #tpu.memory_space<vmem>>, vector<24x8xbf16>
    %100 = arith.truncf %95 : vector<24x24xf32> to vector<24x24xbf16>
    %cst_68 = arith.constant dense<0.000000e+00> : vector<24x8xf32>
    %101 = tpu.matmul %100, %99, %cst_68 {dimension_numbers = #tpu.dot_dimension_numbers<[1], [0], [0], [1], [0, 0, 1, 1], [], []>} : vector<24x24xbf16>, vector<24x8xbf16>, vector<24x8xf32> -> vector<24x8xf32>
    %102 = vector.broadcast %98 : vector<24x1xf32> to vector<24x8xf32>
    %103 = arith.mulf %101, %102 : vector<24x8xf32>
    %c0_69 = arith.constant 0 : index
    %c16_70 = arith.constant 16 : index
    %104 = vector.load %arg15[%c0_69, %c16_70] : memref<24x32xf32, #tpu.memory_space<vmem>>, vector<24x8xf32>
    tpu.vector_store %arg15[%c0_69, %c16_70], %103 {strides = array<i32>} : memref<24x32xf32, #tpu.memory_space<vmem>>, vector<24x8xf32>,
    %c0_71 = arith.constant 0 : index
    %c72_72 = arith.constant 72 : index
    %105 = vector.load %arg14[%c0_71, %c72_72] : memref<24x96xf32, #tpu.memory_space<vmem>>, vector<24x24xf32>
    %cst_73 = arith.constant dense<0.000000e+00> : vector<24xf32>
    %106 = vector.multi_reduction <add>, %105, %cst_73 [1] : vector<24x24xf32> to vector<24xf32>
    %107 = vector.shape_cast %106 : vector<24xf32> to vector<24x1xf32>
    %108 = tpu.reciprocal %107 {approx = true} : vector<24x1xf32> -> vector<24x1xf32>
    %c0_74 = arith.constant 0 : index
    %c88 = arith.constant 88 : index
    %109 = vector.load %arg13[%c0_74, %c88] : memref<24x96xbf16, #tpu.memory_space<vmem>>, vector<24x8xbf16>
    %110 = arith.truncf %105 : vector<24x24xf32> to vector<24x24xbf16>
    %cst_75 = arith.constant dense<0.000000e+00> : vector<24x8xf32>
    %111 = tpu.matmul %110, %109, %cst_75 {dimension_numbers = #tpu.dot_dimension_numbers<[1], [0], [0], [1], [0, 0, 1, 1], [], []>} : vector<24x24xbf16>, vector<24x8xbf16>, vector<24x8xf32> -> vector<24x8xf32>
    %112 = vector.broadcast %108 : vector<24x1xf32> to vector<24x8xf32>
    %113 = arith.mulf %111, %112 : vector<24x8xf32>
    %c0_76 = arith.constant 0 : index
    %c24_77 = arith.constant 24 : index
    %114 = vector.load %arg15[%c0_76, %c24_77] : memref<24x32xf32, #tpu.memory_space<vmem>>, vector<24x8xf32>
    tpu.vector_store %arg15[%c0_76, %c24_77], %113 {strides = array<i32>} : memref<24x32xf32, #tpu.memory_space<vmem>>, vector<24x8xf32>,
    %c0_78 = arith.constant 0 : index
    %c0_79 = arith.constant 0 : index
    %115 = vector.load %arg15[%c0_78, %c0_79] : memref<24x32xf32, #tpu.memory_space<vmem>>, vector<24x32xf32>
    %c0_80 = arith.constant 0 : index
    %c0_81 = arith.constant 0 : index
    %c0_82 = arith.constant 0 : index
    %116 = vector.load %arg6[%c0_80, %c0_81, %c0_82] : memref<2x32x32xbf16, #tpu.memory_space<vmem>>, vector<1x32x32xbf16>
    %117 = vector.shape_cast %116 : vector<1x32x32xbf16> to vector<32x32xbf16>
    %118 = arith.truncf %115 : vector<24x32xf32> to vector<24x32xbf16>
    %cst_83 = arith.constant dense<0.000000e+00> : vector<24x32xf32>
    %119 = tpu.matmul %118, %117, %cst_83 {dimension_numbers = #tpu.dot_dimension_numbers<[1], [0], [0], [1], [0, 0, 1, 1], [], []>} : vector<24x32xbf16>, vector<32x32xbf16>, vector<24x32xf32> -> vector<24x32xf32>
    %120 = arith.addf %6, %119 : vector<24x32xf32>
    %121 = vector.broadcast %12 : vector<1x32xf32> to vector<24x32xf32>
    %122 = arith.addf %120, %121 : vector<24x32xf32>
    %cst_84 = arith.constant dense<0.000000e+00> : vector<24xf32>
    %123 = vector.multi_reduction <add>, %122, %cst_84 [1] : vector<24x32xf32> to vector<24xf32>
    %124 = vector.shape_cast %123 : vector<24xf32> to vector<24x1xf32>
    %cst_85 = arith.constant 3.200000e+01 : f32
    %125 = vector.broadcast %cst_85 : f32 to vector<24x1xf32>
    %126 = arith.divf %124, %125 : vector<24x1xf32>
    %127 = arith.mulf %122, %122 : vector<24x32xf32>
    %cst_86 = arith.constant dense<0.000000e+00> : vector<24xf32>
    %128 = vector.multi_reduction <add>, %127, %cst_86 [1] : vector<24x32xf32> to vector<24xf32>
    %129 = vector.shape_cast %128 : vector<24xf32> to vector<24x1xf32>
    %cst_87 = arith.constant 3.200000e+01 : f32
    %130 = vector.broadcast %cst_87 : f32 to vector<24x1xf32>
    %131 = arith.divf %129, %130 : vector<24x1xf32>
    %132 = arith.mulf %126, %126 : vector<24x1xf32>
    %133 = arith.subf %131, %132 : vector<24x1xf32>
    %cst_88 = arith.constant 0.000000e+00 : f32
    %134 = vector.broadcast %cst_88 : f32 to vector<24x1xf32>
    %135 = arith.maximumf %133, %134 : vector<24x1xf32>
    %136 = vector.broadcast %126 : vector<24x1xf32> to vector<24x32xf32>
    %137 = arith.subf %122, %136 : vector<24x32xf32>
    %cst_89 = arith.constant 9.99999996E-13 : f32
    %138 = vector.broadcast %cst_89 : f32 to vector<24x1xf32>
    %139 = arith.addf %135, %138 : vector<24x1xf32>
    %140 = math.rsqrt %139 : vector<24x1xf32>
    %141 = vector.broadcast %140 : vector<24x1xf32> to vector<24x32xf32>
    %142 = arith.mulf %137, %141 : vector<24x32xf32>
    %143 = vector.broadcast %13 : vector<1x32xf32> to vector<24x32xf32>
    %144 = arith.mulf %142, %143 : vector<24x32xf32>
    %145 = vector.broadcast %14 : vector<1x32xf32> to vector<24x32xf32>
    %146 = arith.addf %144, %145 : vector<24x32xf32>
    %c0_90 = arith.constant 0 : index
    %c0_91 = arith.constant 0 : index
    %c0_92 = arith.constant 0 : index
    %147 = vector.load %arg7[%c0_90, %c0_91, %c0_92] : memref<2x32x64xbf16, #tpu.memory_space<vmem>>, vector<1x32x64xbf16>
    %148 = vector.shape_cast %147 : vector<1x32x64xbf16> to vector<32x64xbf16>
    %149 = arith.truncf %146 : vector<24x32xf32> to vector<24x32xbf16>
    %cst_93 = arith.constant dense<0.000000e+00> : vector<24x64xf32>
    %150 = tpu.matmul %149, %148, %cst_93 {dimension_numbers = #tpu.dot_dimension_numbers<[1], [0], [0], [1], [0, 0, 1, 1], [], []>} : vector<24x32xbf16>, vector<32x64xbf16>, vector<24x64xf32> -> vector<24x64xf32>
    %151 = vector.broadcast %15 : vector<1x64xf32> to vector<24x64xf32>
    %152 = arith.addf %150, %151 : vector<24x64xf32>
    %153 = arith.mulf %152, %152 : vector<24x64xf32>
    %154 = arith.mulf %152, %153 : vector<24x64xf32>
    %cst_94 = arith.constant 4.471500e-02 : f32
    %155 = vector.broadcast %cst_94 : f32 to vector<24x64xf32>
    %156 = arith.mulf %155, %154 : vector<24x64xf32>
    %157 = arith.addf %152, %156 : vector<24x64xf32>
    %cst_95 = arith.constant 0.797884583 : f32
    %158 = vector.broadcast %cst_95 : f32 to vector<24x64xf32>
    %159 = arith.mulf %158, %157 : vector<24x64xf32>
    %160 = math.tanh %159 : vector<24x64xf32>
    %cst_96 = arith.constant 1.000000e+00 : f32
    %161 = vector.broadcast %cst_96 : f32 to vector<24x64xf32>
    %162 = arith.addf %161, %160 : vector<24x64xf32>
    %cst_97 = arith.constant 5.000000e-01 : f32
    %163 = vector.broadcast %cst_97 : f32 to vector<24x64xf32>
    %164 = arith.mulf %163, %162 : vector<24x64xf32>
    %165 = arith.mulf %152, %164 : vector<24x64xf32>
    %c0_98 = arith.constant 0 : index
    %c0_99 = arith.constant 0 : index
    %c0_100 = arith.constant 0 : index
    %166 = vector.load %arg8[%c0_98, %c0_99, %c0_100] : memref<2x64x32xbf16, #tpu.memory_space<vmem>>, vector<1x64x32xbf16>
    %167 = vector.shape_cast %166 : vector<1x64x32xbf16> to vector<64x32xbf16>
    %168 = arith.truncf %165 : vector<24x64xf32> to vector<24x64xbf16>
    %cst_101 = arith.constant dense<0.000000e+00> : vector<24x32xf32>
    %169 = tpu.matmul %168, %167, %cst_101 {dimension_numbers = #tpu.dot_dimension_numbers<[1], [0], [0], [1], [0, 0, 1, 1], [], []>} : vector<24x64xbf16>, vector<64x32xbf16>, vector<24x32xf32> -> vector<24x32xf32>
    %170 = arith.addf %122, %169 : vector<24x32xf32>
    %171 = vector.broadcast %16 : vector<1x32xf32> to vector<24x32xf32>
    %172 = arith.addf %170, %171 : vector<24x32xf32>
    %c1 = arith.constant 1 : index
    %c0_102 = arith.constant 0 : index
    %c0_103 = arith.constant 0 : index
    %173 = vector.load %arg9[%c1, %c0_102, %c0_103] : memref<2x8x128xf32, #tpu.memory_space<vmem>>, vector<1x8x128xf32>
    %174 = vector.shape_cast %173 : vector<1x8x128xf32> to vector<8x128xf32>
    %175 = vector.extract_strided_slice %174 {offsets = [0, 0], sizes = [1, 32], strides = [1, 1]} : vector<8x128xf32> to vector<1x32xf32>
    %176 = vector.extract_strided_slice %174 {offsets = [1, 0], sizes = [1, 32], strides = [1, 1]} : vector<8x128xf32> to vector<1x32xf32>
    %177 = vector.extract_strided_slice %174 {offsets = [2, 0], sizes = [1, 96], strides = [1, 1]} : vector<8x128xf32> to vector<1x96xf32>
    %178 = vector.extract_strided_slice %174 {offsets = [3, 0], sizes = [1, 32], strides = [1, 1]} : vector<8x128xf32> to vector<1x32xf32>
    %179 = vector.extract_strided_slice %174 {offsets = [4, 0], sizes = [1, 32], strides = [1, 1]} : vector<8x128xf32> to vector<1x32xf32>
    %180 = vector.extract_strided_slice %174 {offsets = [5, 0], sizes = [1, 32], strides = [1, 1]} : vector<8x128xf32> to vector<1x32xf32>
    %181 = vector.extract_strided_slice %174 {offsets = [6, 0], sizes = [1, 64], strides = [1, 1]} : vector<8x128xf32> to vector<1x64xf32>
    %182 = vector.extract_strided_slice %174 {offsets = [7, 0], sizes = [1, 32], strides = [1, 1]} : vector<8x128xf32> to vector<1x32xf32>
    %cst_104 = arith.constant dense<0.000000e+00> : vector<24xf32>
    %183 = vector.multi_reduction <add>, %172, %cst_104 [1] : vector<24x32xf32> to vector<24xf32>
    %184 = vector.shape_cast %183 : vector<24xf32> to vector<24x1xf32>
    %cst_105 = arith.constant 3.200000e+01 : f32
    %185 = vector.broadcast %cst_105 : f32 to vector<24x1xf32>
    %186 = arith.divf %184, %185 : vector<24x1xf32>
    %187 = arith.mulf %172, %172 : vector<24x32xf32>
    %cst_106 = arith.constant dense<0.000000e+00> : vector<24xf32>
    %188 = vector.multi_reduction <add>, %187, %cst_106 [1] : vector<24x32xf32> to vector<24xf32>
    %189 = vector.shape_cast %188 : vector<24xf32> to vector<24x1xf32>
    %cst_107 = arith.constant 3.200000e+01 : f32
    %190 = vector.broadcast %cst_107 : f32 to vector<24x1xf32>
    %191 = arith.divf %189, %190 : vector<24x1xf32>
    %192 = arith.mulf %186, %186 : vector<24x1xf32>
    %193 = arith.subf %191, %192 : vector<24x1xf32>
    %cst_108 = arith.constant 0.000000e+00 : f32
    %194 = vector.broadcast %cst_108 : f32 to vector<24x1xf32>
    %195 = arith.maximumf %193, %194 : vector<24x1xf32>
    %196 = vector.broadcast %186 : vector<24x1xf32> to vector<24x32xf32>
    %197 = arith.subf %172, %196 : vector<24x32xf32>
    %cst_109 = arith.constant 9.99999996E-13 : f32
    %198 = vector.broadcast %cst_109 : f32 to vector<24x1xf32>
    %199 = arith.addf %195, %198 : vector<24x1xf32>
    %200 = math.rsqrt %199 : vector<24x1xf32>
    %201 = vector.broadcast %200 : vector<24x1xf32> to vector<24x32xf32>
    %202 = arith.mulf %197, %201 : vector<24x32xf32>
    %203 = vector.broadcast %175 : vector<1x32xf32> to vector<24x32xf32>
    %204 = arith.mulf %202, %203 : vector<24x32xf32>
    %205 = vector.broadcast %176 : vector<1x32xf32> to vector<24x32xf32>
    %206 = arith.addf %204, %205 : vector<24x32xf32>
    %c1_110 = arith.constant 1 : index
    %c0_111 = arith.constant 0 : index
    %c0_112 = arith.constant 0 : index
    %207 = vector.load %arg5[%c1_110, %c0_111, %c0_112] : memref<2x32x96xbf16, #tpu.memory_space<vmem>>, vector<1x32x96xbf16>
    %208 = vector.shape_cast %207 : vector<1x32x96xbf16> to vector<32x96xbf16>
    %209 = arith.truncf %206 : vector<24x32xf32> to vector<24x32xbf16>
    %cst_113 = arith.constant dense<0.000000e+00> : vector<24x96xf32>
    %210 = tpu.matmul %209, %208, %cst_113 {dimension_numbers = #tpu.dot_dimension_numbers<[1], [0], [0], [1], [0, 0, 1, 1], [], []>} : vector<24x32xbf16>, vector<32x96xbf16>, vector<24x96xf32> -> vector<24x96xf32>
    %211 = vector.broadcast %177 : vector<1x96xf32> to vector<24x96xf32>
    %212 = arith.addf %210, %211 : vector<24x96xf32>
    %213 = arith.truncf %212 : vector<24x96xf32> to vector<24x96xbf16>
    %c0_114 = arith.constant 0 : index
    %c0_115 = arith.constant 0 : index
    %214 = vector.load %arg13[%c0_114, %c0_115] : memref<24x96xbf16, #tpu.memory_space<vmem>>, vector<24x96xbf16>
    tpu.vector_store %arg13[%c0_114, %c0_115], %213 {strides = array<i32>} : memref<24x96xbf16, #tpu.memory_space<vmem>>, vector<24x96xbf16>,
    %c0_116 = arith.constant 0 : index
    %c0_117 = arith.constant 0 : index
    %215 = vector.load %arg13[%c0_116, %c0_117] : memref<24x96xbf16, #tpu.memory_space<vmem>>, vector<24x8xbf16>
    %c0_118 = arith.constant 0 : index
    %c32_119 = arith.constant 32 : index
    %216 = vector.load %arg13[%c0_118, %c32_119] : memref<24x96xbf16, #tpu.memory_space<vmem>>, vector<24x8xbf16>
    %cst_120 = arith.constant dense<0.000000e+00> : vector<24x24xf32>
    %217 = tpu.matmul %215, %216, %cst_120 {dimension_numbers = #tpu.dot_dimension_numbers<[1], [1], [0], [0], [0, 0, 1, 0], [], []>} : vector<24x8xbf16>, vector<24x8xbf16>, vector<24x24xf32> -> vector<24x24xf32>
    %c0_121 = arith.constant 0 : index
    %c0_122 = arith.constant 0 : index
    %218 = vector.load %arg14[%c0_121, %c0_122] : memref<24x96xf32, #tpu.memory_space<vmem>>, vector<24x24xf32>
    tpu.vector_store %arg14[%c0_121, %c0_122], %217 {strides = array<i32>} : memref<24x96xf32, #tpu.memory_space<vmem>>, vector<24x24xf32>,
    %c0_123 = arith.constant 0 : index
    %c8_124 = arith.constant 8 : index
    %219 = vector.load %arg13[%c0_123, %c8_124] : memref<24x96xbf16, #tpu.memory_space<vmem>>, vector<24x8xbf16>
    %c0_125 = arith.constant 0 : index
    %c40_126 = arith.constant 40 : index
    %220 = vector.load %arg13[%c0_125, %c40_126] : memref<24x96xbf16, #tpu.memory_space<vmem>>, vector<24x8xbf16>
    %cst_127 = arith.constant dense<0.000000e+00> : vector<24x24xf32>
    %221 = tpu.matmul %219, %220, %cst_127 {dimension_numbers = #tpu.dot_dimension_numbers<[1], [1], [0], [0], [0, 0, 1, 0], [], []>} : vector<24x8xbf16>, vector<24x8xbf16>, vector<24x24xf32> -> vector<24x24xf32>
    %c0_128 = arith.constant 0 : index
    %c24_129 = arith.constant 24 : index
    %222 = vector.load %arg14[%c0_128, %c24_129] : memref<24x96xf32, #tpu.memory_space<vmem>>, vector<24x24xf32>
    tpu.vector_store %arg14[%c0_128, %c24_129], %221 {strides = array<i32>} : memref<24x96xf32, #tpu.memory_space<vmem>>, vector<24x24xf32>,
    %c0_130 = arith.constant 0 : index
    %c16_131 = arith.constant 16 : index
    %223 = vector.load %arg13[%c0_130, %c16_131] : memref<24x96xbf16, #tpu.memory_space<vmem>>, vector<24x8xbf16>
    %c0_132 = arith.constant 0 : index
    %c48_133 = arith.constant 48 : index
    %224 = vector.load %arg13[%c0_132, %c48_133] : memref<24x96xbf16, #tpu.memory_space<vmem>>, vector<24x8xbf16>
    %cst_134 = arith.constant dense<0.000000e+00> : vector<24x24xf32>
    %225 = tpu.matmul %223, %224, %cst_134 {dimension_numbers = #tpu.dot_dimension_numbers<[1], [1], [0], [0], [0, 0, 1, 0], [], []>} : vector<24x8xbf16>, vector<24x8xbf16>, vector<24x24xf32> -> vector<24x24xf32>
    %c0_135 = arith.constant 0 : index
    %c48_136 = arith.constant 48 : index
    %226 = vector.load %arg14[%c0_135, %c48_136] : memref<24x96xf32, #tpu.memory_space<vmem>>, vector<24x24xf32>
    tpu.vector_store %arg14[%c0_135, %c48_136], %225 {strides = array<i32>} : memref<24x96xf32, #tpu.memory_space<vmem>>, vector<24x24xf32>,
    %c0_137 = arith.constant 0 : index
    %c24_138 = arith.constant 24 : index
    %227 = vector.load %arg13[%c0_137, %c24_138] : memref<24x96xbf16, #tpu.memory_space<vmem>>, vector<24x8xbf16>
    %c0_139 = arith.constant 0 : index
    %c56_140 = arith.constant 56 : index
    %228 = vector.load %arg13[%c0_139, %c56_140] : memref<24x96xbf16, #tpu.memory_space<vmem>>, vector<24x8xbf16>
    %cst_141 = arith.constant dense<0.000000e+00> : vector<24x24xf32>
    %229 = tpu.matmul %227, %228, %cst_141 {dimension_numbers = #tpu.dot_dimension_numbers<[1], [1], [0], [0], [0, 0, 1, 0], [], []>} : vector<24x8xbf16>, vector<24x8xbf16>, vector<24x24xf32> -> vector<24x24xf32>
    %c0_142 = arith.constant 0 : index
    %c72_143 = arith.constant 72 : index
    %230 = vector.load %arg14[%c0_142, %c72_143] : memref<24x96xf32, #tpu.memory_space<vmem>>, vector<24x24xf32>
    tpu.vector_store %arg14[%c0_142, %c72_143], %229 {strides = array<i32>} : memref<24x96xf32, #tpu.memory_space<vmem>>, vector<24x24xf32>,
    %c0_144 = arith.constant 0 : index
    %c0_145 = arith.constant 0 : index
    %231 = vector.load %arg14[%c0_144, %c0_145] : memref<24x96xf32, #tpu.memory_space<vmem>>, vector<24x96xf32>
    %cst_146 = arith.constant 0.353553385 : f32
    %232 = vector.broadcast %cst_146 : f32 to vector<24x96xf32>
    %233 = arith.mulf %231, %232 : vector<24x96xf32>
    %234 = arith.addf %233, %0 : vector<24x96xf32>
    %cst_147 = arith.constant dense<0xFF800000> : vector<24xf32>
    %235 = vector.multi_reduction <maximumf>, %234, %cst_147 [1] : vector<24x96xf32> to vector<24xf32>
    %236 = vector.shape_cast %235 : vector<24xf32> to vector<24x1xf32>
    %237 = vector.broadcast %236 : vector<24x1xf32> to vector<24x96xf32>
    %238 = arith.subf %234, %237 : vector<24x96xf32>
    %239 = math.exp %238 : vector<24x96xf32>
    %c0_148 = arith.constant 0 : index
    %c0_149 = arith.constant 0 : index
    %240 = vector.load %arg14[%c0_148, %c0_149] : memref<24x96xf32, #tpu.memory_space<vmem>>, vector<24x96xf32>
    tpu.vector_store %arg14[%c0_148, %c0_149], %239 {strides = array<i32>} : memref<24x96xf32, #tpu.memory_space<vmem>>, vector<24x96xf32>,
    %c0_150 = arith.constant 0 : index
    %c0_151 = arith.constant 0 : index
    %241 = vector.load %arg14[%c0_150, %c0_151] : memref<24x96xf32, #tpu.memory_space<vmem>>, vector<24x24xf32>
    %cst_152 = arith.constant dense<0.000000e+00> : vector<24xf32>
    %242 = vector.multi_reduction <add>, %241, %cst_152 [1] : vector<24x24xf32> to vector<24xf32>
    %243 = vector.shape_cast %242 : vector<24xf32> to vector<24x1xf32>
    %244 = tpu.reciprocal %243 {approx = true} : vector<24x1xf32> -> vector<24x1xf32>
    %c0_153 = arith.constant 0 : index
    %c64_154 = arith.constant 64 : index
    %245 = vector.load %arg13[%c0_153, %c64_154] : memref<24x96xbf16, #tpu.memory_space<vmem>>, vector<24x8xbf16>
    %246 = arith.truncf %241 : vector<24x24xf32> to vector<24x24xbf16>
    %cst_155 = arith.constant dense<0.000000e+00> : vector<24x8xf32>
    %247 = tpu.matmul %246, %245, %cst_155 {dimension_numbers = #tpu.dot_dimension_numbers<[1], [0], [0], [1], [0, 0, 1, 1], [], []>} : vector<24x24xbf16>, vector<24x8xbf16>, vector<24x8xf32> -> vector<24x8xf32>
    %248 = vector.broadcast %244 : vector<24x1xf32> to vector<24x8xf32>
    %249 = arith.mulf %247, %248 : vector<24x8xf32>
    %c0_156 = arith.constant 0 : index
    %c0_157 = arith.constant 0 : index
    %250 = vector.load %arg15[%c0_156, %c0_157] : memref<24x32xf32, #tpu.memory_space<vmem>>, vector<24x8xf32>
    tpu.vector_store %arg15[%c0_156, %c0_157], %249 {strides = array<i32>} : memref<24x32xf32, #tpu.memory_space<vmem>>, vector<24x8xf32>,
    %c0_158 = arith.constant 0 : index
    %c24_159 = arith.constant 24 : index
    %251 = vector.load %arg14[%c0_158, %c24_159] : memref<24x96xf32, #tpu.memory_space<vmem>>, vector<24x24xf32>
    %cst_160 = arith.constant dense<0.000000e+00> : vector<24xf32>
    %252 = vector.multi_reduction <add>, %251, %cst_160 [1] : vector<24x24xf32> to vector<24xf32>
    %253 = vector.shape_cast %252 : vector<24xf32> to vector<24x1xf32>
    %254 = tpu.reciprocal %253 {approx = true} : vector<24x1xf32> -> vector<24x1xf32>
    %c0_161 = arith.constant 0 : index
    %c72_162 = arith.constant 72 : index
    %255 = vector.load %arg13[%c0_161, %c72_162] : memref<24x96xbf16, #tpu.memory_space<vmem>>, vector<24x8xbf16>
    %256 = arith.truncf %251 : vector<24x24xf32> to vector<24x24xbf16>
    %cst_163 = arith.constant dense<0.000000e+00> : vector<24x8xf32>
    %257 = tpu.matmul %256, %255, %cst_163 {dimension_numbers = #tpu.dot_dimension_numbers<[1], [0], [0], [1], [0, 0, 1, 1], [], []>} : vector<24x24xbf16>, vector<24x8xbf16>, vector<24x8xf32> -> vector<24x8xf32>
    %258 = vector.broadcast %254 : vector<24x1xf32> to vector<24x8xf32>
    %259 = arith.mulf %257, %258 : vector<24x8xf32>
    %c0_164 = arith.constant 0 : index
    %c8_165 = arith.constant 8 : index
    %260 = vector.load %arg15[%c0_164, %c8_165] : memref<24x32xf32, #tpu.memory_space<vmem>>, vector<24x8xf32>
    tpu.vector_store %arg15[%c0_164, %c8_165], %259 {strides = array<i32>} : memref<24x32xf32, #tpu.memory_space<vmem>>, vector<24x8xf32>,
    %c0_166 = arith.constant 0 : index
    %c48_167 = arith.constant 48 : index
    %261 = vector.load %arg14[%c0_166, %c48_167] : memref<24x96xf32, #tpu.memory_space<vmem>>, vector<24x24xf32>
    %cst_168 = arith.constant dense<0.000000e+00> : vector<24xf32>
    %262 = vector.multi_reduction <add>, %261, %cst_168 [1] : vector<24x24xf32> to vector<24xf32>
    %263 = vector.shape_cast %262 : vector<24xf32> to vector<24x1xf32>
    %264 = tpu.reciprocal %263 {approx = true} : vector<24x1xf32> -> vector<24x1xf32>
    %c0_169 = arith.constant 0 : index
    %c80_170 = arith.constant 80 : index
    %265 = vector.load %arg13[%c0_169, %c80_170] : memref<24x96xbf16, #tpu.memory_space<vmem>>, vector<24x8xbf16>
    %266 = arith.truncf %261 : vector<24x24xf32> to vector<24x24xbf16>
    %cst_171 = arith.constant dense<0.000000e+00> : vector<24x8xf32>
    %267 = tpu.matmul %266, %265, %cst_171 {dimension_numbers = #tpu.dot_dimension_numbers<[1], [0], [0], [1], [0, 0, 1, 1], [], []>} : vector<24x24xbf16>, vector<24x8xbf16>, vector<24x8xf32> -> vector<24x8xf32>
    %268 = vector.broadcast %264 : vector<24x1xf32> to vector<24x8xf32>
    %269 = arith.mulf %267, %268 : vector<24x8xf32>
    %c0_172 = arith.constant 0 : index
    %c16_173 = arith.constant 16 : index
    %270 = vector.load %arg15[%c0_172, %c16_173] : memref<24x32xf32, #tpu.memory_space<vmem>>, vector<24x8xf32>
    tpu.vector_store %arg15[%c0_172, %c16_173], %269 {strides = array<i32>} : memref<24x32xf32, #tpu.memory_space<vmem>>, vector<24x8xf32>,
    %c0_174 = arith.constant 0 : index
    %c72_175 = arith.constant 72 : index
    %271 = vector.load %arg14[%c0_174, %c72_175] : memref<24x96xf32, #tpu.memory_space<vmem>>, vector<24x24xf32>
    %cst_176 = arith.constant dense<0.000000e+00> : vector<24xf32>
    %272 = vector.multi_reduction <add>, %271, %cst_176 [1] : vector<24x24xf32> to vector<24xf32>
    %273 = vector.shape_cast %272 : vector<24xf32> to vector<24x1xf32>
    %274 = tpu.reciprocal %273 {approx = true} : vector<24x1xf32> -> vector<24x1xf32>
    %c0_177 = arith.constant 0 : index
    %c88_178 = arith.constant 88 : index
    %275 = vector.load %arg13[%c0_177, %c88_178] : memref<24x96xbf16, #tpu.memory_space<vmem>>, vector<24x8xbf16>
    %276 = arith.truncf %271 : vector<24x24xf32> to vector<24x24xbf16>
    %cst_179 = arith.constant dense<0.000000e+00> : vector<24x8xf32>
    %277 = tpu.matmul %276, %275, %cst_179 {dimension_numbers = #tpu.dot_dimension_numbers<[1], [0], [0], [1], [0, 0, 1, 1], [], []>} : vector<24x24xbf16>, vector<24x8xbf16>, vector<24x8xf32> -> vector<24x8xf32>
    %278 = vector.broadcast %274 : vector<24x1xf32> to vector<24x8xf32>
    %279 = arith.mulf %277, %278 : vector<24x8xf32>
    %c0_180 = arith.constant 0 : index
    %c24_181 = arith.constant 24 : index
    %280 = vector.load %arg15[%c0_180, %c24_181] : memref<24x32xf32, #tpu.memory_space<vmem>>, vector<24x8xf32>
    tpu.vector_store %arg15[%c0_180, %c24_181], %279 {strides = array<i32>} : memref<24x32xf32, #tpu.memory_space<vmem>>, vector<24x8xf32>,
    %c0_182 = arith.constant 0 : index
    %c0_183 = arith.constant 0 : index
    %281 = vector.load %arg15[%c0_182, %c0_183] : memref<24x32xf32, #tpu.memory_space<vmem>>, vector<24x32xf32>
    %c1_184 = arith.constant 1 : index
    %c0_185 = arith.constant 0 : index
    %c0_186 = arith.constant 0 : index
    %282 = vector.load %arg6[%c1_184, %c0_185, %c0_186] : memref<2x32x32xbf16, #tpu.memory_space<vmem>>, vector<1x32x32xbf16>
    %283 = vector.shape_cast %282 : vector<1x32x32xbf16> to vector<32x32xbf16>
    %284 = arith.truncf %281 : vector<24x32xf32> to vector<24x32xbf16>
    %cst_187 = arith.constant dense<0.000000e+00> : vector<24x32xf32>
    %285 = tpu.matmul %284, %283, %cst_187 {dimension_numbers = #tpu.dot_dimension_numbers<[1], [0], [0], [1], [0, 0, 1, 1], [], []>} : vector<24x32xbf16>, vector<32x32xbf16>, vector<24x32xf32> -> vector<24x32xf32>
    %286 = arith.addf %172, %285 : vector<24x32xf32>
    %287 = vector.broadcast %178 : vector<1x32xf32> to vector<24x32xf32>
    %288 = arith.addf %286, %287 : vector<24x32xf32>
    %cst_188 = arith.constant dense<0.000000e+00> : vector<24xf32>
    %289 = vector.multi_reduction <add>, %288, %cst_188 [1] : vector<24x32xf32> to vector<24xf32>
    %290 = vector.shape_cast %289 : vector<24xf32> to vector<24x1xf32>
    %cst_189 = arith.constant 3.200000e+01 : f32
    %291 = vector.broadcast %cst_189 : f32 to vector<24x1xf32>
    %292 = arith.divf %290, %291 : vector<24x1xf32>
    %293 = arith.mulf %288, %288 : vector<24x32xf32>
    %cst_190 = arith.constant dense<0.000000e+00> : vector<24xf32>
    %294 = vector.multi_reduction <add>, %293, %cst_190 [1] : vector<24x32xf32> to vector<24xf32>
    %295 = vector.shape_cast %294 : vector<24xf32> to vector<24x1xf32>
    %cst_191 = arith.constant 3.200000e+01 : f32
    %296 = vector.broadcast %cst_191 : f32 to vector<24x1xf32>
    %297 = arith.divf %295, %296 : vector<24x1xf32>
    %298 = arith.mulf %292, %292 : vector<24x1xf32>
    %299 = arith.subf %297, %298 : vector<24x1xf32>
    %cst_192 = arith.constant 0.000000e+00 : f32
    %300 = vector.broadcast %cst_192 : f32 to vector<24x1xf32>
    %301 = arith.maximumf %299, %300 : vector<24x1xf32>
    %302 = vector.broadcast %292 : vector<24x1xf32> to vector<24x32xf32>
    %303 = arith.subf %288, %302 : vector<24x32xf32>
    %cst_193 = arith.constant 9.99999996E-13 : f32
    %304 = vector.broadcast %cst_193 : f32 to vector<24x1xf32>
    %305 = arith.addf %301, %304 : vector<24x1xf32>
    %306 = math.rsqrt %305 : vector<24x1xf32>
    %307 = vector.broadcast %306 : vector<24x1xf32> to vector<24x32xf32>
    %308 = arith.mulf %303, %307 : vector<24x32xf32>
    %309 = vector.broadcast %179 : vector<1x32xf32> to vector<24x32xf32>
    %310 = arith.mulf %308, %309 : vector<24x32xf32>
    %311 = vector.broadcast %180 : vector<1x32xf32> to vector<24x32xf32>
    %312 = arith.addf %310, %311 : vector<24x32xf32>
    %c1_194 = arith.constant 1 : index
    %c0_195 = arith.constant 0 : index
    %c0_196 = arith.constant 0 : index
    %313 = vector.load %arg7[%c1_194, %c0_195, %c0_196] : memref<2x32x64xbf16, #tpu.memory_space<vmem>>, vector<1x32x64xbf16>
    %314 = vector.shape_cast %313 : vector<1x32x64xbf16> to vector<32x64xbf16>
    %315 = arith.truncf %312 : vector<24x32xf32> to vector<24x32xbf16>
    %cst_197 = arith.constant dense<0.000000e+00> : vector<24x64xf32>
    %316 = tpu.matmul %315, %314, %cst_197 {dimension_numbers = #tpu.dot_dimension_numbers<[1], [0], [0], [1], [0, 0, 1, 1], [], []>} : vector<24x32xbf16>, vector<32x64xbf16>, vector<24x64xf32> -> vector<24x64xf32>
    %317 = vector.broadcast %181 : vector<1x64xf32> to vector<24x64xf32>
    %318 = arith.addf %316, %317 : vector<24x64xf32>
    %319 = arith.mulf %318, %318 : vector<24x64xf32>
    %320 = arith.mulf %318, %319 : vector<24x64xf32>
    %cst_198 = arith.constant 4.471500e-02 : f32
    %321 = vector.broadcast %cst_198 : f32 to vector<24x64xf32>
    %322 = arith.mulf %321, %320 : vector<24x64xf32>
    %323 = arith.addf %318, %322 : vector<24x64xf32>
    %cst_199 = arith.constant 0.797884583 : f32
    %324 = vector.broadcast %cst_199 : f32 to vector<24x64xf32>
    %325 = arith.mulf %324, %323 : vector<24x64xf32>
    %326 = math.tanh %325 : vector<24x64xf32>
    %cst_200 = arith.constant 1.000000e+00 : f32
    %327 = vector.broadcast %cst_200 : f32 to vector<24x64xf32>
    %328 = arith.addf %327, %326 : vector<24x64xf32>
    %cst_201 = arith.constant 5.000000e-01 : f32
    %329 = vector.broadcast %cst_201 : f32 to vector<24x64xf32>
    %330 = arith.mulf %329, %328 : vector<24x64xf32>
    %331 = arith.mulf %318, %330 : vector<24x64xf32>
    %c1_202 = arith.constant 1 : index
    %c0_203 = arith.constant 0 : index
    %c0_204 = arith.constant 0 : index
    %332 = vector.load %arg8[%c1_202, %c0_203, %c0_204] : memref<2x64x32xbf16, #tpu.memory_space<vmem>>, vector<1x64x32xbf16>
    %333 = vector.shape_cast %332 : vector<1x64x32xbf16> to vector<64x32xbf16>
    %334 = arith.truncf %331 : vector<24x64xf32> to vector<24x64xbf16>
    %cst_205 = arith.constant dense<0.000000e+00> : vector<24x32xf32>
    %335 = tpu.matmul %334, %333, %cst_205 {dimension_numbers = #tpu.dot_dimension_numbers<[1], [0], [0], [1], [0, 0, 1, 1], [], []>} : vector<24x64xbf16>, vector<64x32xbf16>, vector<24x32xf32> -> vector<24x32xf32>
    %336 = arith.addf %288, %335 : vector<24x32xf32>
    %337 = vector.broadcast %182 : vector<1x32xf32> to vector<24x32xf32>
    %338 = arith.addf %336, %337 : vector<24x32xf32>
    %c0_206 = arith.constant 0 : index
    %c0_207 = arith.constant 0 : index
    %339 = vector.load %arg11[%c0_206, %c0_207] : memref<8x128xf32, #tpu.memory_space<vmem>>, vector<8x128xf32>
    %340 = vector.extract_strided_slice %339 {offsets = [0, 0], sizes = [1, 32], strides = [1, 1]} : vector<8x128xf32> to vector<1x32xf32>
    %341 = vector.extract_strided_slice %339 {offsets = [1, 0], sizes = [1, 32], strides = [1, 1]} : vector<8x128xf32> to vector<1x32xf32>
    %cst_208 = arith.constant dense<0.000000e+00> : vector<24xf32>
    %342 = vector.multi_reduction <add>, %338, %cst_208 [1] : vector<24x32xf32> to vector<24xf32>
    %343 = vector.shape_cast %342 : vector<24xf32> to vector<24x1xf32>
    %cst_209 = arith.constant 3.200000e+01 : f32
    %344 = vector.broadcast %cst_209 : f32 to vector<24x1xf32>
    %345 = arith.divf %343, %344 : vector<24x1xf32>
    %346 = arith.mulf %338, %338 : vector<24x32xf32>
    %cst_210 = arith.constant dense<0.000000e+00> : vector<24xf32>
    %347 = vector.multi_reduction <add>, %346, %cst_210 [1] : vector<24x32xf32> to vector<24xf32>
    %348 = vector.shape_cast %347 : vector<24xf32> to vector<24x1xf32>
    %cst_211 = arith.constant 3.200000e+01 : f32
    %349 = vector.broadcast %cst_211 : f32 to vector<24x1xf32>
    %350 = arith.divf %348, %349 : vector<24x1xf32>
    %351 = arith.mulf %345, %345 : vector<24x1xf32>
    %352 = arith.subf %350, %351 : vector<24x1xf32>
    %cst_212 = arith.constant 0.000000e+00 : f32
    %353 = vector.broadcast %cst_212 : f32 to vector<24x1xf32>
    %354 = arith.maximumf %352, %353 : vector<24x1xf32>
    %355 = vector.broadcast %345 : vector<24x1xf32> to vector<24x32xf32>
    %356 = arith.subf %338, %355 : vector<24x32xf32>
    %cst_213 = arith.constant 9.99999996E-13 : f32
    %357 = vector.broadcast %cst_213 : f32 to vector<24x1xf32>
    %358 = arith.addf %354, %357 : vector<24x1xf32>
    %359 = math.rsqrt %358 : vector<24x1xf32>
    %360 = vector.broadcast %359 : vector<24x1xf32> to vector<24x32xf32>
    %361 = arith.mulf %356, %360 : vector<24x32xf32>
    %362 = vector.broadcast %340 : vector<1x32xf32> to vector<24x32xf32>
    %363 = arith.mulf %361, %362 : vector<24x32xf32>
    %364 = vector.broadcast %341 : vector<1x32xf32> to vector<24x32xf32>
    %365 = arith.addf %363, %364 : vector<24x32xf32>
    %c0_214 = arith.constant 0 : index
    %c0_215 = arith.constant 0 : index
    %366 = vector.load %arg10[%c0_214, %c0_215] : memref<32x128xbf16, #tpu.memory_space<vmem>>, vector<32x128xbf16>
    %367 = arith.truncf %365 : vector<24x32xf32> to vector<24x32xbf16>
    %cst_216 = arith.constant dense<0.000000e+00> : vector<24x128xf32>
    %368 = tpu.matmul %367, %366, %cst_216 {dimension_numbers = #tpu.dot_dimension_numbers<[1], [0], [0], [1], [0, 0, 1, 1], [], []>} : vector<24x32xbf16>, vector<32x128xbf16>, vector<24x128xf32> -> vector<24x128xf32>
    %369 = vector.extract_strided_slice %339 {offsets = [2, 0], sizes = [1, 128], strides = [1, 1]} : vector<8x128xf32> to vector<1x128xf32>
    %370 = vector.broadcast %369 : vector<1x128xf32> to vector<24x128xf32>
    %371 = arith.addf %368, %370 : vector<24x128xf32>
    %c0_217 = arith.constant 0 : index
    %c0_218 = arith.constant 0 : index
    %c0_219 = arith.constant 0 : index
    %372 = vector.load %arg12[%c0_217, %c0_218, %c0_219] : memref<1x24x128xf32, #tpu.memory_space<vmem>>, vector<1x24x128xf32>
    %373 = vector.shape_cast %372 : vector<1x24x128xf32> to vector<24x128xf32>
    %374 = vector.shape_cast %371 : vector<24x128xf32> to vector<1x24x128xf32>
    tpu.vector_store %arg12[%c0_217, %c0_218, %c0_219], %374 {strides = array<i32>} : memref<1x24x128xf32, #tpu.memory_space<vmem>>, vector<1x24x128xf32>,
    return
  }
  func.func @transform_0(%arg0: i32) -> (i32, i32, i32) {
    %c0_i32 = arith.constant 0 : i32
    %c0_i32_0 = arith.constant 0 : i32
    %c0_i32_1 = arith.constant 0 : i32
    return %arg0, %c0_i32, %c0_i32_0 : i32, i32, i32
  }
  func.func @transform_1(%arg0: i32) -> (i32, i32) {
    %c0_i32 = arith.constant 0 : i32
    %c0_i32_0 = arith.constant 0 : i32
    %c0_i32_1 = arith.constant 0 : i32
    return %c0_i32, %c0_i32_0 : i32, i32
  }
  func.func @transform_2(%arg0: i32) -> (i32, i32) {
    %c0_i32 = arith.constant 0 : i32
    %c0_i32_0 = arith.constant 0 : i32
    %c0_i32_1 = arith.constant 0 : i32
    return %c0_i32, %c0_i32_0 : i32, i32
  }
  func.func @transform_3(%arg0: i32) -> (i32, i32) {
    %c0_i32 = arith.constant 0 : i32
    %c0_i32_0 = arith.constant 0 : i32
    %c0_i32_1 = arith.constant 0 : i32
    return %c0_i32, %c0_i32_0 : i32, i32
  }
  func.func @transform_4(%arg0: i32) -> (i32, i32, i32) {
    %c0_i32 = arith.constant 0 : i32
    %c0_i32_0 = arith.constant 0 : i32
    %c0_i32_1 = arith.constant 0 : i32
    %c0_i32_2 = arith.constant 0 : i32
    return %c0_i32, %c0_i32_0, %c0_i32_1 : i32, i32, i32
  }
  func.func @transform_5(%arg0: i32) -> (i32, i32, i32) {
    %c0_i32 = arith.constant 0 : i32
    %c0_i32_0 = arith.constant 0 : i32
    %c0_i32_1 = arith.constant 0 : i32
    %c0_i32_2 = arith.constant 0 : i32
    return %c0_i32, %c0_i32_0, %c0_i32_1 : i32, i32, i32
  }
  func.func @transform_6(%arg0: i32) -> (i32, i32, i32) {
    %c0_i32 = arith.constant 0 : i32
    %c0_i32_0 = arith.constant 0 : i32
    %c0_i32_1 = arith.constant 0 : i32
    %c0_i32_2 = arith.constant 0 : i32
    return %c0_i32, %c0_i32_0, %c0_i32_1 : i32, i32, i32
  }
  func.func @transform_7(%arg0: i32) -> (i32, i32, i32) {
    %c0_i32 = arith.constant 0 : i32
    %c0_i32_0 = arith.constant 0 : i32
    %c0_i32_1 = arith.constant 0 : i32
    %c0_i32_2 = arith.constant 0 : i32
    return %c0_i32, %c0_i32_0, %c0_i32_1 : i32, i32, i32
  }
  func.func @transform_8(%arg0: i32) -> (i32, i32, i32) {
    %c0_i32 = arith.constant 0 : i32
    %c0_i32_0 = arith.constant 0 : i32
    %c0_i32_1 = arith.constant 0 : i32
    %c0_i32_2 = arith.constant 0 : i32
    return %c0_i32, %c0_i32_0, %c0_i32_1 : i32, i32, i32
  }
  func.func @transform_9(%arg0: i32) -> (i32, i32) {
    %c0_i32 = arith.constant 0 : i32
    %c0_i32_0 = arith.constant 0 : i32
    %c0_i32_1 = arith.constant 0 : i32
    return %c0_i32, %c0_i32_0 : i32, i32
  }
  func.func @transform_10(%arg0: i32) -> (i32, i32) {
    %c0_i32 = arith.constant 0 : i32
    %c0_i32_0 = arith.constant 0 : i32
    %c0_i32_1 = arith.constant 0 : i32
    return %c0_i32, %c0_i32_0 : i32, i32
  }
  func.func @transform_11(%arg0: i32) -> (i32, i32, i32) {
    %c0_i32 = arith.constant 0 : i32
    %c0_i32_0 = arith.constant 0 : i32
    %c0_i32_1 = arith.constant 0 : i32
    return %arg0, %c0_i32, %c0_i32_0 : i32, i32, i32
  }
}

</mosaic_0001>

<llo_original>
// kernel: _lambda_.1
$region0: #{_lambda_.1}
  #allocation0 [shape = 'u32[]', space=smem, size = 0x4, offset = 0x4, fixed_abs, tag = 'smem constant byte address 0x4 - core index']
  #allocation1 [shape = 'u32[72,128]{1,0:T(1,128)}', space=vmem, size = 0x9000, scoped, tag = 'internal scratch']
  #allocation2 [shape = 'bf16[24,96]{1,0:T(8,128)(2,1)}', space=vmem, size = 0x1800, scoped, tag = 'scratch operand']
  #allocation3 [shape = 'f32[24,96]{1,0:T(8,128)}', space=vmem, size = 0x3000, scoped, tag = 'scratch operand']
  #allocation4 [shape = 'f32[24,32]{1,0:T(8,128)}', space=vmem, size = 0x3000, scoped, tag = 'scratch operand']
  %s0 = inlined_call_operand.vmem [shape: bf16[2,24,48], index: 0, kind: input, shape index: {}]
  %s1 = inlined_call_operand.vmem [shape: f32[24,96], index: 1, kind: input, shape index: {}]
  %s2 = inlined_call_operand.vmem [shape: f32[24,32], index: 2, kind: input, shape index: {}]
  %s3 = inlined_call_operand.vmem [shape: bf16[48,32], index: 3, kind: input, shape index: {}]
  %s4 = inlined_call_operand.vmem [shape: bf16[2,32,96], index: 4, kind: input, shape index: {}]
  %s5 = inlined_call_operand.vmem [shape: bf16[2,32,32], index: 5, kind: input, shape index: {}]
  %s6 = inlined_call_operand.vmem [shape: bf16[2,32,64], index: 6, kind: input, shape index: {}]
  %s7 = inlined_call_operand.vmem [shape: bf16[2,64,32], index: 7, kind: input, shape index: {}]
  %s8 = inlined_call_operand.vmem [shape: f32[2,8,128], index: 8, kind: input, shape index: {}]
  %s9 = inlined_call_operand.vmem [shape: bf16[32,128], index: 9, kind: input, shape index: {}]
  %s10 = inlined_call_operand.vmem [shape: f32[8,128], index: 10, kind: input, shape index: {}]
  %s11 = inlined_call_operand.vmem [shape: f32[2,24,128], index: 11, kind: output, shape index: {}]
  %s12 = sld [smem:[#allocation0]]
  $region77: #{_lambda_.1} parent=0
    _
  %s14 = ssub.s32 1, %s12
  %s15 = scalar_select 0, %s14, %s12
  loop: start=0, step=1, limit=4
  $region2: #{_lambda_.1} parent=0 // loop_pre_header
    _
  $region3: #{_lambda_.1} parent=0 // loop_header
    %s17 = sphi 0, %s21
    %p18 = scmp.ge.s32.totalorder %s17, 4
    %s27 = sphi 0, %s29
    %s30 = sphi 0, %s27
    %s31 = sphi 0, %s30
    %s47 = sphi 0, %s31
    %s51 = sphi 0, %s51
    %s53 = sphi 0, %s51
    %s54 = sphi 0, %s53
    %s68 = sphi 0, %s54
    %s72 = sphi 0, %s72
    %s74 = sphi 0, %s72
    %s75 = sphi 0, %s74
    %s89 = sphi 0, %s75
    %s93 = sphi 0, %s93
    %s95 = sphi 0, %s93
    %s96 = sphi 0, %s95
    %s110 = sphi 0, %s96
    %s114 = sphi 0, %s114
    %s116 = sphi 0, %s114
    %s117 = sphi 0, %s116
    %s131 = sphi 0, %s117
    %s135 = sphi 0, %s135
    %s137 = sphi 0, %s135
    %s138 = sphi 0, %s137
    %s152 = sphi 0, %s138
    %s156 = sphi 0, %s156
    %s158 = sphi 0, %s156
    %s159 = sphi 0, %s158
    %s173 = sphi 0, %s159
    %s177 = sphi 0, %s177
    %s179 = sphi 0, %s177
    %s180 = sphi 0, %s179
    %s194 = sphi 0, %s180
    %s198 = sphi 0, %s198
    %s200 = sphi 0, %s198
    %s201 = sphi 0, %s200
    %s215 = sphi 0, %s201
    %s219 = sphi 0, %s219
    %s221 = sphi 0, %s219
    %s222 = sphi 0, %s221
    %s236 = sphi 0, %s222
    %s240 = sphi 0, %s240
    %s242 = sphi 0, %s240
    %s243 = sphi 0, %s242
    %s257 = sphi 0, %s243
    %s263 = sphi 0, %s265
    %s266 = sphi 0, %s263
    %s267 = sphi 0, %s266
    %s283 = sphi 0, %s267
  $region4: #{_lambda_.1} parent=0 // loop_header_branch
    %20 = sbr.rel (%p18) target = $region8
  $region5: #{_lambda_.1} parent=0 // loop_body
    %s22 = ssub.s32 %s17, 1
    %s23 = ssub.s32 %s17, 2
    %s24 = sadd.s32 %s17, 1
    %s25 = ssub.s32 %s17, %s24
    %p26 = scmp.eq.s32.totalorder %s25, 0
    %s28 = sadd.s32 %s27, 1
    %s29 = scalar_select %p26, %s27, %s28
    %p32 = pneg %p26
    %p33 = scmp.eq.s32.totalorder %s17, 1
    %p34 = por %p32, %p33
    %p35 = scmp.ne.s32.totalorder %s27, %s30
    %p36 = scmp.eq.s32.totalorder %s17, 0
    %p37 = por %p35, %p36
    %p38 = scmp.ne.s32.totalorder %s27, %s30
    %p39 = scmp.eq.s32.totalorder %s22, 1
    %p40 = por %p38, %p39
    %p41 = scmp.ne.s32.totalorder %s30, %s31
    %p42 = scmp.eq.s32.totalorder %s22, 0
    %p43 = por %p41, %p42
    %p44 = scmp.ne.s32.totalorder %s30, %s31
    %p45 = scmp.eq.s32.totalorder %s23, 1
    %p46 = por %p44, %p45
    %p48 = scmp.ne.s32.totalorder %s31, %s47
    %p49 = scmp.eq.s32.totalorder %s23, 0
    %p50 = por %p48, %p49
    %s52 = sadd.s32 %s51, 1
    %p55 = scmp.eq.s32.totalorder %s17, 1
    %p56 = scmp.ne.s32.totalorder %s51, %s53
    %p57 = scmp.eq.s32.totalorder %s17, 0
    %p58 = por %p56, %p57
    %p59 = scmp.ne.s32.totalorder %s51, %s53
    %p60 = scmp.eq.s32.totalorder %s22, 1
    %p61 = por %p59, %p60
    %p62 = scmp.ne.s32.totalorder %s53, %s54
    %p63 = scmp.eq.s32.totalorder %s22, 0
    %p64 = por %p62, %p63
    %p65 = scmp.ne.s32.totalorder %s53, %s54
    %p66 = scmp.eq.s32.totalorder %s23, 1
    %p67 = por %p65, %p66
    %p69 = scmp.ne.s32.totalorder %s54, %s68
    %p70 = scmp.eq.s32.totalorder %s23, 0
    %p71 = por %p69, %p70
    %s73 = sadd.s32 %s72, 1
    %p76 = scmp.eq.s32.totalorder %s17, 1
    %p77 = scmp.ne.s32.totalorder %s72, %s74
    %p78 = scmp.eq.s32.totalorder %s17, 0
    %p79 = por %p77, %p78
    %p80 = scmp.ne.s32.totalorder %s72, %s74
    %p81 = scmp.eq.s32.totalorder %s22, 1
    %p82 = por %p80, %p81
    %p83 = scmp.ne.s32.totalorder %s74, %s75
    %p84 = scmp.eq.s32.totalorder %s22, 0
    %p85 = por %p83, %p84
    %p86 = scmp.ne.s32.totalorder %s74, %s75
    %p87 = scmp.eq.s32.totalorder %s23, 1
    %p88 = por %p86, %p87
    %p90 = scmp.ne.s32.totalorder %s75, %s89
    %p91 = scmp.eq.s32.totalorder %s23, 0
    %p92 = por %p90, %p91
    %s94 = sadd.s32 %s93, 1
    %p97 = scmp.eq.s32.totalorder %s17, 1
    %p98 = scmp.ne.s32.totalorder %s93, %s95
    %p99 = scmp.eq.s32.totalorder %s17, 0
    %p100 = por %p98, %p99
    %p101 = scmp.ne.s32.totalorder %s93, %s95
    %p102 = scmp.eq.s32.totalorder %s22, 1
    %p103 = por %p101, %p102
    %p104 = scmp.ne.s32.totalorder %s95, %s96
    %p105 = scmp.eq.s32.totalorder %s22, 0
    %p106 = por %p104, %p105
    %p107 = scmp.ne.s32.totalorder %s95, %s96
    %p108 = scmp.eq.s32.totalorder %s23, 1
    %p109 = por %p107, %p108
    %p111 = scmp.ne.s32.totalorder %s96, %s110
    %p112 = scmp.eq.s32.totalorder %s23, 0
    %p113 = por %p111, %p112
    %s115 = sadd.s32 %s114, 1
    %p118 = scmp.eq.s32.totalorder %s17, 1
    %p119 = scmp.ne.s32.totalorder %s114, %s116
    %p120 = scmp.eq.s32.totalorder %s17, 0
    %p121 = por %p119, %p120
    %p122 = scmp.ne.s32.totalorder %s114, %s116
    %p123 = scmp.eq.s32.totalorder %s22, 1
    %p124 = por %p122, %p123
    %p125 = scmp.ne.s32.totalorder %s116, %s117
    %p126 = scmp.eq.s32.totalorder %s22, 0
    %p127 = por %p125, %p126
    %p128 = scmp.ne.s32.totalorder %s116, %s117
    %p129 = scmp.eq.s32.totalorder %s23, 1
    %p130 = por %p128, %p129
    %p132 = scmp.ne.s32.totalorder %s117, %s131
    %p133 = scmp.eq.s32.totalorder %s23, 0
    %p134 = por %p132, %p133
    %s136 = sadd.s32 %s135, 1
    %p139 = scmp.eq.s32.totalorder %s17, 1
    %p140 = scmp.ne.s32.totalorder %s135, %s137
    %p141 = scmp.eq.s32.totalorder %s17, 0
    %p142 = por %p140, %p141
    %p143 = scmp.ne.s32.totalorder %s135, %s137
    %p144 = scmp.eq.s32.totalorder %s22, 1
    %p145 = por %p143, %p144
    %p146 = scmp.ne.s32.totalorder %s137, %s138
    %p147 = scmp.eq.s32.totalorder %s22, 0
    %p148 = por %p146, %p147
    %p149 = scmp.ne.s32.totalorder %s137, %s138
    %p150 = scmp.eq.s32.totalorder %s23, 1
    %p151 = por %p149, %p150
    %p153 = scmp.ne.s32.totalorder %s138, %s152
    %p154 = scmp.eq.s32.totalorder %s23, 0
    %p155 = por %p153, %p154
    %s157 = sadd.s32 %s156, 1
    %p160 = scmp.eq.s32.totalorder %s17, 1
    %p161 = scmp.ne.s32.totalorder %s156, %s158
    %p162 = scmp.eq.s32.totalorder %s17, 0
    %p163 = por %p161, %p162
    %p164 = scmp.ne.s32.totalorder %s156, %s158
    %p165 = scmp.eq.s32.totalorder %s22, 1
    %p166 = por %p164, %p165
    %p167 = scmp.ne.s32.totalorder %s158, %s159
    %p168 = scmp.eq.s32.totalorder %s22, 0
    %p169 = por %p167, %p168
    %p170 = scmp.ne.s32.totalorder %s158, %s159
    %p171 = scmp.eq.s32.totalorder %s23, 1
    %p172 = por %p170, %p171
    %p174 = scmp.ne.s32.totalorder %s159, %s173
    %p175 = scmp.eq.s32.totalorder %s23, 0
    %p176 = por %p174, %p175
    %s178 = sadd.s32 %s177, 1
    %p181 = scmp.eq.s32.totalorder %s17, 1
    %p182 = scmp.ne.s32.totalorder %s177, %s179
    %p183 = scmp.eq.s32.totalorder %s17, 0
    %p184 = por %p182, %p183
    %p185 = scmp.ne.s32.totalorder %s177, %s179
    %p186 = scmp.eq.s32.totalorder %s22, 1
    %p187 = por %p185, %p186
    %p188 = scmp.ne.s32.totalorder %s179, %s180
    %p189 = scmp.eq.s32.totalorder %s22, 0
    %p190 = por %p188, %p189
    %p191 = scmp.ne.s32.totalorder %s179, %s180
    %p192 = scmp.eq.s32.totalorder %s23, 1
    %p193 = por %p191, %p192
    %p195 = scmp.ne.s32.totalorder %s180, %s194
    %p196 = scmp.eq.s32.totalorder %s23, 0
    %p197 = por %p195, %p196
    %s199 = sadd.s32 %s198, 1
    %p202 = scmp.eq.s32.totalorder %s17, 1
    %p203 = scmp.ne.s32.totalorder %s198, %s200
    %p204 = scmp.eq.s32.totalorder %s17, 0
    %p205 = por %p203, %p204
    %p206 = scmp.ne.s32.totalorder %s198, %s200
    %p207 = scmp.eq.s32.totalorder %s22, 1
    %p208 = por %p206, %p207
    %p209 = scmp.ne.s32.totalorder %s200, %s201
    %p210 = scmp.eq.s32.totalorder %s22, 0
    %p211 = por %p209, %p210
    %p212 = scmp.ne.s32.totalorder %s200, %s201
    %p213 = scmp.eq.s32.totalorder %s23, 1
    %p214 = por %p212, %p213
    %p216 = scmp.ne.s32.totalorder %s201, %s215
    %p217 = scmp.eq.s32.totalorder %s23, 0
    %p218 = por %p216, %p217
    %s220 = sadd.s32 %s219, 1
    %p223 = scmp.eq.s32.totalorder %s17, 1
    %p224 = scmp.ne.s32.totalorder %s219, %s221
    %p225 = scmp.eq.s32.totalorder %s17, 0
    %p226 = por %p224, %p225
    %p227 = scmp.ne.s32.totalorder %s219, %s221
    %p228 = scmp.eq.s32.totalorder %s22, 1
    %p229 = por %p227, %p228
    %p230 = scmp.ne.s32.totalorder %s221, %s222
    %p231 = scmp.eq.s32.totalorder %s22, 0
    %p232 = por %p230, %p231
    %p233 = scmp.ne.s32.totalorder %s221, %s222
    %p234 = scmp.eq.s32.totalorder %s23, 1
    %p235 = por %p233, %p234
    %p237 = scmp.ne.s32.totalorder %s222, %s236
    %p238 = scmp.eq.s32.totalorder %s23, 0
    %p239 = por %p237, %p238
    %s241 = sadd.s32 %s240, 1
    %p244 = scmp.eq.s32.totalorder %s17, 1
    %p245 = scmp.ne.s32.totalorder %s240, %s242
    %p246 = scmp.eq.s32.totalorder %s17, 0
    %p247 = por %p245, %p246
    %p248 = scmp.ne.s32.totalorder %s240, %s242
    %p249 = scmp.eq.s32.totalorder %s22, 1
    %p250 = por %p248, %p249
    %p251 = scmp.ne.s32.totalorder %s242, %s243
    %p252 = scmp.eq.s32.totalorder %s22, 0
    %p253 = por %p251, %p252
    %p254 = scmp.ne.s32.totalorder %s242, %s243
    %p255 = scmp.eq.s32.totalorder %s23, 1
    %p256 = por %p254, %p255
    %p258 = scmp.ne.s32.totalorder %s243, %s257
    %p259 = scmp.eq.s32.totalorder %s23, 0
    %p260 = por %p258, %p259
    %s261 = ssub.s32 %s17, %s24
    %p262 = scmp.eq.s32.totalorder %s261, 0
    %s264 = sadd.s32 %s263, 1
    %s265 = scalar_select %p262, %s263, %s264
    %p268 = pneg %p262
    %p269 = scmp.eq.s32.totalorder %s17, 1
    %p270 = por %p268, %p269
    %p271 = scmp.ne.s32.totalorder %s263, %s266
    %p272 = scmp.eq.s32.totalorder %s17, 0
    %p273 = por %p271, %p272
    %p274 = scmp.ne.s32.totalorder %s263, %s266
    %p275 = scmp.eq.s32.totalorder %s22, 1
    %p276 = por %p274, %p275
    %p277 = scmp.ne.s32.totalorder %s266, %s267
    %p278 = scmp.eq.s32.totalorder %s22, 0
    %p279 = por %p277, %p278
    %p280 = scmp.ne.s32.totalorder %s266, %s267
    %p281 = scmp.eq.s32.totalorder %s23, 1
    %p282 = por %p280, %p281
    %p284 = scmp.ne.s32.totalorder %s267, %s283
    %p285 = scmp.eq.s32.totalorder %s23, 0
    %p286 = por %p284, %p285
    %p287 = scmp.le.s32.totalorder 1, %s17
    %p288 = scmp.lt.s32.totalorder %s17, 3
    %p289 = pnand %p287, %p288
    %p290 = pneg %p289
    // Predicated region
    $region9: #{_lambda_.1} parent=5 // pred_check
      _
    $region10: #{_lambda_.1} parent=5 // pred_check_branch
      %292 = sbr.rel (%p289) target = $region12
    $region11: #{_lambda_.1} parent=5 // pred_region
      %s293 = ssub.s32 %s17, 1
      // Predicated region
      $region13: #{_lambda_.1} parent=11 // pred_check
        %p294 = pneg %p64
      $region14: #{_lambda_.1} parent=11 // pred_check_branch
        %296 = sbr.rel (%p294) target = $region16
      $region15: #{_lambda_.1} parent=11 // pred_region
        _
      $region16: #{_lambda_.1} parent=11 // pred_fallthru
        _
      // Predicated region
      $region17: #{_lambda_.1} parent=11 // pred_check
        %p297 = pneg %p85
      $region18: #{_lambda_.1} parent=11 // pred_check_branch
        %299 = sbr.rel (%p297) target = $region20
      $region19: #{_lambda_.1} parent=11 // pred_region
        _
      $region20: #{_lambda_.1} parent=11 // pred_fallthru
        _
      // Predicated region
      $region21: #{_lambda_.1} parent=11 // pred_check
        %p300 = pneg %p106
      $region22: #{_lambda_.1} parent=11 // pred_check_branch
        %302 = sbr.rel (%p300) target = $region24
      $region23: #{_lambda_.1} parent=11 // pred_region
        _
      $region24: #{_lambda_.1} parent=11 // pred_fallthru
        _
      // Predicated region
      $region25: #{_lambda_.1} parent=11 // pred_check
        %p303 = pneg %p127
      $region26: #{_lambda_.1} parent=11 // pred_check_branch
        %305 = sbr.rel (%p303) target = $region28
      $region27: #{_lambda_.1} parent=11 // pred_region
        _
      $region28: #{_lambda_.1} parent=11 // pred_fallthru
        _
      // Predicated region
      $region29: #{_lambda_.1} parent=11 // pred_check
        %p306 = pneg %p148
      $region30: #{_lambda_.1} parent=11 // pred_check_branch
        %308 = sbr.rel (%p306) target = $region32
      $region31: #{_lambda_.1} parent=11 // pred_region
        _
      $region32: #{_lambda_.1} parent=11 // pred_fallthru
        _
      // Predicated region
      $region33: #{_lambda_.1} parent=11 // pred_check
        %p309 = pneg %p169
      $region34: #{_lambda_.1} parent=11 // pred_check_branch
        %311 = sbr.rel (%p309) target = $region36
      $region35: #{_lambda_.1} parent=11 // pred_region
        _
      $region36: #{_lambda_.1} parent=11 // pred_fallthru
        _
      // Predicated region
      $region37: #{_lambda_.1} parent=11 // pred_check
        %p312 = pneg %p190
      $region38: #{_lambda_.1} parent=11 // pred_check_branch
        %314 = sbr.rel (%p312) target = $region40
      $region39: #{_lambda_.1} parent=11 // pred_region
        _
      $region40: #{_lambda_.1} parent=11 // pred_fallthru
        _
      // Predicated region
      $region41: #{_lambda_.1} parent=11 // pred_check
        %p315 = pneg %p211
      $region42: #{_lambda_.1} parent=11 // pred_check_branch
        %317 = sbr.rel (%p315) target = $region44
      $region43: #{_lambda_.1} parent=11 // pred_region
        _
      $region44: #{_lambda_.1} parent=11 // pred_fallthru
        _
      // Predicated region
      $region45: #{_lambda_.1} parent=11 // pred_check
        %p318 = pneg %p232
      $region46: #{_lambda_.1} parent=11 // pred_check_branch
        %320 = sbr.rel (%p318) target = $region48
      $region47: #{_lambda_.1} parent=11 // pred_region
        _
      $region48: #{_lambda_.1} parent=11 // pred_fallthru
        _
      // Predicated region
      $region49: #{_lambda_.1} parent=11 // pred_check
        %p321 = pneg %p253
      $region50: #{_lambda_.1} parent=11 // pred_check_branch
        %323 = sbr.rel (%p321) target = $region52
      $region51: #{_lambda_.1} parent=11 // pred_region
        _
      $region52: #{_lambda_.1} parent=11 // pred_fallthru
        _
    $region12: #{_lambda_.1} parent=5 // pred_fallthru
      _
    %p324 = scmp.lt.s32.totalorder %s17, 2
    // Predicated region
    $region53: #{_lambda_.1} parent=5 // pred_check
      %p325 = pneg %p324
    $region54: #{_lambda_.1} parent=5 // pred_check_branch
      %327 = sbr.rel (%p325) target = $region56
    $region55: #{_lambda_.1} parent=5 // pred_region
      // Predicated region
      $region57: #{_lambda_.1} parent=55 // pred_check
        %p328 = pneg %p37
      $region58: #{_lambda_.1} parent=55 // pred_check_branch
        %330 = sbr.rel (%p328) target = $region60
      $region59: #{_lambda_.1} parent=55 // pred_region
        %p331 = scmp.lt.s32.totalorder %s17, 1
        %s332 = scalar_select %p331, %s17, 1
        %s333 = smul.addr %s332, 3
        %s334 = smul.addr %s333, 4
        %s335 = scalar_lea.vmem %s0, %s334
      $region60: #{_lambda_.1} parent=55 // pred_fallthru
        _
    $region56: #{_lambda_.1} parent=5 // pred_fallthru
      _
    %p336 = scmp.le.s32.totalorder 1, %s17
    %p337 = scmp.lt.s32.totalorder %s17, 3
    %p338 = pnand %p336, %p337
    %p339 = pneg %p338
    // Predicated region
    $region61: #{_lambda_.1} parent=5 // pred_check
      _
    $region62: #{_lambda_.1} parent=5 // pred_check_branch
      %341 = sbr.rel (%p338) target = $region64
    $region63: #{_lambda_.1} parent=5 // pred_region
      %s342 = ssub.s32 %s17, 1
      %p343 = scmp.lt.s32.totalorder %s22, 1
      %s344 = scalar_select %p343, %s22, 1
      %s345 = smul.addr %s344, 3
      %s346 = smul.addr %s345, 4
      %s347 = scalar_lea.vmem %s0, %s346
      %p348 = pneg %p43
      %p349 = pneg %p40
      %p350 = pneg %p64
      %p351 = pneg %p61
      %p352 = pneg %p85
      %p353 = pneg %p82
      %p354 = pneg %p106
      %p355 = pneg %p103
      %p356 = pneg %p127
      %p357 = pneg %p124
      %p358 = pneg %p148
      %p359 = pneg %p145
      %p360 = pneg %p169
      %p361 = pneg %p166
      %p362 = pneg %p190
      %p363 = pneg %p187
      %p364 = pneg %p211
      %p365 = pneg %p208
      %p366 = pneg %p232
      %p367 = pneg %p229
      %p368 = pneg %p253
      %p369 = pneg %p250
      %p370 = pneg %p279
      %p371 = pneg %p276
      %p372 = scmp.lt.s32.totalorder %s22, 1
      %s373 = scalar_select %p372, %s22, 1
      %s374 = smul.addr %s373, 3
      %s375 = smul.addr %s374, 8
      %s376 = scalar_lea.vmem %s11, %s375
      %p377 = scmp.lt.s32.totalorder %s22, 1
      %s378 = scalar_select %p377, %s22, 1
      %s379 = smul.addr %s378, 3
      %s380 = smul.addr %s379, 4
      %s381 = scalar_lea.vmem %s0, %s380
      %p382 = scmp.lt.s32.totalorder %s22, 1
      %s383 = scalar_select %p382, %s22, 1
      %s384 = smul.addr %s383, 3
      %s385 = smul.addr %s384, 8
      %s386 = scalar_lea.vmem %s11, %s385
      %v388 = vld [vmem:[%s1] sm:$0xff]
      %v389 = vld [vmem:[%s1 + $0x8] sm:$0xff]
      %v390 = vld [vmem:[%s1 + $0x10] sm:$0xff]
      %v391 = vld [vmem:[%s381] sm:$0xf]
      %v392 = vld [vmem:[%s381 + $0x4] sm:$0xf]
      %v393 = vld [vmem:[%s381 + $0x8] sm:$0xf]
      %v394 = vld [vmem:[%s3] sm:$0xf]
      %v395 = vld [vmem:[%s3 + $0x4] sm:$0xf]
      %v396 = vld [vmem:[%s3 + $0x8] sm:$0xf]
      %v397 = vld [vmem:[%s3 + $0xc] sm:$0xf]
      %v398 = vld [vmem:[%s3 + $0x10] sm:$0xf]
      %v399 = vld [vmem:[%s3 + $0x14] sm:$0xf]
      %v400 = vld [vmem:[%s2] sm:$0xff]
      %v401 = vld [vmem:[%s2 + $0x8] sm:$0xff]
      %v402 = vld [vmem:[%s2 + $0x10] sm:$0xff]
      %v406 = vunpack.c.l.b16 %v391
      %v407 = vunpack.c.l.b16 %v392
      %v408 = vunpack.c.l.b16 %v393
      %v409 = vpack.c.b16 %v407, %v406
      %v410 = vpack.c.b16 %v408, %v408
      %v417 = vunpack.c.l.b16 %v394
      %v418 = vunpack.c.l.b16 %v395
      %v419 = vunpack.c.l.b16 %v396
      %v420 = vunpack.c.l.b16 %v397
      %v421 = vunpack.c.l.b16 %v398
      %v422 = vunpack.c.l.b16 %v399
      %v423 = vpack.c.b16 %v418, %v417
      %v424 = vpack.c.b16 %v420, %v419
      %v425 = vpack.c.b16 %v422, %v421
      %vm429 = vcmask 392192
      %v431 = vsel %vm429, %v409, 0
      %v434 = vsel %vm429, %v410, 0
      %436 = vmatpush.bf16.msra.mxu0 0
      %437 = vmatpush.bf16.msra.mxu0 0
      %438 = vmatpush.bf16.msra.mxu0 0
      %439 = vmatpush.bf16.msra.mxu0 0
      %440 = vmatpush.bf16.msra.mxu0 0
      %441 = vmatpush.bf16.msra.mxu0 %v425
      %442 = vmatpush.bf16.msra.mxu0 %v424
      %443 = vmatpush.bf16.msra.mxu0 %v423
      %444 = vmatmul.bf16.gmra.mxu0 %v431
      %v445 = vpop.f32.mrf.mxu0
      %v446 = vadd.f32 %v400, %v445
      %v447 = vpop.f32.mrf.mxu0
      %v448 = vadd.f32 %v401, %v447
      %449 = vmatmul.bf16.gmra.mxu0 %v434
      %v450 = vpop.f32.mrf.mxu0
      %v451 = vadd.f32 %v402, %v450
      %v452 = vpop.f32.mrf.mxu0
      %453 = vdwg.mxu0
      %v454 = vld [vmem:[%s8] sm:$0xff]
      %vm455 = vcmask 261120
      %v456 = vsel %vm455, %v446, 0.0
      %457 = vadd.xlane.f32.xlu0 %v456
      %v458 = vpop.xlane.xlu0 %457
      %v459 = vsel %vm455, %v448, 0.0
      %460 = vadd.xlane.f32.xlu0 %v459
      %v461 = vpop.xlane.xlu0 %460
      %v462 = vsel %vm455, %v451, 0.0
      %463 = vadd.xlane.f32.xlu0 %v462
      %v464 = vpop.xlane.xlu0 %463
      %v465 = vrcp.pop 32.0
      %v466 = vmul.f32 32.0, %v465
      %v467 = vsub.f32 1.0, %v466
      %v468 = vmul.f32 %v465, %v467
      %v469 = vadd.f32 %v465, %v468
      %vm470 = vweird.f32 %v465
      %v471 = vsel %vm470, %v465, %v469
      %v472 = vmul.f32 %v458, %v471
      %v473 = vmul.f32 %v461, %v471
      %v474 = vmul.f32 %v464, %v471
      %v475 = vmul.f32 %v446, %v446
      %v476 = vmul.f32 %v448, %v448
      %v477 = vmul.f32 %v451, %v451
      %v478 = vsel %vm455, %v475, 0.0
      %479 = vadd.xlane.f32.xlu0 %v478
      %v480 = vpop.xlane.xlu0 %479
      %v481 = vsel %vm455, %v476, 0.0
      %482 = vadd.xlane.f32.xlu0 %v481
      %v483 = vpop.xlane.xlu0 %482
      %v484 = vsel %vm455, %v477, 0.0
      %485 = vadd.xlane.f32.xlu0 %v484
      %v486 = vpop.xlane.xlu0 %485
      %v487 = vmul.f32 %v480, %v471
      %v488 = vmul.f32 %v483, %v471
      %v489 = vmul.f32 %v486, %v471
      %v490 = vmul.f32 %v472, %v472
      %v491 = vmul.f32 %v473, %v473
      %v492 = vmul.f32 %v474, %v474
      %v493 = vsub.f32 %v487, %v490
      %v494 = vsub.f32 %v488, %v491
      %v495 = vsub.f32 %v489, %v492
      %v496 = vmax.f32 %v493, 0.0
      %v497 = vmax.f32 %v494, 0.0
      %v498 = vmax.f32 %v495, 0.0
      %v499 = vsub.f32 %v446, %v472
      %v500 = vsub.f32 %v448, %v473
      %v501 = vsub.f32 %v451, %v474
      %v502 = vadd.f32 %v496, 1e-12
      %v503 = vadd.f32 %v497, 1e-12
      %v504 = vadd.f32 %v498, 1e-12
      %v505 = vrsqrt.pop %v502
      %v506 = vmul.f32 %v505, %v502
      %v507 = vmul.f32 %v506, %v505
      %v508 = vmul.f32 0.5, %v507
      %v509 = vsub.f32 1.5, %v508
      %v510 = vmul.f32 %v505, %v509
      %vm511 = vweird.f32 %v502
      %vm512 = vweird.f32 %v505
      %vm513 = vmor %vm511, %vm512
      %v514 = vsel %vm513, %v505, %v510
      %v515 = vrsqrt.pop %v503
      %v516 = vmul.f32 %v515, %v503
      %v517 = vmul.f32 %v516, %v515
      %v518 = vmul.f32 0.5, %v517
      %v519 = vsub.f32 1.5, %v518
      %v520 = vmul.f32 %v515, %v519
      %vm521 = vweird.f32 %v503
      %vm522 = vweird.f32 %v515
      %vm523 = vmor %vm521, %vm522
      %v524 = vsel %vm523, %v515, %v520
      %v525 = vrsqrt.pop %v504
      %v526 = vmul.f32 %v525, %v504
      %v527 = vmul.f32 %v526, %v525
      %v528 = vmul.f32 0.5, %v527
      %v529 = vsub.f32 1.5, %v528
      %v530 = vmul.f32 %v525, %v529
      %vm531 = vweird.f32 %v504
      %vm532 = vweird.f32 %v525
      %vm533 = vmor %vm531, %vm532
      %v534 = vsel %vm533, %v525, %v530
      %v535 = vmul.f32 %v499, %v514
      %v536 = vmul.f32 %v500, %v524
      %v537 = vmul.f32 %v501, %v534
      %v538 = vperm.slane %v454, 0
      %v539 = vmul.f32 %v535, %v538
      %v540 = vmul.f32 %v536, %v538
      %v541 = vmul.f32 %v537, %v538
      %v542 = vperm.slane %v454, 1
      %v543 = vadd.f32 %v539, %v542
      %v544 = vadd.f32 %v540, %v542
      %v545 = vadd.f32 %v541, %v542
      %v546 = vld [vmem:[%s4] sm:$0xf]
      %v547 = vld [vmem:[%s4 + $0x4] sm:$0xf]
      %v548 = vld [vmem:[%s4 + $0x8] sm:$0xf]
      %v549 = vld [vmem:[%s4 + $0xc] sm:$0xf]
      %v550 = vpack.c.bf16 %v544, %v543
      %v551 = vpack.c.bf16 %v545, %v545
      %v552 = vperm.slane %v454, 2
      %v557 = vunpack.c.l.b16 %v546
      %v558 = vunpack.c.l.b16 %v547
      %v559 = vunpack.c.l.b16 %v548
      %v560 = vunpack.c.l.b16 %v549
      %v561 = vpack.c.b16 %v558, %v557
      %v562 = vpack.c.b16 %v560, %v559
      %v566 = vsel %vm455, %v550, 0
      %v569 = vsel %vm455, %v551, 0
      %571 = vmatpush.bf16.msra.mxu0 0
      %572 = vmatpush.bf16.msra.mxu0 0
      %573 = vmatpush.bf16.msra.mxu0 0
      %574 = vmatpush.bf16.msra.mxu0 0
      %575 = vmatpush.bf16.msra.mxu0 0
      %576 = vmatpush.bf16.msra.mxu0 0
      %577 = vmatpush.bf16.msra.mxu0 %v562
      %578 = vmatpush.bf16.msra.mxu0 %v561
      %579 = vmatmul.bf16.gmra.mxu0 %v566
      %v580 = vpop.f32.mrf.mxu0
      %v581 = vadd.f32 %v552, %v580
      %v582 = vpop.f32.mrf.mxu0
      %v583 = vadd.f32 %v552, %v582
      %584 = vmatmul.bf16.gmra.mxu0 %v569
      %v585 = vpop.f32.mrf.mxu0
      %v586 = vadd.f32 %v552, %v585
      %v587 = vpop.f32.mrf.mxu0
      %588 = vdwg.mxu0
      %v589 = vpack.c.bf16 %v581, %v581
      %v590 = vpack.c.bf16 %v583, %v583
      %v591 = vpack.c.bf16 %v586, %v586
      %vm592 = vcmask 781312
      %593 = vst.msk [vmem:[#allocation2] sm:$0xf] %vm592, %v589
      %594 = vst.msk [vmem:[#allocation2 + $0x4] sm:$0xf] %vm592, %v590
      %595 = vst.msk [vmem:[#allocation2 + $0x8] sm:$0xf] %vm592, %v591
      %v596 = vld [vmem:[#allocation2] sm:$0xf]
      %v597 = vld [vmem:[#allocation2 + $0x4] sm:$0xf]
      %v598 = vld [vmem:[#allocation2 + $0x8] sm:$0xf]
      %v602 = vunpack.c.l.b16 %v596
      %v603 = vunpack.c.l.b16 %v597
      %v604 = vunpack.c.l.b16 %v598
      %v605 = vpack.c.b16 %v603, %v602
      %v606 = vpack.c.b16 %v604, %v604
      %607 = vrot.lane.b32.xlu0 %v605, 96
      %v608 = vpop.permute.xlu0 %607
      %609 = vrot.lane.b32.xlu0 %v606, 96
      %v610 = vpop.permute.xlu0 %609
      %vm611 = vcmask 64512
      %v613 = vsel %vm611, %v605, 0
      %v616 = vsel %vm611, %v606, 0
      %v619 = vsel %vm611, %v608, 0
      %v622 = vsel %vm611, %v610, 0
      %624 = vmatpush.bf16.xpose.msra.mxu0 0
      %625 = vmatpush.bf16.xpose.msra.mxu0 0
      %626 = vmatpush.bf16.xpose.msra.mxu0 0
      %627 = vmatpush.bf16.xpose.msra.mxu0 0
      %628 = vmatpush.bf16.xpose.msra.mxu0 0
      %629 = vmatpush.bf16.xpose.msra.mxu0 0
      %630 = vmatpush.bf16.xpose.msra.mxu0 %v622
      %631 = vmatpush.bf16.xpose.msra.mxu0 %v619
      %632 = vmatmul.bf16.gmra.mxu0 %v613
      %v633 = vpop.f32.mrf.mxu0
      %v634 = vadd.f32 0.0, %v633
      %v635 = vpop.f32.mrf.mxu0
      %v636 = vadd.f32 0.0, %v635
      %637 = vmatmul.bf16.gmra.mxu0 %v616
      %v638 = vpop.f32.mrf.mxu0
      %v639 = vadd.f32 0.0, %v638
      %v640 = vpop.f32.mrf.mxu0
      %641 = vdwg.mxu0
      %vm642 = vcmask 195584
      %643 = vst.msk [vmem:[#allocation3] sm:$0xff] %vm642, %v634
      %644 = vst.msk [vmem:[#allocation3 + $0x8] sm:$0xff] %vm642, %v636
      %645 = vst.msk [vmem:[#allocation3 + $0x10] sm:$0xff] %vm642, %v639
      %v646 = vld [vmem:[#allocation2] sm:$0xf]
      %v647 = vld [vmem:[#allocation2 + $0x4] sm:$0xf]
      %v648 = vld [vmem:[#allocation2 + $0x8] sm:$0xf]
      %v652 = vunpack.c.l.b16 %v646
      %v653 = vunpack.c.l.b16 %v647
      %v654 = vunpack.c.l.b16 %v648
      %v655 = vpack.c.b16 %v653, %v652
      %v656 = vpack.c.b16 %v654, %v654
      %657 = vrot.lane.b32.xlu0 %v655, 120
      %v658 = vpop.permute.xlu0 %657
      %659 = vrot.lane.b32.xlu0 %v656, 120
      %v660 = vpop.permute.xlu0 %659
      %661 = vrot.lane.b32.xlu0 %v655, 88
      %v662 = vpop.permute.xlu0 %661
      %663 = vrot.lane.b32.xlu0 %v656, 88
      %v664 = vpop.permute.xlu0 %663
      %v666 = vsel %vm611, %v658, 0
      %v669 = vsel %vm611, %v660, 0
      %v672 = vsel %vm611, %v662, 0
      %v675 = vsel %vm611, %v664, 0
      %677 = vmatpush.bf16.xpose.msra.mxu0 0
      %678 = vmatpush.bf16.xpose.msra.mxu0 0
      %679 = vmatpush.bf16.xpose.msra.mxu0 0
      %680 = vmatpush.bf16.xpose.msra.mxu0 0
      %681 = vmatpush.bf16.xpose.msra.mxu0 0
      %682 = vmatpush.bf16.xpose.msra.mxu0 0
      %683 = vmatpush.bf16.xpose.msra.mxu0 %v675
      %684 = vmatpush.bf16.xpose.msra.mxu0 %v672
      %685 = vmatmul.bf16.gmra.mxu0 %v666
      %v686 = vpop.f32.mrf.mxu0
      %v687 = vadd.f32 0.0, %v686
      %v688 = vpop.f32.mrf.mxu0
      %v689 = vadd.f32 0.0, %v688
      %690 = vmatmul.bf16.gmra.mxu0 %v669
      %v691 = vpop.f32.mrf.mxu0
      %v692 = vadd.f32 0.0, %v691
      %v693 = vpop.f32.mrf.mxu0
      %694 = vdwg.mxu0
      %698 = vrot.lane.b32.xlu0 %v687, 24
      %v699 = vpop.permute.xlu0 %698
      %700 = vrot.lane.b32.xlu0 %v689, 24
      %v701 = vpop.permute.xlu0 %700
      %702 = vrot.lane.b32.xlu0 %v692, 24
      %v703 = vpop.permute.xlu0 %702
      %vm707 = vcmask 392384
      %708 = vst.msk [vmem:[#allocation3] sm:$0xff] %vm707, %v699
      %709 = vst.msk [vmem:[#allocation3 + $0x8] sm:$0xff] %vm707, %v701
      %710 = vst.msk [vmem:[#allocation3 + $0x10] sm:$0xff] %vm707, %v703
      %v711 = vld [vmem:[#allocation2] sm:$0xf]
      %v712 = vld [vmem:[#allocation2 + $0x4] sm:$0xf]
      %v713 = vld [vmem:[#allocation2 + $0x8] sm:$0xf]
      %v717 = vunpack.c.l.b16 %v711
      %v718 = vunpack.c.l.b16 %v712
      %v719 = vunpack.c.l.b16 %v713
      %v720 = vpack.c.b16 %v718, %v717
      %v721 = vpack.c.b16 %v719, %v719
      %722 = vrot.lane.b32.xlu0 %v720, 112
      %v723 = vpop.permute.xlu0 %722
      %724 = vrot.lane.b32.xlu0 %v721, 112
      %v725 = vpop.permute.xlu0 %724
      %726 = vrot.lane.b32.xlu0 %v720, 80
      %v727 = vpop.permute.xlu0 %726
      %728 = vrot.lane.b32.xlu0 %v721, 80
      %v729 = vpop.permute.xlu0 %728
      %v731 = vsel %vm611, %v723, 0
      %v734 = vsel %vm611, %v725, 0
      %v737 = vsel %vm611, %v727, 0
      %v740 = vsel %vm611, %v729, 0
      %742 = vmatpush.bf16.xpose.msra.mxu0 0
      %743 = vmatpush.bf16.xpose.msra.mxu0 0
      %744 = vmatpush.bf16.xpose.msra.mxu0 0
      %745 = vmatpush.bf16.xpose.msra.mxu0 0
      %746 = vmatpush.bf16.xpose.msra.mxu0 0
      %747 = vmatpush.bf16.xpose.msra.mxu0 0
      %748 = vmatpush.bf16.xpose.msra.mxu0 %v740
      %749 = vmatpush.bf16.xpose.msra.mxu0 %v737
      %750 = vmatmul.bf16.gmra.mxu0 %v731
      %v751 = vpop.f32.mrf.mxu0
      %v752 = vadd.f32 0.0, %v751
      %v753 = vpop.f32.mrf.mxu0
      %v754 = vadd.f32 0.0, %v753
      %755 = vmatmul.bf16.gmra.mxu0 %v734
      %v756 = vpop.f32.mrf.mxu0
      %v757 = vadd.f32 0.0, %v756
      %v758 = vpop.f32.mrf.mxu0
      %759 = vdwg.mxu0
      %763 = vrot.lane.b32.xlu0 %v752, 48
      %v764 = vpop.permute.xlu0 %763
      %765 = vrot.lane.b32.xlu0 %v754, 48
      %v766 = vpop.permute.xlu0 %765
      %767 = vrot.lane.b32.xlu0 %v757, 48
      %v768 = vpop.permute.xlu0 %767
      %vm772 = vcmask 589184
      %773 = vst.msk [vmem:[#allocation3] sm:$0xff] %vm772, %v764
      %774 = vst.msk [vmem:[#allocation3 + $0x8] sm:$0xff] %vm772, %v766
      %775 = vst.msk [vmem:[#allocation3 + $0x10] sm:$0xff] %vm772, %v768
      %v776 = vld [vmem:[#allocation2] sm:$0xf]
      %v777 = vld [vmem:[#allocation2 + $0x4] sm:$0xf]
      %v778 = vld [vmem:[#allocation2 + $0x8] sm:$0xf]
      %v782 = vunpack.c.l.b16 %v776
      %v783 = vunpack.c.l.b16 %v777
      %v784 = vunpack.c.l.b16 %v778
      %v785 = vpack.c.b16 %v783, %v782
      %v786 = vpack.c.b16 %v784, %v784
      %787 = vrot.lane.b32.xlu0 %v785, 104
      %v788 = vpop.permute.xlu0 %787
      %789 = vrot.lane.b32.xlu0 %v786, 104
      %v790 = vpop.permute.xlu0 %789
      %791 = vrot.lane.b32.xlu0 %v785, 72
      %v792 = vpop.permute.xlu0 %791
      %793 = vrot.lane.b32.xlu0 %v786, 72
      %v794 = vpop.permute.xlu0 %793
      %v796 = vsel %vm611, %v788, 0
      %v799 = vsel %vm611, %v790, 0
      %v802 = vsel %vm611, %v792, 0
      %v805 = vsel %vm611, %v794, 0
      %807 = vmatpush.bf16.xpose.msra.mxu0 0
      %808 = vmatpush.bf16.xpose.msra.mxu0 0
      %809 = vmatpush.bf16.xpose.msra.mxu0 0
      %810 = vmatpush.bf16.xpose.msra.mxu0 0
      %811 = vmatpush.bf16.xpose.msra.mxu0 0
      %812 = vmatpush.bf16.xpose.msra.mxu0 0
      %813 = vmatpush.bf16.xpose.msra.mxu0 %v805
      %814 = vmatpush.bf16.xpose.msra.mxu0 %v802
      %815 = vmatmul.bf16.gmra.mxu0 %v796
      %v816 = vpop.f32.mrf.mxu0
      %v817 = vadd.f32 0.0, %v816
      %v818 = vpop.f32.mrf.mxu0
      %v819 = vadd.f32 0.0, %v818
      %820 = vmatmul.bf16.gmra.mxu0 %v799
      %v821 = vpop.f32.mrf.mxu0
      %v822 = vadd.f32 0.0, %v821
      %v823 = vpop.f32.mrf.mxu0
      %824 = vdwg.mxu0
      %828 = vrot.lane.b32.xlu0 %v817, 72
      %v829 = vpop.permute.xlu0 %828
      %830 = vrot.lane.b32.xlu0 %v819, 72
      %v831 = vpop.permute.xlu0 %830
      %832 = vrot.lane.b32.xlu0 %v822, 72
      %v833 = vpop.permute.xlu0 %832
      %vm837 = vcmask 785984
      %838 = vst.msk [vmem:[#allocation3] sm:$0xff] %vm837, %v829
      %839 = vst.msk [vmem:[#allocation3 + $0x8] sm:$0xff] %vm837, %v831
      %840 = vst.msk [vmem:[#allocation3 + $0x10] sm:$0xff] %vm837, %v833
      %v841 = vld [vmem:[#allocation3] sm:$0xff]
      %v842 = vld [vmem:[#allocation3 + $0x8] sm:$0xff]
      %v843 = vld [vmem:[#allocation3 + $0x10] sm:$0xff]
      %v844 = vmul.f32 %v841, 0.35355338
      %v845 = vmul.f32 %v842, 0.35355338
      %v846 = vmul.f32 %v843, 0.35355338
      %v847 = vadd.f32 %v844, %v388
      %v848 = vadd.f32 %v845, %v389
      %v849 = vadd.f32 %v846, %v390
      %vm850 = vcmask 785408
      %v851 = vsel %vm850, %v847, -inf
      %852 = vmax.xlane.f32.xlu0 %v851
      %v853 = vpop.xlane.xlu0 %852
      %v854 = vsel %vm850, %v848, -inf
      %855 = vmax.xlane.f32.xlu0 %v854
      %v856 = vpop.xlane.xlu0 %855
      %v857 = vsel %vm850, %v849, -inf
      %858 = vmax.xlane.f32.xlu0 %v857
      %v859 = vpop.xlane.xlu0 %858
      %v860 = vsub.f32 %v847, %v853
      %v861 = vsub.f32 %v848, %v856
      %v862 = vsub.f32 %v849, %v859
      %v863 = vmul.f32 %v860, 1.442695
      %v864 = vpow.pop %v863
      %v865 = vmul.f32 %v861, 1.442695
      %v866 = vpow.pop %v865
      %v867 = vmul.f32 %v862, 1.442695
      %v868 = vpow.pop %v867
      %869 = vst.msk [vmem:[#allocation3] sm:$0xff] %vm850, %v864
      %870 = vst.msk [vmem:[#allocation3 + $0x8] sm:$0xff] %vm850, %v866
      %871 = vst.msk [vmem:[#allocation3 + $0x10] sm:$0xff] %vm850, %v868
      %v872 = vld [vmem:[#allocation3] sm:$0xff]
      %v873 = vld [vmem:[#allocation3 + $0x8] sm:$0xff]
      %v874 = vld [vmem:[#allocation3 + $0x10] sm:$0xff]
      %v875 = vsel %vm642, %v872, 0.0
      %876 = vadd.xlane.f32.xlu0 %v875
      %v877 = vpop.xlane.xlu0 %876
      %v878 = vsel %vm642, %v873, 0.0
      %879 = vadd.xlane.f32.xlu0 %v878
      %v880 = vpop.xlane.xlu0 %879
      %v881 = vsel %vm642, %v874, 0.0
      %882 = vadd.xlane.f32.xlu0 %v881
      %v883 = vpop.xlane.xlu0 %882
      %v884 = vrcp.pop %v877
      %v885 = vrcp.pop %v880
      %v886 = vrcp.pop %v883
      %v887 = vld [vmem:[#allocation2] sm:$0xf]
      %v888 = vld [vmem:[#allocation2 + $0x4] sm:$0xf]
      %v889 = vld [vmem:[#allocation2 + $0x8] sm:$0xf]
      %v890 = vpack.c.bf16 %v873, %v872
      %v891 = vpack.c.bf16 %v874, %v874
      %v895 = vunpack.c.l.b16 %v887
      %v896 = vunpack.c.l.b16 %v888
      %v897 = vunpack.c.l.b16 %v889
      %v898 = vpack.c.b16 %v896, %v895
      %v899 = vpack.c.b16 %v897, %v897
      %900 = vrot.lane.b32.xlu0 %v898, 64
      %v901 = vpop.permute.xlu0 %900
      %902 = vrot.lane.b32.xlu0 %v899, 64
      %v903 = vpop.permute.xlu0 %902
      %v906 = vsel %vm642, %v890, 0
      %v909 = vsel %vm642, %v891, 0
      %vm911 = vcmask 1043456
      %v913 = vsel %vm911, %v903, 0
      %915 = vmatpush.bf16.msra.mxu0 0
      %916 = vmatpush.bf16.msra.mxu0 0
      %917 = vmatpush.bf16.msra.mxu0 0
      %918 = vmatpush.bf16.msra.mxu0 0
      %919 = vmatpush.bf16.msra.mxu0 0
      %920 = vmatpush.bf16.msra.mxu0 0
      %921 = vmatpush.bf16.msra.mxu0 %v913
      %922 = vmatpush.bf16.msra.mxu0 %v901
      %923 = vmatmul.bf16.gmra.mxu0 %v906
      %v924 = vpop.f32.mrf.mxu0
      %v925 = vadd.f32 0.0, %v924
      %v926 = vpop.f32.mrf.mxu0
      %v927 = vadd.f32 0.0, %v926
      %928 = vmatmul.bf16.gmra.mxu0 %v909
      %v929 = vpop.f32.mrf.mxu0
      %v930 = vadd.f32 0.0, %v929
      %v931 = vpop.f32.mrf.mxu0
      %932 = vdwg.mxu0
      %v933 = vmul.f32 %v925, %v884
      %v934 = vmul.f32 %v927, %v885
      %v935 = vmul.f32 %v930, %v886
      %936 = vst.msk [vmem:[#allocation4] sm:$0xff] %vm611, %v933
      %937 = vst.msk [vmem:[#allocation4 + $0x8] sm:$0xff] %vm611, %v934
      %938 = vst.msk [vmem:[#allocation4 + $0x10] sm:$0xff] %vm611, %v935
      %v939 = vld [vmem:[#allocation3] sm:$0xff]
      %v940 = vld [vmem:[#allocation3 + $0x8] sm:$0xff]
      %v941 = vld [vmem:[#allocation3 + $0x10] sm:$0xff]
      %945 = vrot.lane.b32.xlu0 %v939, 104
      %v946 = vpop.permute.xlu0 %945
      %947 = vrot.lane.b32.xlu0 %v940, 104
      %v948 = vpop.permute.xlu0 %947
      %949 = vrot.lane.b32.xlu0 %v941, 104
      %v950 = vpop.permute.xlu0 %949
      %v954 = vsel %vm642, %v946, 0.0
      %955 = vadd.xlane.f32.xlu0 %v954
      %v956 = vpop.xlane.xlu0 %955
      %v957 = vsel %vm642, %v948, 0.0
      %958 = vadd.xlane.f32.xlu0 %v957
      %v959 = vpop.xlane.xlu0 %958
      %v960 = vsel %vm642, %v950, 0.0
      %961 = vadd.xlane.f32.xlu0 %v960
      %v962 = vpop.xlane.xlu0 %961
      %v963 = vrcp.pop %v956
      %v964 = vrcp.pop %v959
      %v965 = vrcp.pop %v962
      %v966 = vld [vmem:[#allocation2] sm:$0xf]
      %v967 = vld [vmem:[#allocation2 + $0x4] sm:$0xf]
      %v968 = vld [vmem:[#allocation2 + $0x8] sm:$0xf]
      %v969 = vpack.c.bf16 %v940, %v939
      %v970 = vpack.c.bf16 %v941, %v941
      %973 = vrot.lane.b32.xlu0 %v969, 104
      %v974 = vpop.permute.xlu0 %973
      %975 = vrot.lane.b32.xlu0 %v970, 104
      %v976 = vpop.permute.xlu0 %975
      %v980 = vunpack.c.l.b16 %v966
      %v981 = vunpack.c.l.b16 %v967
      %v982 = vunpack.c.l.b16 %v968
      %v983 = vpack.c.b16 %v981, %v980
      %v984 = vpack.c.b16 %v982, %v982
      %985 = vrot.lane.b32.xlu0 %v983, 56
      %v986 = vpop.permute.xlu0 %985
      %987 = vrot.lane.b32.xlu0 %v984, 56
      %v988 = vpop.permute.xlu0 %987
      %v991 = vsel %vm642, %v974, 0
      %v994 = vsel %vm642, %v976, 0
      %v997 = vsel %vm911, %v988, 0
      %999 = vmatpush.bf16.msra.mxu0 0
      %1000 = vmatpush.bf16.msra.mxu0 0
      %1001 = vmatpush.bf16.msra.mxu0 0
      %1002 = vmatpush.bf16.msra.mxu0 0
      %1003 = vmatpush.bf16.msra.mxu0 0
      %1004 = vmatpush.bf16.msra.mxu0 0
      %1005 = vmatpush.bf16.msra.mxu0 %v997
      %1006 = vmatpush.bf16.msra.mxu0 %v986
      %1007 = vmatmul.bf16.gmra.mxu0 %v991
      %v1008 = vpop.f32.mrf.mxu0
      %v1009 = vadd.f32 0.0, %v1008
      %v1010 = vpop.f32.mrf.mxu0
      %v1011 = vadd.f32 0.0, %v1010
      %1012 = vmatmul.bf16.gmra.mxu0 %v994
      %v1013 = vpop.f32.mrf.mxu0
      %v1014 = vadd.f32 0.0, %v1013
      %v1015 = vpop.f32.mrf.mxu0
      %1016 = vdwg.mxu0
      %v1017 = vmul.f32 %v1009, %v963
      %v1018 = vmul.f32 %v1011, %v964
      %v1019 = vmul.f32 %v1014, %v965
      %1023 = vrot.lane.b32.xlu0 %v1017, 8
      %v1024 = vpop.permute.xlu0 %1023
      %1025 = vrot.lane.b32.xlu0 %v1018, 8
      %v1026 = vpop.permute.xlu0 %1025
      %1027 = vrot.lane.b32.xlu0 %v1019, 8
      %v1028 = vpop.permute.xlu0 %1027
      %vm1032 = vcmask 130112
      %1033 = vst.msk [vmem:[#allocation4] sm:$0xff] %vm1032, %v1024
      %1034 = vst.msk [vmem:[#allocation4 + $0x8] sm:$0xff] %vm1032, %v1026
      %1035 = vst.msk [vmem:[#allocation4 + $0x10] sm:$0xff] %vm1032, %v1028
      %v1036 = vld [vmem:[#allocation3] sm:$0xff]
      %v1037 = vld [vmem:[#allocation3 + $0x8] sm:$0xff]
      %v1038 = vld [vmem:[#allocation3 + $0x10] sm:$0xff]
      %1042 = vrot.lane.b32.xlu0 %v1036, 80
      %v1043 = vpop.permute.xlu0 %1042
      %1044 = vrot.lane.b32.xlu0 %v1037, 80
      %v1045 = vpop.permute.xlu0 %1044
      %1046 = vrot.lane.b32.xlu0 %v1038, 80
      %v1047 = vpop.permute.xlu0 %1046
      %v1051 = vsel %vm642, %v1043, 0.0
      %1052 = vadd.xlane.f32.xlu0 %v1051
      %v1053 = vpop.xlane.xlu0 %1052
      %v1054 = vsel %vm642, %v1045, 0.0
      %1055 = vadd.xlane.f32.xlu0 %v1054
      %v1056 = vpop.xlane.xlu0 %1055
      %v1057 = vsel %vm642, %v1047, 0.0
      %1058 = vadd.xlane.f32.xlu0 %v1057
      %v1059 = vpop.xlane.xlu0 %1058
      %v1060 = vrcp.pop %v1053
      %v1061 = vrcp.pop %v1056
      %v1062 = vrcp.pop %v1059
      %v1063 = vld [vmem:[#allocation2] sm:$0xf]
      %v1064 = vld [vmem:[#allocation2 + $0x4] sm:$0xf]
      %v1065 = vld [vmem:[#allocation2 + $0x8] sm:$0xf]
      %v1066 = vpack.c.bf16 %v1037, %v1036
      %v1067 = vpack.c.bf16 %v1038, %v1038
      %1070 = vrot.lane.b32.xlu0 %v1066, 80
      %v1071 = vpop.permute.xlu0 %1070
      %1072 = vrot.lane.b32.xlu0 %v1067, 80
      %v1073 = vpop.permute.xlu0 %1072
      %v1077 = vunpack.c.l.b16 %v1063
      %v1078 = vunpack.c.l.b16 %v1064
      %v1079 = vunpack.c.l.b16 %v1065
      %v1080 = vpack.c.b16 %v1078, %v1077
      %v1081 = vpack.c.b16 %v1079, %v1079
      %1082 = vrot.lane.b32.xlu0 %v1080, 48
      %v1083 = vpop.permute.xlu0 %1082
      %1084 = vrot.lane.b32.xlu0 %v1081, 48
      %v1085 = vpop.permute.xlu0 %1084
      %v1088 = vsel %vm642, %v1071, 0
      %v1091 = vsel %vm642, %v1073, 0
      %v1094 = vsel %vm911, %v1085, 0
      %1096 = vmatpush.bf16.msra.mxu0 0
      %1097 = vmatpush.bf16.msra.mxu0 0
      %1098 = vmatpush.bf16.msra.mxu0 0
      %1099 = vmatpush.bf16.msra.mxu0 0
      %1100 = vmatpush.bf16.msra.mxu0 0
      %1101 = vmatpush.bf16.msra.mxu0 0
      %1102 = vmatpush.bf16.msra.mxu0 %v1094
      %1103 = vmatpush.bf16.msra.mxu0 %v1083
      %1104 = vmatmul.bf16.gmra.mxu0 %v1088
      %v1105 = vpop.f32.mrf.mxu0
      %v1106 = vadd.f32 0.0, %v1105
      %v1107 = vpop.f32.mrf.mxu0
      %v1108 = vadd.f32 0.0, %v1107
      %1109 = vmatmul.bf16.gmra.mxu0 %v1091
      %v1110 = vpop.f32.mrf.mxu0
      %v1111 = vadd.f32 0.0, %v1110
      %v1112 = vpop.f32.mrf.mxu0
      %1113 = vdwg.mxu0
      %v1114 = vmul.f32 %v1106, %v1060
      %v1115 = vmul.f32 %v1108, %v1061
      %v1116 = vmul.f32 %v1111, %v1062
      %1120 = vrot.lane.b32.xlu0 %v1114, 16
      %v1121 = vpop.permute.xlu0 %1120
      %1122 = vrot.lane.b32.xlu0 %v1115, 16
      %v1123 = vpop.permute.xlu0 %1122
      %1124 = vrot.lane.b32.xlu0 %v1116, 16
      %v1125 = vpop.permute.xlu0 %1124
      %vm1129 = vcmask 195712
      %1130 = vst.msk [vmem:[#allocation4] sm:$0xff] %vm1129, %v1121
      %1131 = vst.msk [vmem:[#allocation4 + $0x8] sm:$0xff] %vm1129, %v1123
      %1132 = vst.msk [vmem:[#allocation4 + $0x10] sm:$0xff] %vm1129, %v1125
      %v1133 = vld [vmem:[#allocation3] sm:$0xff]
      %v1134 = vld [vmem:[#allocation3 + $0x8] sm:$0xff]
      %v1135 = vld [vmem:[#allocation3 + $0x10] sm:$0xff]
      %1139 = vrot.lane.b32.xlu0 %v1133, 56
      %v1140 = vpop.permute.xlu0 %1139
      %1141 = vrot.lane.b32.xlu0 %v1134, 56
      %v1142 = vpop.permute.xlu0 %1141
      %1143 = vrot.lane.b32.xlu0 %v1135, 56
      %v1144 = vpop.permute.xlu0 %1143
      %v1148 = vsel %vm642, %v1140, 0.0
      %1149 = vadd.xlane.f32.xlu0 %v1148
      %v1150 = vpop.xlane.xlu0 %1149
      %v1151 = vsel %vm642, %v1142, 0.0
      %1152 = vadd.xlane.f32.xlu0 %v1151
      %v1153 = vpop.xlane.xlu0 %1152
      %v1154 = vsel %vm642, %v1144, 0.0
      %1155 = vadd.xlane.f32.xlu0 %v1154
      %v1156 = vpop.xlane.xlu0 %1155
      %v1157 = vrcp.pop %v1150
      %v1158 = vrcp.pop %v1153
      %v1159 = vrcp.pop %v1156
      %v1160 = vld [vmem:[#allocation2] sm:$0xf]
      %v1161 = vld [vmem:[#allocation2 + $0x4] sm:$0xf]
      %v1162 = vld [vmem:[#allocation2 + $0x8] sm:$0xf]
      %v1163 = vpack.c.bf16 %v1134, %v1133
      %v1164 = vpack.c.bf16 %v1135, %v1135
      %1167 = vrot.lane.b32.xlu0 %v1163, 56
      %v1168 = vpop.permute.xlu0 %1167
      %1169 = vrot.lane.b32.xlu0 %v1164, 56
      %v1170 = vpop.permute.xlu0 %1169
      %v1174 = vunpack.c.l.b16 %v1160
      %v1175 = vunpack.c.l.b16 %v1161
      %v1176 = vunpack.c.l.b16 %v1162
      %v1177 = vpack.c.b16 %v1175, %v1174
      %v1178 = vpack.c.b16 %v1176, %v1176
      %1179 = vrot.lane.b32.xlu0 %v1177, 40
      %v1180 = vpop.permute.xlu0 %1179
      %1181 = vrot.lane.b32.xlu0 %v1178, 40
      %v1182 = vpop.permute.xlu0 %1181
      %v1185 = vsel %vm642, %v1168, 0
      %v1188 = vsel %vm642, %v1170, 0
      %v1191 = vsel %vm911, %v1182, 0
      %1193 = vmatpush.bf16.msra.mxu0 0
      %1194 = vmatpush.bf16.msra.mxu0 0
      %1195 = vmatpush.bf16.msra.mxu0 0
      %1196 = vmatpush.bf16.msra.mxu0 0
      %1197 = vmatpush.bf16.msra.mxu0 0
      %1198 = vmatpush.bf16.msra.mxu0 0
      %1199 = vmatpush.bf16.msra.mxu0 %v1191
      %1200 = vmatpush.bf16.msra.mxu0 %v1180
      %1201 = vmatmul.bf16.gmra.mxu0 %v1185
      %v1202 = vpop.f32.mrf.mxu0
      %v1203 = vadd.f32 0.0, %v1202
      %v1204 = vpop.f32.mrf.mxu0
      %v1205 = vadd.f32 0.0, %v1204
      %1206 = vmatmul.bf16.gmra.mxu0 %v1188
      %v1207 = vpop.f32.mrf.mxu0
      %v1208 = vadd.f32 0.0, %v1207
      %v1209 = vpop.f32.mrf.mxu0
      %1210 = vdwg.mxu0
      %v1211 = vmul.f32 %v1203, %v1157
      %v1212 = vmul.f32 %v1205, %v1158
      %v1213 = vmul.f32 %v1208, %v1159
      %1217 = vrot.lane.b32.xlu0 %v1211, 24
      %v1218 = vpop.permute.xlu0 %1217
      %1219 = vrot.lane.b32.xlu0 %v1212, 24
      %v1220 = vpop.permute.xlu0 %1219
      %1221 = vrot.lane.b32.xlu0 %v1213, 24
      %v1222 = vpop.permute.xlu0 %1221
      %vm1226 = vcmask 261312
      %1227 = vst.msk [vmem:[#allocation4] sm:$0xff] %vm1226, %v1218
      %1228 = vst.msk [vmem:[#allocation4 + $0x8] sm:$0xff] %vm1226, %v1220
      %1229 = vst.msk [vmem:[#allocation4 + $0x10] sm:$0xff] %vm1226, %v1222
      %v1230 = vld [vmem:[#allocation4] sm:$0xff]
      %v1231 = vld [vmem:[#allocation4 + $0x8] sm:$0xff]
      %v1232 = vld [vmem:[#allocation4 + $0x10] sm:$0xff]
      %v1233 = vld [vmem:[%s5] sm:$0xf]
      %v1234 = vld [vmem:[%s5 + $0x4] sm:$0xf]
      %v1235 = vld [vmem:[%s5 + $0x8] sm:$0xf]
      %v1236 = vld [vmem:[%s5 + $0xc] sm:$0xf]
      %v1237 = vpack.c.bf16 %v1231, %v1230
      %v1238 = vpack.c.bf16 %v1232, %v1232
      %v1243 = vunpack.c.l.b16 %v1233
      %v1244 = vunpack.c.l.b16 %v1234
      %v1245 = vunpack.c.l.b16 %v1235
      %v1246 = vunpack.c.l.b16 %v1236
      %v1247 = vpack.c.b16 %v1244, %v1243
      %v1248 = vpack.c.b16 %v1246, %v1245
      %v1252 = vsel %vm455, %v1237, 0
      %v1255 = vsel %vm455, %v1238, 0
      %1257 = vmatpush.bf16.msra.mxu0 0
      %1258 = vmatpush.bf16.msra.mxu0 0
      %1259 = vmatpush.bf16.msra.mxu0 0
      %1260 = vmatpush.bf16.msra.mxu0 0
      %1261 = vmatpush.bf16.msra.mxu0 0
      %1262 = vmatpush.bf16.msra.mxu0 0
      %1263 = vmatpush.bf16.msra.mxu0 %v1248
      %1264 = vmatpush.bf16.msra.mxu0 %v1247
      %1265 = vmatmul.bf16.gmra.mxu0 %v1252
      %v1266 = vpop.f32.mrf.mxu0
      %v1267 = vadd.f32 0.0, %v1266
      %v1268 = vpop.f32.mrf.mxu0
      %v1269 = vadd.f32 0.0, %v1268
      %1270 = vmatmul.bf16.gmra.mxu0 %v1255
      %v1271 = vpop.f32.mrf.mxu0
      %v1272 = vadd.f32 0.0, %v1271
      %v1273 = vpop.f32.mrf.mxu0
      %1274 = vdwg.mxu0
      %v1275 = vadd.f32 %v446, %v1267
      %v1276 = vadd.f32 %v448, %v1269
      %v1277 = vadd.f32 %v451, %v1272
      %v1278 = vperm.slane %v454, 3
      %v1279 = vadd.f32 %v1275, %v1278
      %v1280 = vadd.f32 %v1276, %v1278
      %v1281 = vadd.f32 %v1277, %v1278
      %v1282 = vsel %vm455, %v1279, 0.0
      %1283 = vadd.xlane.f32.xlu0 %v1282
      %v1284 = vpop.xlane.xlu0 %1283
      %v1285 = vsel %vm455, %v1280, 0.0
      %1286 = vadd.xlane.f32.xlu0 %v1285
      %v1287 = vpop.xlane.xlu0 %1286
      %v1288 = vsel %vm455, %v1281, 0.0
      %1289 = vadd.xlane.f32.xlu0 %v1288
      %v1290 = vpop.xlane.xlu0 %1289
      %v1291 = vmul.f32 %v1284, %v471
      %v1292 = vmul.f32 %v1287, %v471
      %v1293 = vmul.f32 %v1290, %v471
      %v1294 = vmul.f32 %v1279, %v1279
      %v1295 = vmul.f32 %v1280, %v1280
      %v1296 = vmul.f32 %v1281, %v1281
      %v1297 = vsel %vm455, %v1294, 0.0
      %1298 = vadd.xlane.f32.xlu0 %v1297
      %v1299 = vpop.xlane.xlu0 %1298
      %v1300 = vsel %vm455, %v1295, 0.0
      %1301 = vadd.xlane.f32.xlu0 %v1300
      %v1302 = vpop.xlane.xlu0 %1301
      %v1303 = vsel %vm455, %v1296, 0.0
      %1304 = vadd.xlane.f32.xlu0 %v1303
      %v1305 = vpop.xlane.xlu0 %1304
      %v1306 = vmul.f32 %v1299, %v471
      %v1307 = vmul.f32 %v1302, %v471
      %v1308 = vmul.f32 %v1305, %v471
      %v1309 = vmul.f32 %v1291, %v1291
      %v1310 = vmul.f32 %v1292, %v1292
      %v1311 = vmul.f32 %v1293, %v1293
      %v1312 = vsub.f32 %v1306, %v1309
      %v1313 = vsub.f32 %v1307, %v1310
      %v1314 = vsub.f32 %v1308, %v1311
      %v1315 = vmax.f32 %v1312, 0.0
      %v1316 = vmax.f32 %v1313, 0.0
      %v1317 = vmax.f32 %v1314, 0.0
      %v1318 = vsub.f32 %v1279, %v1291
      %v1319 = vsub.f32 %v1280, %v1292
      %v1320 = vsub.f32 %v1281, %v1293
      %v1321 = vadd.f32 %v1315, 1e-12
      %v1322 = vadd.f32 %v1316, 1e-12
      %v1323 = vadd.f32 %v1317, 1e-12
      %v1324 = vrsqrt.pop %v1321
      %v1325 = vmul.f32 %v1324, %v1321
      %v1326 = vmul.f32 %v1325, %v1324
      %v1327 = vmul.f32 0.5, %v1326
      %v1328 = vsub.f32 1.5, %v1327
      %v1329 = vmul.f32 %v1324, %v1328
      %vm1330 = vweird.f32 %v1321
      %vm1331 = vweird.f32 %v1324
      %vm1332 = vmor %vm1330, %vm1331
      %v1333 = vsel %vm1332, %v1324, %v1329
      %v1334 = vrsqrt.pop %v1322
      %v1335 = vmul.f32 %v1334, %v1322
      %v1336 = vmul.f32 %v1335, %v1334
      %v1337 = vmul.f32 0.5, %v1336
      %v1338 = vsub.f32 1.5, %v1337
      %v1339 = vmul.f32 %v1334, %v1338
      %vm1340 = vweird.f32 %v1322
      %vm1341 = vweird.f32 %v1334
      %vm1342 = vmor %vm1340, %vm1341
      %v1343 = vsel %vm1342, %v1334, %v1339
      %v1344 = vrsqrt.pop %v1323
      %v1345 = vmul.f32 %v1344, %v1323
      %v1346 = vmul.f32 %v1345, %v1344
      %v1347 = vmul.f32 0.5, %v1346
      %v1348 = vsub.f32 1.5, %v1347
      %v1349 = vmul.f32 %v1344, %v1348
      %vm1350 = vweird.f32 %v1323
      %vm1351 = vweird.f32 %v1344
      %vm1352 = vmor %vm1350, %vm1351
      %v1353 = vsel %vm1352, %v1344, %v1349
      %v1354 = vmul.f32 %v1318, %v1333
      %v1355 = vmul.f32 %v1319, %v1343
      %v1356 = vmul.f32 %v1320, %v1353
      %v1357 = vperm.slane %v454, 4
      %v1358 = vmul.f32 %v1354, %v1357
      %v1359 = vmul.f32 %v1355, %v1357
      %v1360 = vmul.f32 %v1356, %v1357
      %v1361 = vperm.slane %v454, 5
      %v1362 = vadd.f32 %v1358, %v1361
      %v1363 = vadd.f32 %v1359, %v1361
      %v1364 = vadd.f32 %v1360, %v1361
      %v1365 = vld [vmem:[%s6] sm:$0xf]
      %v1366 = vld [vmem:[%s6 + $0x4] sm:$0xf]
      %v1367 = vld [vmem:[%s6 + $0x8] sm:$0xf]
      %v1368 = vld [vmem:[%s6 + $0xc] sm:$0xf]
      %v1369 = vpack.c.bf16 %v1363, %v1362
      %v1370 = vpack.c.bf16 %v1364, %v1364
      %v1371 = vperm.slane %v454, 6
      %v1376 = vunpack.c.l.b16 %v1365
      %v1377 = vunpack.c.l.b16 %v1366
      %v1378 = vunpack.c.l.b16 %v1367
      %v1379 = vunpack.c.l.b16 %v1368
      %v1380 = vpack.c.b16 %v1377, %v1376
      %v1381 = vpack.c.b16 %v1379, %v1378
      %v1385 = vsel %vm455, %v1369, 0
      %v1388 = vsel %vm455, %v1370, 0
      %1390 = vmatpush.bf16.msra.mxu0 0
      %1391 = vmatpush.bf16.msra.mxu0 0
      %1392 = vmatpush.bf16.msra.mxu0 0
      %1393 = vmatpush.bf16.msra.mxu0 0
      %1394 = vmatpush.bf16.msra.mxu0 0
      %1395 = vmatpush.bf16.msra.mxu0 0
      %1396 = vmatpush.bf16.msra.mxu0 %v1381
      %1397 = vmatpush.bf16.msra.mxu0 %v1380
      %1398 = vmatmul.bf16.gmra.mxu0 %v1385
      %v1399 = vpop.f32.mrf.mxu0
      %v1400 = vadd.f32 %v1371, %v1399
      %v1401 = vpop.f32.mrf.mxu0
      %v1402 = vadd.f32 %v1371, %v1401
      %1403 = vmatmul.bf16.gmra.mxu0 %v1388
      %v1404 = vpop.f32.mrf.mxu0
      %v1405 = vadd.f32 %v1371, %v1404
      %v1406 = vpop.f32.mrf.mxu0
      %1407 = vdwg.mxu0
      %v1408 = vmul.f32 %v1400, %v1400
      %v1409 = vmul.f32 %v1402, %v1402
      %v1410 = vmul.f32 %v1405, %v1405
      %v1411 = vmul.f32 %v1400, %v1408
      %v1412 = vmul.f32 %v1402, %v1409
      %v1413 = vmul.f32 %v1405, %v1410
      %v1414 = vmul.f32 %v1411, 0.044715
      %v1415 = vmul.f32 %v1412, 0.044715
      %v1416 = vmul.f32 %v1413, 0.044715
      %v1417 = vadd.f32 %v1400, %v1414
      %v1418 = vadd.f32 %v1402, %v1415
      %v1419 = vadd.f32 %v1405, %v1416
      %v1420 = vmul.f32 %v1417, 0.7978846
      %v1421 = vmul.f32 %v1418, 0.7978846
      %v1422 = vmul.f32 %v1419, 0.7978846
      %v1423 = vtanh.pop %v1420
      %v1424 = vtanh.pop %v1421
      %v1425 = vtanh.pop %v1422
      %v1426 = vadd.f32 %v1423, 1.0
      %v1427 = vadd.f32 %v1424, 1.0
      %v1428 = vadd.f32 %v1425, 1.0
      %v1429 = vmul.f32 %v1426, 0.5
      %v1430 = vmul.f32 %v1427, 0.5
      %v1431 = vmul.f32 %v1428, 0.5
      %v1432 = vmul.f32 %v1400, %v1429
      %v1433 = vmul.f32 %v1402, %v1430
      %v1434 = vmul.f32 %v1405, %v1431
      %v1435 = vld [vmem:[%s7] sm:$0xf]
      %v1436 = vld [vmem:[%s7 + $0x4] sm:$0xf]
      %v1437 = vld [vmem:[%s7 + $0x8] sm:$0xf]
      %v1438 = vld [vmem:[%s7 + $0xc] sm:$0xf]
      %v1439 = vld [vmem:[%s7 + $0x10] sm:$0xf]
      %v1440 = vld [vmem:[%s7 + $0x14] sm:$0xf]
      %v1441 = vld [vmem:[%s7 + $0x18] sm:$0xf]
      %v1442 = vld [vmem:[%s7 + $0x1c] sm:$0xf]
      %v1443 = vpack.c.bf16 %v1433, %v1432
      %v1444 = vpack.c.bf16 %v1434, %v1434
      %v1453 = vunpack.c.l.b16 %v1435
      %v1454 = vunpack.c.l.b16 %v1436
      %v1455 = vunpack.c.l.b16 %v1437
      %v1456 = vunpack.c.l.b16 %v1438
      %v1457 = vunpack.c.l.b16 %v1439
      %v1458 = vunpack.c.l.b16 %v1440
      %v1459 = vunpack.c.l.b16 %v1441
      %v1460 = vunpack.c.l.b16 %v1442
      %v1461 = vpack.c.b16 %v1454, %v1453
      %v1462 = vpack.c.b16 %v1456, %v1455
      %v1463 = vpack.c.b16 %v1458, %v1457
      %v1464 = vpack.c.b16 %v1460, %v1459
      %vm1469 = vcmask 523264
      %v1471 = vsel %vm1469, %v1443, 0
      %v1474 = vsel %vm1469, %v1444, 0
      %1476 = vmatpush.bf16.msra.mxu0 0
      %1477 = vmatpush.bf16.msra.mxu0 0
      %1478 = vmatpush.bf16.msra.mxu0 0
      %1479 = vmatpush.bf16.msra.mxu0 0
      %1480 = vmatpush.bf16.msra.mxu0 %v1464
      %1481 = vmatpush.bf16.msra.mxu0 %v1463
      %1482 = vmatpush.bf16.msra.mxu0 %v1462
      %1483 = vmatpush.bf16.msra.mxu0 %v1461
      %1484 = vmatmul.bf16.gmra.mxu0 %v1471
      %v1485 = vpop.f32.mrf.mxu0
      %v1486 = vadd.f32 0.0, %v1485
      %v1487 = vpop.f32.mrf.mxu0
      %v1488 = vadd.f32 0.0, %v1487
      %1489 = vmatmul.bf16.gmra.mxu0 %v1474
      %v1490 = vpop.f32.mrf.mxu0
      %v1491 = vadd.f32 0.0, %v1490
      %v1492 = vpop.f32.mrf.mxu0
      %1493 = vdwg.mxu0
      %v1494 = vadd.f32 %v1279, %v1486
      %v1495 = vadd.f32 %v1280, %v1488
      %v1496 = vadd.f32 %v1281, %v1491
      %v1497 = vperm.slane %v454, 7
      %v1498 = vadd.f32 %v1494, %v1497
      %v1499 = vadd.f32 %v1495, %v1497
      %v1500 = vadd.f32 %v1496, %v1497
      %s1501 = scalar_lea.vmem %s8, 8
      %v1502 = vld [vmem:[%s1501] sm:$0xff]
      %v1503 = vsel %vm455, %v1498, 0.0
      %1504 = vadd.xlane.f32.xlu0 %v1503
      %v1505 = vpop.xlane.xlu0 %1504
      %v1506 = vsel %vm455, %v1499, 0.0
      %1507 = vadd.xlane.f32.xlu0 %v1506
      %v1508 = vpop.xlane.xlu0 %1507
      %v1509 = vsel %vm455, %v1500, 0.0
      %1510 = vadd.xlane.f32.xlu0 %v1509
      %v1511 = vpop.xlane.xlu0 %1510
      %v1512 = vmul.f32 %v1505, %v471
      %v1513 = vmul.f32 %v1508, %v471
      %v1514 = vmul.f32 %v1511, %v471
      %v1515 = vmul.f32 %v1498, %v1498
      %v1516 = vmul.f32 %v1499, %v1499
      %v1517 = vmul.f32 %v1500, %v1500
      %v1518 = vsel %vm455, %v1515, 0.0
      %1519 = vadd.xlane.f32.xlu0 %v1518
      %v1520 = vpop.xlane.xlu0 %1519
      %v1521 = vsel %vm455, %v1516, 0.0
      %1522 = vadd.xlane.f32.xlu0 %v1521
      %v1523 = vpop.xlane.xlu0 %1522
      %v1524 = vsel %vm455, %v1517, 0.0
      %1525 = vadd.xlane.f32.xlu0 %v1524
      %v1526 = vpop.xlane.xlu0 %1525
      %v1527 = vmul.f32 %v1520, %v471
      %v1528 = vmul.f32 %v1523, %v471
      %v1529 = vmul.f32 %v1526, %v471
      %v1530 = vmul.f32 %v1512, %v1512
      %v1531 = vmul.f32 %v1513, %v1513
      %v1532 = vmul.f32 %v1514, %v1514
      %v1533 = vsub.f32 %v1527, %v1530
      %v1534 = vsub.f32 %v1528, %v1531
      %v1535 = vsub.f32 %v1529, %v1532
      %v1536 = vmax.f32 %v1533, 0.0
      %v1537 = vmax.f32 %v1534, 0.0
      %v1538 = vmax.f32 %v1535, 0.0
      %v1539 = vsub.f32 %v1498, %v1512
      %v1540 = vsub.f32 %v1499, %v1513
      %v1541 = vsub.f32 %v1500, %v1514
      %v1542 = vadd.f32 %v1536, 1e-12
      %v1543 = vadd.f32 %v1537, 1e-12
      %v1544 = vadd.f32 %v1538, 1e-12
      %v1545 = vrsqrt.pop %v1542
      %v1546 = vmul.f32 %v1545, %v1542
      %v1547 = vmul.f32 %v1546, %v1545
      %v1548 = vmul.f32 0.5, %v1547
      %v1549 = vsub.f32 1.5, %v1548
      %v1550 = vmul.f32 %v1545, %v1549
      %vm1551 = vweird.f32 %v1542
      %vm1552 = vweird.f32 %v1545
      %vm1553 = vmor %vm1551, %vm1552
      %v1554 = vsel %vm1553, %v1545, %v1550
      %v1555 = vrsqrt.pop %v1543
      %v1556 = vmul.f32 %v1555, %v1543
      %v1557 = vmul.f32 %v1556, %v1555
      %v1558 = vmul.f32 0.5, %v1557
      %v1559 = vsub.f32 1.5, %v1558
      %v1560 = vmul.f32 %v1555, %v1559
      %vm1561 = vweird.f32 %v1543
      %vm1562 = vweird.f32 %v1555
      %vm1563 = vmor %vm1561, %vm1562
      %v1564 = vsel %vm1563, %v1555, %v1560
      %v1565 = vrsqrt.pop %v1544
      %v1566 = vmul.f32 %v1565, %v1544
      %v1567 = vmul.f32 %v1566, %v1565
      %v1568 = vmul.f32 0.5, %v1567
      %v1569 = vsub.f32 1.5, %v1568
      %v1570 = vmul.f32 %v1565, %v1569
      %vm1571 = vweird.f32 %v1544
      %vm1572 = vweird.f32 %v1565
      %vm1573 = vmor %vm1571, %vm1572
      %v1574 = vsel %vm1573, %v1565, %v1570
      %v1575 = vmul.f32 %v1539, %v1554
      %v1576 = vmul.f32 %v1540, %v1564
      %v1577 = vmul.f32 %v1541, %v1574
      %v1578 = vperm.slane %v1502, 0
      %v1579 = vmul.f32 %v1575, %v1578
      %v1580 = vmul.f32 %v1576, %v1578
      %v1581 = vmul.f32 %v1577, %v1578
      %v1582 = vperm.slane %v1502, 1
      %v1583 = vadd.f32 %v1579, %v1582
      %v1584 = vadd.f32 %v1580, %v1582
      %v1585 = vadd.f32 %v1581, %v1582
      %s1586 = scalar_lea.vmem %s4, 16
      %v1587 = vld [vmem:[%s1586] sm:$0xf]
      %v1588 = vld [vmem:[%s1586 + $0x4] sm:$0xf]
      %v1589 = vld [vmem:[%s1586 + $0x8] sm:$0xf]
      %v1590 = vld [vmem:[%s1586 + $0xc] sm:$0xf]
      %v1591 = vpack.c.bf16 %v1584, %v1583
      %v1592 = vpack.c.bf16 %v1585, %v1585
      %v1593 = vperm.slane %v1502, 2
      %v1598 = vunpack.c.l.b16 %v1587
      %v1599 = vunpack.c.l.b16 %v1588
      %v1600 = vunpack.c.l.b16 %v1589
      %v1601 = vunpack.c.l.b16 %v1590
      %v1602 = vpack.c.b16 %v1599, %v1598
      %v1603 = vpack.c.b16 %v1601, %v1600
      %v1607 = vsel %vm455, %v1591, 0
      %v1610 = vsel %vm455, %v1592, 0
      %1612 = vmatpush.bf16.msra.mxu0 0
      %1613 = vmatpush.bf16.msra.mxu0 0
      %1614 = vmatpush.bf16.msra.mxu0 0
      %1615 = vmatpush.bf16.msra.mxu0 0
      %1616 = vmatpush.bf16.msra.mxu0 0
      %1617 = vmatpush.bf16.msra.mxu0 0
      %1618 = vmatpush.bf16.msra.mxu0 %v1603
      %1619 = vmatpush.bf16.msra.mxu0 %v1602
      %1620 = vmatmul.bf16.gmra.mxu0 %v1607
      %v1621 = vpop.f32.mrf.mxu0
      %v1622 = vadd.f32 %v1593, %v1621
      %v1623 = vpop.f32.mrf.mxu0
      %v1624 = vadd.f32 %v1593, %v1623
      %1625 = vmatmul.bf16.gmra.mxu0 %v1610
      %v1626 = vpop.f32.mrf.mxu0
      %v1627 = vadd.f32 %v1593, %v1626
      %v1628 = vpop.f32.mrf.mxu0
      %1629 = vdwg.mxu0
      %v1630 = vpack.c.bf16 %v1622, %v1622
      %v1631 = vpack.c.bf16 %v1624, %v1624
      %v1632 = vpack.c.bf16 %v1627, %v1627
      %1633 = vst.msk [vmem:[#allocation2] sm:$0xf] %vm592, %v1630
      %1634 = vst.msk [vmem:[#allocation2 + $0x4] sm:$0xf] %vm592, %v1631
      %1635 = vst.msk [vmem:[#allocation2 + $0x8] sm:$0xf] %vm592, %v1632
      %v1636 = vld [vmem:[#allocation2] sm:$0xf]
      %v1637 = vld [vmem:[#allocation2 + $0x4] sm:$0xf]
      %v1638 = vld [vmem:[#allocation2 + $0x8] sm:$0xf]
      %v1642 = vunpack.c.l.b16 %v1636
      %v1643 = vunpack.c.l.b16 %v1637
      %v1644 = vunpack.c.l.b16 %v1638
      %v1645 = vpack.c.b16 %v1643, %v1642
      %v1646 = vpack.c.b16 %v1644, %v1644
      %1647 = vrot.lane.b32.xlu0 %v1645, 96
      %v1648 = vpop.permute.xlu0 %1647
      %1649 = vrot.lane.b32.xlu0 %v1646, 96
      %v1650 = vpop.permute.xlu0 %1649
      %v1652 = vsel %vm611, %v1645, 0
      %v1655 = vsel %vm611, %v1646, 0
      %v1658 = vsel %vm611, %v1648, 0
      %v1661 = vsel %vm611, %v1650, 0
      %1663 = vmatpush.bf16.xpose.msra.mxu0 0
      %1664 = vmatpush.bf16.xpose.msra.mxu0 0
      %1665 = vmatpush.bf16.xpose.msra.mxu0 0
      %1666 = vmatpush.bf16.xpose.msra.mxu0 0
      %1667 = vmatpush.bf16.xpose.msra.mxu0 0
      %1668 = vmatpush.bf16.xpose.msra.mxu0 0
      %1669 = vmatpush.bf16.xpose.msra.mxu0 %v1661
      %1670 = vmatpush.bf16.xpose.msra.mxu0 %v1658
      %1671 = vmatmul.bf16.gmra.mxu0 %v1652
      %v1672 = vpop.f32.mrf.mxu0
      %v1673 = vadd.f32 0.0, %v1672
      %v1674 = vpop.f32.mrf.mxu0
      %v1675 = vadd.f32 0.0, %v1674
      %1676 = vmatmul.bf16.gmra.mxu0 %v1655
      %v1677 = vpop.f32.mrf.mxu0
      %v1678 = vadd.f32 0.0, %v1677
      %v1679 = vpop.f32.mrf.mxu0
      %1680 = vdwg.mxu0
      %1681 = vst.msk [vmem:[#allocation3] sm:$0xff] %vm642, %v1673
      %1682 = vst.msk [vmem:[#allocation3 + $0x8] sm:$0xff] %vm642, %v1675
      %1683 = vst.msk [vmem:[#allocation3 + $0x10] sm:$0xff] %vm642, %v1678
      %v1684 = vld [vmem:[#allocation2] sm:$0xf]
      %v1685 = vld [vmem:[#allocation2 + $0x4] sm:$0xf]
      %v1686 = vld [vmem:[#allocation2 + $0x8] sm:$0xf]
      %v1690 = vunpack.c.l.b16 %v1684
      %v1691 = vunpack.c.l.b16 %v1685
      %v1692 = vunpack.c.l.b16 %v1686
      %v1693 = vpack.c.b16 %v1691, %v1690
      %v1694 = vpack.c.b16 %v1692, %v1692
      %1695 = vrot.lane.b32.xlu0 %v1693, 120
      %v1696 = vpop.permute.xlu0 %1695
      %1697 = vrot.lane.b32.xlu0 %v1694, 120
      %v1698 = vpop.permute.xlu0 %1697
      %1699 = vrot.lane.b32.xlu0 %v1693, 88
      %v1700 = vpop.permute.xlu0 %1699
      %1701 = vrot.lane.b32.xlu0 %v1694, 88
      %v1702 = vpop.permute.xlu0 %1701
      %v1704 = vsel %vm611, %v1696, 0
      %v1707 = vsel %vm611, %v1698, 0
      %v1710 = vsel %vm611, %v1700, 0
      %v1713 = vsel %vm611, %v1702, 0
      %1715 = vmatpush.bf16.xpose.msra.mxu0 0
      %1716 = vmatpush.bf16.xpose.msra.mxu0 0
      %1717 = vmatpush.bf16.xpose.msra.mxu0 0
      %1718 = vmatpush.bf16.xpose.msra.mxu0 0
      %1719 = vmatpush.bf16.xpose.msra.mxu0 0
      %1720 = vmatpush.bf16.xpose.msra.mxu0 0
      %1721 = vmatpush.bf16.xpose.msra.mxu0 %v1713
      %1722 = vmatpush.bf16.xpose.msra.mxu0 %v1710
      %1723 = vmatmul.bf16.gmra.mxu0 %v1704
      %v1724 = vpop.f32.mrf.mxu0
      %v1725 = vadd.f32 0.0, %v1724
      %v1726 = vpop.f32.mrf.mxu0
      %v1727 = vadd.f32 0.0, %v1726
      %1728 = vmatmul.bf16.gmra.mxu0 %v1707
      %v1729 = vpop.f32.mrf.mxu0
      %v1730 = vadd.f32 0.0, %v1729
      %v1731 = vpop.f32.mrf.mxu0
      %1732 = vdwg.mxu0
      %1736 = vrot.lane.b32.xlu0 %v1725, 24
      %v1737 = vpop.permute.xlu0 %1736
      %1738 = vrot.lane.b32.xlu0 %v1727, 24
      %v1739 = vpop.permute.xlu0 %1738
      %1740 = vrot.lane.b32.xlu0 %v1730, 24
      %v1741 = vpop.permute.xlu0 %1740
      %1745 = vst.msk [vmem:[#allocation3] sm:$0xff] %vm707, %v1737
      %1746 = vst.msk [vmem:[#allocation3 + $0x8] sm:$0xff] %vm707, %v1739
      %1747 = vst.msk [vmem:[#allocation3 + $0x10] sm:$0xff] %vm707, %v1741
      %v1748 = vld [vmem:[#allocation2] sm:$0xf]
      %v1749 = vld [vmem:[#allocation2 + $0x4] sm:$0xf]
      %v1750 = vld [vmem:[#allocation2 + $0x8] sm:$0xf]
      %v1754 = vunpack.c.l.b16 %v1748
      %v1755 = vunpack.c.l.b16 %v1749
      %v1756 = vunpack.c.l.b16 %v1750
      %v1757 = vpack.c.b16 %v1755, %v1754
      %v1758 = vpack.c.b16 %v1756, %v1756
      %1759 = vrot.lane.b32.xlu0 %v1757, 112
      %v1760 = vpop.permute.xlu0 %1759
      %1761 = vrot.lane.b32.xlu0 %v1758, 112
      %v1762 = vpop.permute.xlu0 %1761
      %1763 = vrot.lane.b32.xlu0 %v1757, 80
      %v1764 = vpop.permute.xlu0 %1763
      %1765 = vrot.lane.b32.xlu0 %v1758, 80
      %v1766 = vpop.permute.xlu0 %1765
      %v1768 = vsel %vm611, %v1760, 0
      %v1771 = vsel %vm611, %v1762, 0
      %v1774 = vsel %vm611, %v1764, 0
      %v1777 = vsel %vm611, %v1766, 0
      %1779 = vmatpush.bf16.xpose.msra.mxu0 0
      %1780 = vmatpush.bf16.xpose.msra.mxu0 0
      %1781 = vmatpush.bf16.xpose.msra.mxu0 0
      %1782 = vmatpush.bf16.xpose.msra.mxu0 0
      %1783 = vmatpush.bf16.xpose.msra.mxu0 0
      %1784 = vmatpush.bf16.xpose.msra.mxu0 0
      %1785 = vmatpush.bf16.xpose.msra.mxu0 %v1777
      %1786 = vmatpush.bf16.xpose.msra.mxu0 %v1774
      %1787 = vmatmul.bf16.gmra.mxu0 %v1768
      %v1788 = vpop.f32.mrf.mxu0
      %v1789 = vadd.f32 0.0, %v1788
      %v1790 = vpop.f32.mrf.mxu0
      %v1791 = vadd.f32 0.0, %v1790
      %1792 = vmatmul.bf16.gmra.mxu0 %v1771
      %v1793 = vpop.f32.mrf.mxu0
      %v1794 = vadd.f32 0.0, %v1793
      %v1795 = vpop.f32.mrf.mxu0
      %1796 = vdwg.mxu0
      %1800 = vrot.lane.b32.xlu0 %v1789, 48
      %v1801 = vpop.permute.xlu0 %1800
      %1802 = vrot.lane.b32.xlu0 %v1791, 48
      %v1803 = vpop.permute.xlu0 %1802
      %1804 = vrot.lane.b32.xlu0 %v1794, 48
      %v1805 = vpop.permute.xlu0 %1804
      %1809 = vst.msk [vmem:[#allocation3] sm:$0xff] %vm772, %v1801
      %1810 = vst.msk [vmem:[#allocation3 + $0x8] sm:$0xff] %vm772, %v1803
      %1811 = vst.msk [vmem:[#allocation3 + $0x10] sm:$0xff] %vm772, %v1805
      %v1812 = vld [vmem:[#allocation2] sm:$0xf]
      %v1813 = vld [vmem:[#allocation2 + $0x4] sm:$0xf]
      %v1814 = vld [vmem:[#allocation2 + $0x8] sm:$0xf]
      %v1818 = vunpack.c.l.b16 %v1812
      %v1819 = vunpack.c.l.b16 %v1813
      %v1820 = vunpack.c.l.b16 %v1814
      %v1821 = vpack.c.b16 %v1819, %v1818
      %v1822 = vpack.c.b16 %v1820, %v1820
      %1823 = vrot.lane.b32.xlu0 %v1821, 104
      %v1824 = vpop.permute.xlu0 %1823
      %1825 = vrot.lane.b32.xlu0 %v1822, 104
      %v1826 = vpop.permute.xlu0 %1825
      %1827 = vrot.lane.b32.xlu0 %v1821, 72
      %v1828 = vpop.permute.xlu0 %1827
      %1829 = vrot.lane.b32.xlu0 %v1822, 72
      %v1830 = vpop.permute.xlu0 %1829
      %v1832 = vsel %vm611, %v1824, 0
      %v1835 = vsel %vm611, %v1826, 0
      %v1838 = vsel %vm611, %v1828, 0
      %v1841 = vsel %vm611, %v1830, 0
      %1843 = vmatpush.bf16.xpose.msra.mxu0 0
      %1844 = vmatpush.bf16.xpose.msra.mxu0 0
      %1845 = vmatpush.bf16.xpose.msra.mxu0 0
      %1846 = vmatpush.bf16.xpose.msra.mxu0 0
      %1847 = vmatpush.bf16.xpose.msra.mxu0 0
      %1848 = vmatpush.bf16.xpose.msra.mxu0 0
      %1849 = vmatpush.bf16.xpose.msra.mxu0 %v1841
      %1850 = vmatpush.bf16.xpose.msra.mxu0 %v1838
      %1851 = vmatmul.bf16.gmra.mxu0 %v1832
      %v1852 = vpop.f32.mrf.mxu0
      %v1853 = vadd.f32 0.0, %v1852
      %v1854 = vpop.f32.mrf.mxu0
      %v1855 = vadd.f32 0.0, %v1854
      %1856 = vmatmul.bf16.gmra.mxu0 %v1835
      %v1857 = vpop.f32.mrf.mxu0
      %v1858 = vadd.f32 0.0, %v1857
      %v1859 = vpop.f32.mrf.mxu0
      %1860 = vdwg.mxu0
      %1864 = vrot.lane.b32.xlu0 %v1853, 72
      %v1865 = vpop.permute.xlu0 %1864
      %1866 = vrot.lane.b32.xlu0 %v1855, 72
      %v1867 = vpop.permute.xlu0 %1866
      %1868 = vrot.lane.b32.xlu0 %v1858, 72
      %v1869 = vpop.permute.xlu0 %1868
      %1873 = vst.msk [vmem:[#allocation3] sm:$0xff] %vm837, %v1865
      %1874 = vst.msk [vmem:[#allocation3 + $0x8] sm:$0xff] %vm837, %v1867
      %1875 = vst.msk [vmem:[#allocation3 + $0x10] sm:$0xff] %vm837, %v1869
      %v1876 = vld [vmem:[#allocation3] sm:$0xff]
      %v1877 = vld [vmem:[#allocation3 + $0x8] sm:$0xff]
      %v1878 = vld [vmem:[#allocation3 + $0x10] sm:$0xff]
      %v1879 = vmul.f32 %v1876, 0.35355338
      %v1880 = vmul.f32 %v1877, 0.35355338
      %v1881 = vmul.f32 %v1878, 0.35355338
      %v1882 = vadd.f32 %v1879, %v388
      %v1883 = vadd.f32 %v1880, %v389
      %v1884 = vadd.f32 %v1881, %v390
      %v1885 = vsel %vm850, %v1882, -inf
      %1886 = vmax.xlane.f32.xlu0 %v1885
      %v1887 = vpop.xlane.xlu0 %1886
      %v1888 = vsel %vm850, %v1883, -inf
      %1889 = vmax.xlane.f32.xlu0 %v1888
      %v1890 = vpop.xlane.xlu0 %1889
      %v1891 = vsel %vm850, %v1884, -inf
      %1892 = vmax.xlane.f32.xlu0 %v1891
      %v1893 = vpop.xlane.xlu0 %1892
      %v1894 = vsub.f32 %v1882, %v1887
      %v1895 = vsub.f32 %v1883, %v1890
      %v1896 = vsub.f32 %v1884, %v1893
      %v1897 = vmul.f32 %v1894, 1.442695
      %v1898 = vpow.pop %v1897
      %v1899 = vmul.f32 %v1895, 1.442695
      %v1900 = vpow.pop %v1899
      %v1901 = vmul.f32 %v1896, 1.442695
      %v1902 = vpow.pop %v1901
      %1903 = vst.msk [vmem:[#allocation3] sm:$0xff] %vm850, %v1898
      %1904 = vst.msk [vmem:[#allocation3 + $0x8] sm:$0xff] %vm850, %v1900
      %1905 = vst.msk [vmem:[#allocation3 + $0x10] sm:$0xff] %vm850, %v1902
      %v1906 = vld [vmem:[#allocation3] sm:$0xff]
      %v1907 = vld [vmem:[#allocation3 + $0x8] sm:$0xff]
      %v1908 = vld [vmem:[#allocation3 + $0x10] sm:$0xff]
      %v1909 = vsel %vm642, %v1906, 0.0
      %1910 = vadd.xlane.f32.xlu0 %v1909
      %v1911 = vpop.xlane.xlu0 %1910
      %v1912 = vsel %vm642, %v1907, 0.0
      %1913 = vadd.xlane.f32.xlu0 %v1912
      %v1914 = vpop.xlane.xlu0 %1913
      %v1915 = vsel %vm642, %v1908, 0.0
      %1916 = vadd.xlane.f32.xlu0 %v1915
      %v1917 = vpop.xlane.xlu0 %1916
      %v1918 = vrcp.pop %v1911
      %v1919 = vrcp.pop %v1914
      %v1920 = vrcp.pop %v1917
      %v1921 = vld [vmem:[#allocation2] sm:$0xf]
      %v1922 = vld [vmem:[#allocation2 + $0x4] sm:$0xf]
      %v1923 = vld [vmem:[#allocation2 + $0x8] sm:$0xf]
      %v1924 = vpack.c.bf16 %v1907, %v1906
      %v1925 = vpack.c.bf16 %v1908, %v1908
      %v1929 = vunpack.c.l.b16 %v1921
      %v1930 = vunpack.c.l.b16 %v1922
      %v1931 = vunpack.c.l.b16 %v1923
      %v1932 = vpack.c.b16 %v1930, %v1929
      %v1933 = vpack.c.b16 %v1931, %v1931
      %1934 = vrot.lane.b32.xlu0 %v1932, 64
      %v1935 = vpop.permute.xlu0 %1934
      %1936 = vrot.lane.b32.xlu0 %v1933, 64
      %v1937 = vpop.permute.xlu0 %1936
      %v1940 = vsel %vm642, %v1924, 0
      %v1943 = vsel %vm642, %v1925, 0
      %v1946 = vsel %vm911, %v1937, 0
      %1948 = vmatpush.bf16.msra.mxu0 0
      %1949 = vmatpush.bf16.msra.mxu0 0
      %1950 = vmatpush.bf16.msra.mxu0 0
      %1951 = vmatpush.bf16.msra.mxu0 0
      %1952 = vmatpush.bf16.msra.mxu0 0
      %1953 = vmatpush.bf16.msra.mxu0 0
      %1954 = vmatpush.bf16.msra.mxu0 %v1946
      %1955 = vmatpush.bf16.msra.mxu0 %v1935
      %1956 = vmatmul.bf16.gmra.mxu0 %v1940
      %v1957 = vpop.f32.mrf.mxu0
      %v1958 = vadd.f32 0.0, %v1957
      %v1959 = vpop.f32.mrf.mxu0
      %v1960 = vadd.f32 0.0, %v1959
      %1961 = vmatmul.bf16.gmra.mxu0 %v1943
      %v1962 = vpop.f32.mrf.mxu0
      %v1963 = vadd.f32 0.0, %v1962
      %v1964 = vpop.f32.mrf.mxu0
      %1965 = vdwg.mxu0
      %v1966 = vmul.f32 %v1958, %v1918
      %v1967 = vmul.f32 %v1960, %v1919
      %v1968 = vmul.f32 %v1963, %v1920
      %1969 = vst.msk [vmem:[#allocation4] sm:$0xff] %vm611, %v1966
      %1970 = vst.msk [vmem:[#allocation4 + $0x8] sm:$0xff] %vm611, %v1967
      %1971 = vst.msk [vmem:[#allocation4 + $0x10] sm:$0xff] %vm611, %v1968
      %v1972 = vld [vmem:[#allocation3] sm:$0xff]
      %v1973 = vld [vmem:[#allocation3 + $0x8] sm:$0xff]
      %v1974 = vld [vmem:[#allocation3 + $0x10] sm:$0xff]
      %1978 = vrot.lane.b32.xlu0 %v1972, 104
      %v1979 = vpop.permute.xlu0 %1978
      %1980 = vrot.lane.b32.xlu0 %v1973, 104
      %v1981 = vpop.permute.xlu0 %1980
      %1982 = vrot.lane.b32.xlu0 %v1974, 104
      %v1983 = vpop.permute.xlu0 %1982
      %v1987 = vsel %vm642, %v1979, 0.0
      %1988 = vadd.xlane.f32.xlu0 %v1987
      %v1989 = vpop.xlane.xlu0 %1988
      %v1990 = vsel %vm642, %v1981, 0.0
      %1991 = vadd.xlane.f32.xlu0 %v1990
      %v1992 = vpop.xlane.xlu0 %1991
      %v1993 = vsel %vm642, %v1983, 0.0
      %1994 = vadd.xlane.f32.xlu0 %v1993
      %v1995 = vpop.xlane.xlu0 %1994
      %v1996 = vrcp.pop %v1989
      %v1997 = vrcp.pop %v1992
      %v1998 = vrcp.pop %v1995
      %v1999 = vld [vmem:[#allocation2] sm:$0xf]
      %v2000 = vld [vmem:[#allocation2 + $0x4] sm:$0xf]
      %v2001 = vld [vmem:[#allocation2 + $0x8] sm:$0xf]
      %v2002 = vpack.c.bf16 %v1973, %v1972
      %v2003 = vpack.c.bf16 %v1974, %v1974
      %2006 = vrot.lane.b32.xlu0 %v2002, 104
      %v2007 = vpop.permute.xlu0 %2006
      %2008 = vrot.lane.b32.xlu0 %v2003, 104
      %v2009 = vpop.permute.xlu0 %2008
      %v2013 = vunpack.c.l.b16 %v1999
      %v2014 = vunpack.c.l.b16 %v2000
      %v2015 = vunpack.c.l.b16 %v2001
      %v2016 = vpack.c.b16 %v2014, %v2013
      %v2017 = vpack.c.b16 %v2015, %v2015
      %2018 = vrot.lane.b32.xlu0 %v2016, 56
      %v2019 = vpop.permute.xlu0 %2018
      %2020 = vrot.lane.b32.xlu0 %v2017, 56
      %v2021 = vpop.permute.xlu0 %2020
      %v2024 = vsel %vm642, %v2007, 0
      %v2027 = vsel %vm642, %v2009, 0
      %v2030 = vsel %vm911, %v2021, 0
      %2032 = vmatpush.bf16.msra.mxu0 0
      %2033 = vmatpush.bf16.msra.mxu0 0
      %2034 = vmatpush.bf16.msra.mxu0 0
      %2035 = vmatpush.bf16.msra.mxu0 0
      %2036 = vmatpush.bf16.msra.mxu0 0
      %2037 = vmatpush.bf16.msra.mxu0 0
      %2038 = vmatpush.bf16.msra.mxu0 %v2030
      %2039 = vmatpush.bf16.msra.mxu0 %v2019
      %2040 = vmatmul.bf16.gmra.mxu0 %v2024
      %v2041 = vpop.f32.mrf.mxu0
      %v2042 = vadd.f32 0.0, %v2041
      %v2043 = vpop.f32.mrf.mxu0
      %v2044 = vadd.f32 0.0, %v2043
      %2045 = vmatmul.bf16.gmra.mxu0 %v2027
      %v2046 = vpop.f32.mrf.mxu0
      %v2047 = vadd.f32 0.0, %v2046
      %v2048 = vpop.f32.mrf.mxu0
      %2049 = vdwg.mxu0
      %v2050 = vmul.f32 %v2042, %v1996
      %v2051 = vmul.f32 %v2044, %v1997
      %v2052 = vmul.f32 %v2047, %v1998
      %2056 = vrot.lane.b32.xlu0 %v2050, 8
      %v2057 = vpop.permute.xlu0 %2056
      %2058 = vrot.lane.b32.xlu0 %v2051, 8
      %v2059 = vpop.permute.xlu0 %2058
      %2060 = vrot.lane.b32.xlu0 %v2052, 8
      %v2061 = vpop.permute.xlu0 %2060
      %2065 = vst.msk [vmem:[#allocation4] sm:$0xff] %vm1032, %v2057
      %2066 = vst.msk [vmem:[#allocation4 + $0x8] sm:$0xff] %vm1032, %v2059
      %2067 = vst.msk [vmem:[#allocation4 + $0x10] sm:$0xff] %vm1032, %v2061
      %v2068 = vld [vmem:[#allocation3] sm:$0xff]
      %v2069 = vld [vmem:[#allocation3 + $0x8] sm:$0xff]
      %v2070 = vld [vmem:[#allocation3 + $0x10] sm:$0xff]
      %2074 = vrot.lane.b32.xlu0 %v2068, 80
      %v2075 = vpop.permute.xlu0 %2074
      %2076 = vrot.lane.b32.xlu0 %v2069, 80
      %v2077 = vpop.permute.xlu0 %2076
      %2078 = vrot.lane.b32.xlu0 %v2070, 80
      %v2079 = vpop.permute.xlu0 %2078
      %v2083 = vsel %vm642, %v2075, 0.0
      %2084 = vadd.xlane.f32.xlu0 %v2083
      %v2085 = vpop.xlane.xlu0 %2084
      %v2086 = vsel %vm642, %v2077, 0.0
      %2087 = vadd.xlane.f32.xlu0 %v2086
      %v2088 = vpop.xlane.xlu0 %2087
      %v2089 = vsel %vm642, %v2079, 0.0
      %2090 = vadd.xlane.f32.xlu0 %v2089
      %v2091 = vpop.xlane.xlu0 %2090
      %v2092 = vrcp.pop %v2085
      %v2093 = vrcp.pop %v2088
      %v2094 = vrcp.pop %v2091
      %v2095 = vld [vmem:[#allocation2] sm:$0xf]
      %v2096 = vld [vmem:[#allocation2 + $0x4] sm:$0xf]
      %v2097 = vld [vmem:[#allocation2 + $0x8] sm:$0xf]
      %v2098 = vpack.c.bf16 %v2069, %v2068
      %v2099 = vpack.c.bf16 %v2070, %v2070
      %2102 = vrot.lane.b32.xlu0 %v2098, 80
      %v2103 = vpop.permute.xlu0 %2102
      %2104 = vrot.lane.b32.xlu0 %v2099, 80
      %v2105 = vpop.permute.xlu0 %2104
      %v2109 = vunpack.c.l.b16 %v2095
      %v2110 = vunpack.c.l.b16 %v2096
      %v2111 = vunpack.c.l.b16 %v2097
      %v2112 = vpack.c.b16 %v2110, %v2109
      %v2113 = vpack.c.b16 %v2111, %v2111
      %2114 = vrot.lane.b32.xlu0 %v2112, 48
      %v2115 = vpop.permute.xlu0 %2114
      %2116 = vrot.lane.b32.xlu0 %v2113, 48
      %v2117 = vpop.permute.xlu0 %2116
      %v2120 = vsel %vm642, %v2103, 0
      %v2123 = vsel %vm642, %v2105, 0
      %v2126 = vsel %vm911, %v2117, 0
      %2128 = vmatpush.bf16.msra.mxu0 0
      %2129 = vmatpush.bf16.msra.mxu0 0
      %2130 = vmatpush.bf16.msra.mxu0 0
      %2131 = vmatpush.bf16.msra.mxu0 0
      %2132 = vmatpush.bf16.msra.mxu0 0
      %2133 = vmatpush.bf16.msra.mxu0 0
      %2134 = vmatpush.bf16.msra.mxu0 %v2126
      %2135 = vmatpush.bf16.msra.mxu0 %v2115
      %2136 = vmatmul.bf16.gmra.mxu0 %v2120
      %v2137 = vpop.f32.mrf.mxu0
      %v2138 = vadd.f32 0.0, %v2137
      %v2139 = vpop.f32.mrf.mxu0
      %v2140 = vadd.f32 0.0, %v2139
      %2141 = vmatmul.bf16.gmra.mxu0 %v2123
      %v2142 = vpop.f32.mrf.mxu0
      %v2143 = vadd.f32 0.0, %v2142
      %v2144 = vpop.f32.mrf.mxu0
      %2145 = vdwg.mxu0
      %v2146 = vmul.f32 %v2138, %v2092
      %v2147 = vmul.f32 %v2140, %v2093
      %v2148 = vmul.f32 %v2143, %v2094
      %2152 = vrot.lane.b32.xlu0 %v2146, 16
      %v2153 = vpop.permute.xlu0 %2152
      %2154 = vrot.lane.b32.xlu0 %v2147, 16
      %v2155 = vpop.permute.xlu0 %2154
      %2156 = vrot.lane.b32.xlu0 %v2148, 16
      %v2157 = vpop.permute.xlu0 %2156
      %2161 = vst.msk [vmem:[#allocation4] sm:$0xff] %vm1129, %v2153
      %2162 = vst.msk [vmem:[#allocation4 + $0x8] sm:$0xff] %vm1129, %v2155
      %2163 = vst.msk [vmem:[#allocation4 + $0x10] sm:$0xff] %vm1129, %v2157
      %v2164 = vld [vmem:[#allocation3] sm:$0xff]
      %v2165 = vld [vmem:[#allocation3 + $0x8] sm:$0xff]
      %v2166 = vld [vmem:[#allocation3 + $0x10] sm:$0xff]
      %2170 = vrot.lane.b32.xlu0 %v2164, 56
      %v2171 = vpop.permute.xlu0 %2170
      %2172 = vrot.lane.b32.xlu0 %v2165, 56
      %v2173 = vpop.permute.xlu0 %2172
      %2174 = vrot.lane.b32.xlu0 %v2166, 56
      %v2175 = vpop.permute.xlu0 %2174
      %v2179 = vsel %vm642, %v2171, 0.0
      %2180 = vadd.xlane.f32.xlu0 %v2179
      %v2181 = vpop.xlane.xlu0 %2180
      %v2182 = vsel %vm642, %v2173, 0.0
      %2183 = vadd.xlane.f32.xlu0 %v2182
      %v2184 = vpop.xlane.xlu0 %2183
      %v2185 = vsel %vm642, %v2175, 0.0
      %2186 = vadd.xlane.f32.xlu0 %v2185
      %v2187 = vpop.xlane.xlu0 %2186
      %v2188 = vrcp.pop %v2181
      %v2189 = vrcp.pop %v2184
      %v2190 = vrcp.pop %v2187
      %v2191 = vld [vmem:[#allocation2] sm:$0xf]
      %v2192 = vld [vmem:[#allocation2 + $0x4] sm:$0xf]
      %v2193 = vld [vmem:[#allocation2 + $0x8] sm:$0xf]
      %v2194 = vpack.c.bf16 %v2165, %v2164
      %v2195 = vpack.c.bf16 %v2166, %v2166
      %2198 = vrot.lane.b32.xlu0 %v2194, 56
      %v2199 = vpop.permute.xlu0 %2198
      %2200 = vrot.lane.b32.xlu0 %v2195, 56
      %v2201 = vpop.permute.xlu0 %2200
      %v2205 = vunpack.c.l.b16 %v2191
      %v2206 = vunpack.c.l.b16 %v2192
      %v2207 = vunpack.c.l.b16 %v2193
      %v2208 = vpack.c.b16 %v2206, %v2205
      %v2209 = vpack.c.b16 %v2207, %v2207
      %2210 = vrot.lane.b32.xlu0 %v2208, 40
      %v2211 = vpop.permute.xlu0 %2210
      %2212 = vrot.lane.b32.xlu0 %v2209, 40
      %v2213 = vpop.permute.xlu0 %2212
      %v2216 = vsel %vm642, %v2199, 0
      %v2219 = vsel %vm642, %v2201, 0
      %v2222 = vsel %vm911, %v2213, 0
      %2224 = vmatpush.bf16.msra.mxu0 0
      %2225 = vmatpush.bf16.msra.mxu0 0
      %2226 = vmatpush.bf16.msra.mxu0 0
      %2227 = vmatpush.bf16.msra.mxu0 0
      %2228 = vmatpush.bf16.msra.mxu0 0
      %2229 = vmatpush.bf16.msra.mxu0 0
      %2230 = vmatpush.bf16.msra.mxu0 %v2222
      %2231 = vmatpush.bf16.msra.mxu0 %v2211
      %2232 = vmatmul.bf16.gmra.mxu0 %v2216
      %v2233 = vpop.f32.mrf.mxu0
      %v2234 = vadd.f32 0.0, %v2233
      %v2235 = vpop.f32.mrf.mxu0
      %v2236 = vadd.f32 0.0, %v2235
      %2237 = vmatmul.bf16.gmra.mxu0 %v2219
      %v2238 = vpop.f32.mrf.mxu0
      %v2239 = vadd.f32 0.0, %v2238
      %v2240 = vpop.f32.mrf.mxu0
      %2241 = vdwg.mxu0
      %v2242 = vmul.f32 %v2234, %v2188
      %v2243 = vmul.f32 %v2236, %v2189
      %v2244 = vmul.f32 %v2239, %v2190
      %2248 = vrot.lane.b32.xlu0 %v2242, 24
      %v2249 = vpop.permute.xlu0 %2248
      %2250 = vrot.lane.b32.xlu0 %v2243, 24
      %v2251 = vpop.permute.xlu0 %2250
      %2252 = vrot.lane.b32.xlu0 %v2244, 24
      %v2253 = vpop.permute.xlu0 %2252
      %2257 = vst.msk [vmem:[#allocation4] sm:$0xff] %vm1226, %v2249
      %2258 = vst.msk [vmem:[#allocation4 + $0x8] sm:$0xff] %vm1226, %v2251
      %2259 = vst.msk [vmem:[#allocation4 + $0x10] sm:$0xff] %vm1226, %v2253
      %v2260 = vld [vmem:[#allocation4] sm:$0xff]
      %v2261 = vld [vmem:[#allocation4 + $0x8] sm:$0xff]
      %v2262 = vld [vmem:[#allocation4 + $0x10] sm:$0xff]
      %s2263 = scalar_lea.vmem %s5, 16
      %v2264 = vld [vmem:[%s2263] sm:$0xf]
      %v2265 = vld [vmem:[%s2263 + $0x4] sm:$0xf]
      %v2266 = vld [vmem:[%s2263 + $0x8] sm:$0xf]
      %v2267 = vld [vmem:[%s2263 + $0xc] sm:$0xf]
      %v2268 = vpack.c.bf16 %v2261, %v2260
      %v2269 = vpack.c.bf16 %v2262, %v2262
      %v2274 = vunpack.c.l.b16 %v2264
      %v2275 = vunpack.c.l.b16 %v2265
      %v2276 = vunpack.c.l.b16 %v2266
      %v2277 = vunpack.c.l.b16 %v2267
      %v2278 = vpack.c.b16 %v2275, %v2274
      %v2279 = vpack.c.b16 %v2277, %v2276
      %v2283 = vsel %vm455, %v2268, 0
      %v2286 = vsel %vm455, %v2269, 0
      %2288 = vmatpush.bf16.msra.mxu0 0
      %2289 = vmatpush.bf16.msra.mxu0 0
      %2290 = vmatpush.bf16.msra.mxu0 0
      %2291 = vmatpush.bf16.msra.mxu0 0
      %2292 = vmatpush.bf16.msra.mxu0 0
      %2293 = vmatpush.bf16.msra.mxu0 0
      %2294 = vmatpush.bf16.msra.mxu0 %v2279
      %2295 = vmatpush.bf16.msra.mxu0 %v2278
      %2296 = vmatmul.bf16.gmra.mxu0 %v2283
      %v2297 = vpop.f32.mrf.mxu0
      %v2298 = vadd.f32 0.0, %v2297
      %v2299 = vpop.f32.mrf.mxu0
      %v2300 = vadd.f32 0.0, %v2299
      %2301 = vmatmul.bf16.gmra.mxu0 %v2286
      %v2302 = vpop.f32.mrf.mxu0
      %v2303 = vadd.f32 0.0, %v2302
      %v2304 = vpop.f32.mrf.mxu0
      %2305 = vdwg.mxu0
      %v2306 = vadd.f32 %v1498, %v2298
      %v2307 = vadd.f32 %v1499, %v2300
      %v2308 = vadd.f32 %v1500, %v2303
      %v2309 = vperm.slane %v1502, 3
      %v2310 = vadd.f32 %v2306, %v2309
      %v2311 = vadd.f32 %v2307, %v2309
      %v2312 = vadd.f32 %v2308, %v2309
      %v2313 = vsel %vm455, %v2310, 0.0
      %2314 = vadd.xlane.f32.xlu0 %v2313
      %v2315 = vpop.xlane.xlu0 %2314
      %v2316 = vsel %vm455, %v2311, 0.0
      %2317 = vadd.xlane.f32.xlu0 %v2316
      %v2318 = vpop.xlane.xlu0 %2317
      %v2319 = vsel %vm455, %v2312, 0.0
      %2320 = vadd.xlane.f32.xlu0 %v2319
      %v2321 = vpop.xlane.xlu0 %2320
      %v2322 = vmul.f32 %v2315, %v471
      %v2323 = vmul.f32 %v2318, %v471
      %v2324 = vmul.f32 %v2321, %v471
      %v2325 = vmul.f32 %v2310, %v2310
      %v2326 = vmul.f32 %v2311, %v2311
      %v2327 = vmul.f32 %v2312, %v2312
      %v2328 = vsel %vm455, %v2325, 0.0
      %2329 = vadd.xlane.f32.xlu0 %v2328
      %v2330 = vpop.xlane.xlu0 %2329
      %v2331 = vsel %vm455, %v2326, 0.0
      %2332 = vadd.xlane.f32.xlu0 %v2331
      %v2333 = vpop.xlane.xlu0 %2332
      %v2334 = vsel %vm455, %v2327, 0.0
      %2335 = vadd.xlane.f32.xlu0 %v2334
      %v2336 = vpop.xlane.xlu0 %2335
      %v2337 = vmul.f32 %v2330, %v471
      %v2338 = vmul.f32 %v2333, %v471
      %v2339 = vmul.f32 %v2336, %v471
      %v2340 = vmul.f32 %v2322, %v2322
      %v2341 = vmul.f32 %v2323, %v2323
      %v2342 = vmul.f32 %v2324, %v2324
      %v2343 = vsub.f32 %v2337, %v2340
      %v2344 = vsub.f32 %v2338, %v2341
      %v2345 = vsub.f32 %v2339, %v2342
      %v2346 = vmax.f32 %v2343, 0.0
      %v2347 = vmax.f32 %v2344, 0.0
      %v2348 = vmax.f32 %v2345, 0.0
      %v2349 = vsub.f32 %v2310, %v2322
      %v2350 = vsub.f32 %v2311, %v2323
      %v2351 = vsub.f32 %v2312, %v2324
      %v2352 = vadd.f32 %v2346, 1e-12
      %v2353 = vadd.f32 %v2347, 1e-12
      %v2354 = vadd.f32 %v2348, 1e-12
      %v2355 = vrsqrt.pop %v2352
      %v2356 = vmul.f32 %v2355, %v2352
      %v2357 = vmul.f32 %v2356, %v2355
      %v2358 = vmul.f32 0.5, %v2357
      %v2359 = vsub.f32 1.5, %v2358
      %v2360 = vmul.f32 %v2355, %v2359
      %vm2361 = vweird.f32 %v2352
      %vm2362 = vweird.f32 %v2355
      %vm2363 = vmor %vm2361, %vm2362
      %v2364 = vsel %vm2363, %v2355, %v2360
      %v2365 = vrsqrt.pop %v2353
      %v2366 = vmul.f32 %v2365, %v2353
      %v2367 = vmul.f32 %v2366, %v2365
      %v2368 = vmul.f32 0.5, %v2367
      %v2369 = vsub.f32 1.5, %v2368
      %v2370 = vmul.f32 %v2365, %v2369
      %vm2371 = vweird.f32 %v2353
      %vm2372 = vweird.f32 %v2365
      %vm2373 = vmor %vm2371, %vm2372
      %v2374 = vsel %vm2373, %v2365, %v2370
      %v2375 = vrsqrt.pop %v2354
      %v2376 = vmul.f32 %v2375, %v2354
      %v2377 = vmul.f32 %v2376, %v2375
      %v2378 = vmul.f32 0.5, %v2377
      %v2379 = vsub.f32 1.5, %v2378
      %v2380 = vmul.f32 %v2375, %v2379
      %vm2381 = vweird.f32 %v2354
      %vm2382 = vweird.f32 %v2375
      %vm2383 = vmor %vm2381, %vm2382
      %v2384 = vsel %vm2383, %v2375, %v2380
      %v2385 = vmul.f32 %v2349, %v2364
      %v2386 = vmul.f32 %v2350, %v2374
      %v2387 = vmul.f32 %v2351, %v2384
      %v2388 = vperm.slane %v1502, 4
      %v2389 = vmul.f32 %v2385, %v2388
      %v2390 = vmul.f32 %v2386, %v2388
      %v2391 = vmul.f32 %v2387, %v2388
      %v2392 = vperm.slane %v1502, 5
      %v2393 = vadd.f32 %v2389, %v2392
      %v2394 = vadd.f32 %v2390, %v2392
      %v2395 = vadd.f32 %v2391, %v2392
      %s2396 = scalar_lea.vmem %s6, 16
      %v2397 = vld [vmem:[%s2396] sm:$0xf]
      %v2398 = vld [vmem:[%s2396 + $0x4] sm:$0xf]
      %v2399 = vld [vmem:[%s2396 + $0x8] sm:$0xf]
      %v2400 = vld [vmem:[%s2396 + $0xc] sm:$0xf]
      %v2401 = vpack.c.bf16 %v2394, %v2393
      %v2402 = vpack.c.bf16 %v2395, %v2395
      %v2403 = vperm.slane %v1502, 6
      %v2408 = vunpack.c.l.b16 %v2397
      %v2409 = vunpack.c.l.b16 %v2398
      %v2410 = vunpack.c.l.b16 %v2399
      %v2411 = vunpack.c.l.b16 %v2400
      %v2412 = vpack.c.b16 %v2409, %v2408
      %v2413 = vpack.c.b16 %v2411, %v2410
      %v2417 = vsel %vm455, %v2401, 0
      %v2420 = vsel %vm455, %v2402, 0
      %2422 = vmatpush.bf16.msra.mxu0 0
      %2423 = vmatpush.bf16.msra.mxu0 0
      %2424 = vmatpush.bf16.msra.mxu0 0
      %2425 = vmatpush.bf16.msra.mxu0 0
      %2426 = vmatpush.bf16.msra.mxu0 0
      %2427 = vmatpush.bf16.msra.mxu0 0
      %2428 = vmatpush.bf16.msra.mxu0 %v2413
      %2429 = vmatpush.bf16.msra.mxu0 %v2412
      %2430 = vmatmul.bf16.gmra.mxu0 %v2417
      %v2431 = vpop.f32.mrf.mxu0
      %v2432 = vadd.f32 %v2403, %v2431
      %v2433 = vpop.f32.mrf.mxu0
      %v2434 = vadd.f32 %v2403, %v2433
      %2435 = vmatmul.bf16.gmra.mxu0 %v2420
      %v2436 = vpop.f32.mrf.mxu0
      %v2437 = vadd.f32 %v2403, %v2436
      %v2438 = vpop.f32.mrf.mxu0
      %2439 = vdwg.mxu0
      %v2440 = vmul.f32 %v2432, %v2432
      %v2441 = vmul.f32 %v2434, %v2434
      %v2442 = vmul.f32 %v2437, %v2437
      %v2443 = vmul.f32 %v2432, %v2440
      %v2444 = vmul.f32 %v2434, %v2441
      %v2445 = vmul.f32 %v2437, %v2442
      %v2446 = vmul.f32 %v2443, 0.044715
      %v2447 = vmul.f32 %v2444, 0.044715
      %v2448 = vmul.f32 %v2445, 0.044715
      %v2449 = vadd.f32 %v2432, %v2446
      %v2450 = vadd.f32 %v2434, %v2447
      %v2451 = vadd.f32 %v2437, %v2448
      %v2452 = vmul.f32 %v2449, 0.7978846
      %v2453 = vmul.f32 %v2450, 0.7978846
      %v2454 = vmul.f32 %v2451, 0.7978846
      %v2455 = vtanh.pop %v2452
      %v2456 = vtanh.pop %v2453
      %v2457 = vtanh.pop %v2454
      %v2458 = vadd.f32 %v2455, 1.0
      %v2459 = vadd.f32 %v2456, 1.0
      %v2460 = vadd.f32 %v2457, 1.0
      %v2461 = vmul.f32 %v2458, 0.5
      %v2462 = vmul.f32 %v2459, 0.5
      %v2463 = vmul.f32 %v2460, 0.5
      %v2464 = vmul.f32 %v2432, %v2461
      %v2465 = vmul.f32 %v2434, %v2462
      %v2466 = vmul.f32 %v2437, %v2463
      %s2467 = scalar_lea.vmem %s7, 32
      %v2468 = vld [vmem:[%s2467] sm:$0xf]
      %v2469 = vld [vmem:[%s2467 + $0x4] sm:$0xf]
      %v2470 = vld [vmem:[%s2467 + $0x8] sm:$0xf]
      %v2471 = vld [vmem:[%s2467 + $0xc] sm:$0xf]
      %v2472 = vld [vmem:[%s2467 + $0x10] sm:$0xf]
      %v2473 = vld [vmem:[%s2467 + $0x14] sm:$0xf]
      %v2474 = vld [vmem:[%s2467 + $0x18] sm:$0xf]
      %v2475 = vld [vmem:[%s2467 + $0x1c] sm:$0xf]
      %v2476 = vpack.c.bf16 %v2465, %v2464
      %v2477 = vpack.c.bf16 %v2466, %v2466
      %v2486 = vunpack.c.l.b16 %v2468
      %v2487 = vunpack.c.l.b16 %v2469
      %v2488 = vunpack.c.l.b16 %v2470
      %v2489 = vunpack.c.l.b16 %v2471
      %v2490 = vunpack.c.l.b16 %v2472
      %v2491 = vunpack.c.l.b16 %v2473
      %v2492 = vunpack.c.l.b16 %v2474
      %v2493 = vunpack.c.l.b16 %v2475
      %v2494 = vpack.c.b16 %v2487, %v2486
      %v2495 = vpack.c.b16 %v2489, %v2488
      %v2496 = vpack.c.b16 %v2491, %v2490
      %v2497 = vpack.c.b16 %v2493, %v2492
      %v2503 = vsel %vm1469, %v2476, 0
      %v2506 = vsel %vm1469, %v2477, 0
      %2508 = vmatpush.bf16.msra.mxu0 0
      %2509 = vmatpush.bf16.msra.mxu0 0
      %2510 = vmatpush.bf16.msra.mxu0 0
      %2511 = vmatpush.bf16.msra.mxu0 0
      %2512 = vmatpush.bf16.msra.mxu0 %v2497
      %2513 = vmatpush.bf16.msra.mxu0 %v2496
      %2514 = vmatpush.bf16.msra.mxu0 %v2495
      %2515 = vmatpush.bf16.msra.mxu0 %v2494
      %2516 = vmatmul.bf16.gmra.mxu0 %v2503
      %v2517 = vpop.f32.mrf.mxu0
      %v2518 = vadd.f32 0.0, %v2517
      %v2519 = vpop.f32.mrf.mxu0
      %v2520 = vadd.f32 0.0, %v2519
      %2521 = vmatmul.bf16.gmra.mxu0 %v2506
      %v2522 = vpop.f32.mrf.mxu0
      %v2523 = vadd.f32 0.0, %v2522
      %v2524 = vpop.f32.mrf.mxu0
      %2525 = vdwg.mxu0
      %v2526 = vadd.f32 %v2310, %v2518
      %v2527 = vadd.f32 %v2311, %v2520
      %v2528 = vadd.f32 %v2312, %v2523
      %v2529 = vperm.slane %v1502, 7
      %v2530 = vadd.f32 %v2526, %v2529
      %v2531 = vadd.f32 %v2527, %v2529
      %v2532 = vadd.f32 %v2528, %v2529
      %v2533 = vld [vmem:[%s10] sm:$0xff]
      %v2534 = vsel %vm455, %v2530, 0.0
      %2535 = vadd.xlane.f32.xlu0 %v2534
      %v2536 = vpop.xlane.xlu0 %2535
      %v2537 = vsel %vm455, %v2531, 0.0
      %2538 = vadd.xlane.f32.xlu0 %v2537
      %v2539 = vpop.xlane.xlu0 %2538
      %v2540 = vsel %vm455, %v2532, 0.0
      %2541 = vadd.xlane.f32.xlu0 %v2540
      %v2542 = vpop.xlane.xlu0 %2541
      %v2543 = vmul.f32 %v2536, %v471
      %v2544 = vmul.f32 %v2539, %v471
      %v2545 = vmul.f32 %v2542, %v471
      %v2546 = vmul.f32 %v2530, %v2530
      %v2547 = vmul.f32 %v2531, %v2531
      %v2548 = vmul.f32 %v2532, %v2532
      %v2549 = vsel %vm455, %v2546, 0.0
      %2550 = vadd.xlane.f32.xlu0 %v2549
      %v2551 = vpop.xlane.xlu0 %2550
      %v2552 = vsel %vm455, %v2547, 0.0
      %2553 = vadd.xlane.f32.xlu0 %v2552
      %v2554 = vpop.xlane.xlu0 %2553
      %v2555 = vsel %vm455, %v2548, 0.0
      %2556 = vadd.xlane.f32.xlu0 %v2555
      %v2557 = vpop.xlane.xlu0 %2556
      %v2558 = vmul.f32 %v2551, %v471
      %v2559 = vmul.f32 %v2554, %v471
      %v2560 = vmul.f32 %v2557, %v471
      %v2561 = vmul.f32 %v2543, %v2543
      %v2562 = vmul.f32 %v2544, %v2544
      %v2563 = vmul.f32 %v2545, %v2545
      %v2564 = vsub.f32 %v2558, %v2561
      %v2565 = vsub.f32 %v2559, %v2562
      %v2566 = vsub.f32 %v2560, %v2563
      %v2567 = vmax.f32 %v2564, 0.0
      %v2568 = vmax.f32 %v2565, 0.0
      %v2569 = vmax.f32 %v2566, 0.0
      %v2570 = vsub.f32 %v2530, %v2543
      %v2571 = vsub.f32 %v2531, %v2544
      %v2572 = vsub.f32 %v2532, %v2545
      %v2573 = vadd.f32 %v2567, 1e-12
      %v2574 = vadd.f32 %v2568, 1e-12
      %v2575 = vadd.f32 %v2569, 1e-12
      %v2576 = vrsqrt.pop %v2573
      %v2577 = vmul.f32 %v2576, %v2573
      %v2578 = vmul.f32 %v2577, %v2576
      %v2579 = vmul.f32 0.5, %v2578
      %v2580 = vsub.f32 1.5, %v2579
      %v2581 = vmul.f32 %v2576, %v2580
      %vm2582 = vweird.f32 %v2573
      %vm2583 = vweird.f32 %v2576
      %vm2584 = vmor %vm2582, %vm2583
      %v2585 = vsel %vm2584, %v2576, %v2581
      %v2586 = vrsqrt.pop %v2574
      %v2587 = vmul.f32 %v2586, %v2574
      %v2588 = vmul.f32 %v2587, %v2586
      %v2589 = vmul.f32 0.5, %v2588
      %v2590 = vsub.f32 1.5, %v2589
      %v2591 = vmul.f32 %v2586, %v2590
      %vm2592 = vweird.f32 %v2574
      %vm2593 = vweird.f32 %v2586
      %vm2594 = vmor %vm2592, %vm2593
      %v2595 = vsel %vm2594, %v2586, %v2591
      %v2596 = vrsqrt.pop %v2575
      %v2597 = vmul.f32 %v2596, %v2575
      %v2598 = vmul.f32 %v2597, %v2596
      %v2599 = vmul.f32 0.5, %v2598
      %v2600 = vsub.f32 1.5, %v2599
      %v2601 = vmul.f32 %v2596, %v2600
      %vm2602 = vweird.f32 %v2575
      %vm2603 = vweird.f32 %v2596
      %vm2604 = vmor %vm2602, %vm2603
      %v2605 = vsel %vm2604, %v2596, %v2601
      %v2606 = vmul.f32 %v2570, %v2585
      %v2607 = vmul.f32 %v2571, %v2595
      %v2608 = vmul.f32 %v2572, %v2605
      %v2609 = vperm.slane %v2533, 0
      %v2610 = vmul.f32 %v2606, %v2609
      %v2611 = vmul.f32 %v2607, %v2609
      %v2612 = vmul.f32 %v2608, %v2609
      %v2613 = vperm.slane %v2533, 1
      %v2614 = vadd.f32 %v2610, %v2613
      %v2615 = vadd.f32 %v2611, %v2613
      %v2616 = vadd.f32 %v2612, %v2613
      %v2617 = vld [vmem:[%s9] sm:$0xf]
      %v2618 = vld [vmem:[%s9 + $0x4] sm:$0xf]
      %v2619 = vld [vmem:[%s9 + $0x8] sm:$0xf]
      %v2620 = vld [vmem:[%s9 + $0xc] sm:$0xf]
      %v2621 = vpack.c.bf16 %v2615, %v2614
      %v2622 = vpack.c.bf16 %v2616, %v2616
      %v2623 = vperm.slane %v2533, 2
      %v2628 = vunpack.c.l.b16 %v2617
      %v2629 = vunpack.c.l.b16 %v2618
      %v2630 = vunpack.c.l.b16 %v2619
      %v2631 = vunpack.c.l.b16 %v2620
      %v2632 = vpack.c.b16 %v2629, %v2628
      %v2633 = vpack.c.b16 %v2631, %v2630
      %v2637 = vsel %vm455, %v2621, 0
      %v2640 = vsel %vm455, %v2622, 0
      %2642 = vmatpush.bf16.msra.mxu0 0
      %2643 = vmatpush.bf16.msra.mxu0 0
      %2644 = vmatpush.bf16.msra.mxu0 0
      %2645 = vmatpush.bf16.msra.mxu0 0
      %2646 = vmatpush.bf16.msra.mxu0 0
      %2647 = vmatpush.bf16.msra.mxu0 0
      %2648 = vmatpush.bf16.msra.mxu0 %v2633
      %2649 = vmatpush.bf16.msra.mxu0 %v2632
      %2650 = vmatmul.bf16.gmra.mxu0 %v2637
      %v2651 = vpop.f32.mrf.mxu0
      %v2652 = vadd.f32 %v2623, %v2651
      %v2653 = vpop.f32.mrf.mxu0
      %v2654 = vadd.f32 %v2623, %v2653
      %2655 = vmatmul.bf16.gmra.mxu0 %v2640
      %v2656 = vpop.f32.mrf.mxu0
      %v2657 = vadd.f32 %v2623, %v2656
      %v2658 = vpop.f32.mrf.mxu0
      %2659 = vdwg.mxu0
      %2660 = vst [vmem:[%s386] sm:$0xff] %v2652
      %2661 = vst [vmem:[%s386 + $0x8] sm:$0xff] %v2654
      %2662 = vst [vmem:[%s386 + $0x10] sm:$0xff] %v2657
      %p2663 = scmp.lt.s32.totalorder %s22, 1
      %s2664 = scalar_select %p2663, %s22, 1
      %s2665 = smul.addr %s2664, 3
      %s2666 = smul.addr %s2665, 8
      %s2667 = scalar_lea.vmem %s11, %s2666
      // Predicated region
      $region65: #{_lambda_.1} parent=63 // pred_check
        %p2668 = pneg %p276
      $region66: #{_lambda_.1} parent=63 // pred_check_branch
        %2670 = sbr.rel (%p2668) target = $region68
      $region67: #{_lambda_.1} parent=63 // pred_region
        _
      $region68: #{_lambda_.1} parent=63 // pred_fallthru
        _
    $region64: #{_lambda_.1} parent=5 // pred_fallthru
      _
    %p2671 = scmp.le.s32.totalorder 2, %s17
    // Predicated region
    $region69: #{_lambda_.1} parent=5 // pred_check
      %p2672 = pneg %p2671
    $region70: #{_lambda_.1} parent=5 // pred_check_branch
      %2674 = sbr.rel (%p2672) target = $region72
    $region71: #{_lambda_.1} parent=5 // pred_region
      %s2675 = ssub.s32 %s17, 2
      // Predicated region
      $region73: #{_lambda_.1} parent=71 // pred_check
        %p2676 = pneg %p282
      $region74: #{_lambda_.1} parent=71 // pred_check_branch
        %2678 = sbr.rel (%p2676) target = $region76
      $region75: #{_lambda_.1} parent=71 // pred_region
        %p2679 = scmp.lt.s32.totalorder %s23, 1
        %s2680 = scalar_select %p2679, %s23, 1
        %s2681 = smul.addr %s2680, 3
        %s2682 = smul.addr %s2681, 8
        %s2683 = scalar_lea.vmem %s11, %s2682
      $region76: #{_lambda_.1} parent=71 // pred_fallthru
        _
    $region72: #{_lambda_.1} parent=5 // pred_fallthru
      _
  $region6: #{_lambda_.1} parent=0 // loop_footer
    %s21 = sadd.s32 1, %s17
  $region7: #{_lambda_.1} parent=0 // loop_footer_branch
    %16 = sbr.rel target = $region3
  $region8: #{_lambda_.1} parent=0 // loop_exit
    _

</llo_original>
